<compile_context>
chip_gen: v7x
topology: tpu7x:2x2x1
jax: 0.10.0
libtpu: 0.0.40
codegen_flags: <defaults>
</compile_context>

<pallas_src>
import functools
import math

import numpy as np
import jax
import jax.numpy as jnp
from jax.experimental import pallas as pl
from jax.experimental.pallas import tpu as pltpu


# ----------------------------------------------------------------------------- helpers
def _round_up(x, m):
    return ((x + m - 1) // m) * m


def _pick_tile(n, candidates=(512, 384, 256, 128)):
    for c in candidates:
        if n % c == 0:
            return c
    return n                       # full-dim block (always legal)


def _pick_seq_tile(s, pref=256):
    for c in (pref, 128, 64, 32, 16, 8):
        if c <= s and s % c == 0:
            return c
    return s


def _pick_head_group(num_heads, head_dim, target_lanes=128):
    g = max(1, min(num_heads, target_lanes // max(head_dim, 1)))
    while num_heads % g != 0:
        g -= 1
    return g


def _pad_rows(a, rows):
    if a.shape[0] == rows:
        return a
    pad = [(0, rows - a.shape[0])] + [(0, 0)] * (a.ndim - 1)
    return jnp.pad(a, pad)


# ----------------------------------------------------------------------------- fused RMSNorm + linear (ln1 -> QKV projection)
def _norm_linear_kernel(x_ref, lnw_ref, w_ref, o_ref, *, eps):
    x = x_ref[...].astype(jnp.float32)
    var = jnp.mean(x * x, axis=-1, keepdims=True)
    xn = (x * jax.lax.rsqrt(var + eps)
          * lnw_ref[...].astype(jnp.float32)).astype(jnp.bfloat16)
    o_ref[...] = jnp.dot(xn, w_ref[...],
                         preferred_element_type=jnp.float32).astype(o_ref.dtype)


def norm_linear_pallas(x, ln_w, w_t, eps=1e-5, out_dtype=jnp.bfloat16):
    """x: [M, K] f32, ln_w: [1, K], w_t: [K, N] bf16 -> (RMSNorm(x) @ w_t) [M, N]."""
    M, K = x.shape
    N = w_t.shape[1]
    tm = min(512, _round_up(M, 8))
    Mpad = _round_up(M, tm)
    tn = _pick_tile(N)
    x_p = _pad_rows(x, Mpad)
    out = pl.pallas_call(
        functools.partial(_norm_linear_kernel, eps=eps),
        out_shape=jax.ShapeDtypeStruct((Mpad, N), out_dtype),
        grid=(Mpad // tm, N // tn),
        in_specs=[
            pl.BlockSpec((tm, K), lambda i, j: (i, 0)),
            pl.BlockSpec((1, K), lambda i, j: (0, 0)),
            pl.BlockSpec((K, tn), lambda i, j: (0, j)),
        ],
        out_specs=pl.BlockSpec((tm, tn), lambda i, j: (i, j)),
        compiler_params=pltpu.CompilerParams(
            dimension_semantics=("parallel", "parallel"),
            vmem_limit_bytes=32 * 1024 * 1024),
    )(x_p, ln_w, w_t)
    return out[:M]


# ----------------------------------------------------------------------------- linear with fused residual (o_proj + residual add)
def _linear_res_kernel(x_ref, w_ref, res_ref, o_ref):
    y = jnp.dot(x_ref[...], w_ref[...], preferred_element_type=jnp.float32)
    o_ref[...] = (y + res_ref[...].astype(jnp.float32)).astype(o_ref.dtype)


def linear_res_pallas(x_bf16, w_t, resid):
    """x_bf16: [M, K] bf16, w_t: [K, N] bf16, resid: [M, N] f32 -> resid + x @ w_t."""
    M, K = x_bf16.shape
    N = w_t.shape[1]
    tm = min(512, _round_up(M, 8))
    Mpad = _round_up(M, tm)
    tn = _pick_tile(N)
    x_p = _pad_rows(x_bf16, Mpad)
    r_p = _pad_rows(resid, Mpad)
    out = pl.pallas_call(
        _linear_res_kernel,
        out_shape=jax.ShapeDtypeStruct((Mpad, N), resid.dtype),
        grid=(Mpad // tm, N // tn),
        in_specs=[
            pl.BlockSpec((tm, K), lambda i, j: (i, 0)),
            pl.BlockSpec((K, tn), lambda i, j: (0, j)),
            pl.BlockSpec((tm, tn), lambda i, j: (i, j)),
        ],
        out_specs=pl.BlockSpec((tm, tn), lambda i, j: (i, j)),
        compiler_params=pltpu.CompilerParams(
            dimension_semantics=("parallel", "parallel"),
            vmem_limit_bytes=32 * 1024 * 1024),
    )(x_p, w_t, r_p)
    return out[:M]


# ----------------------------------------------------------------------------- flash attention (RoPE + causal online softmax)
def _flash_attn_kernel(q_ref, k_ref, v_ref, cosq_ref, sinq_ref, cosk_ref, sink_ref,
                       o_ref, m_sc, l_sc, acc_sc, *, group, head_dim, scale, tq, tk):
    qi = pl.program_id(2)
    ki = pl.program_id(3)

    @pl.when(ki == 0)
    def _init():
        m_sc[...] = jnp.full_like(m_sc, -jnp.inf)
        l_sc[...] = jnp.zeros_like(l_sc)
        acc_sc[...] = jnp.zeros_like(acc_sc)

    # Skip KV blocks that lie strictly above the causal diagonal.
    @pl.when(ki * tk <= qi * tq + (tq - 1))
    def _compute():
        half = head_dim // 2
        cq = cosq_ref[0].astype(jnp.float32)            # (tq, hd)
        sq = sinq_ref[0].astype(jnp.float32)
        ck = cosk_ref[0].astype(jnp.float32)            # (tk, hd)
        sk = sink_ref[0].astype(jnp.float32)

        row = qi * tq + jax.lax.broadcasted_iota(jnp.int32, (tq, tk), 0)
        col = ki * tk + jax.lax.broadcasted_iota(jnp.int32, (tq, tk), 1)
        causal = col <= row

        def rope(t, c, s):
            # rotate_half(t) = concat(-t2, t1): pure lane work, no (hd, hd) MXU matmul.
            rot = jnp.concatenate([-t[:, half:], t[:, :half]], axis=-1)
            return t * c + rot * s

        for h in range(group):                           # static unroll over head group
            sl = slice(h * head_dim, (h + 1) * head_dim)
            qh = q_ref[0][:, sl].astype(jnp.float32) * scale   # scale folded into q
            kh = k_ref[0][:, sl].astype(jnp.float32)
            qh = rope(qh, cq, sq).astype(jnp.bfloat16)
            kh = rope(kh, ck, sk).astype(jnp.bfloat16)

            s = jax.lax.dot_general(qh, kh, (((1,), (1,)), ((), ())),
                                    preferred_element_type=jnp.float32)
            s = jnp.where(causal, s, -1e30)

            m_prev = m_sc[h]                             # (tq, 1)
            m_new = jnp.maximum(m_prev, jnp.max(s, axis=-1, keepdims=True))
            alpha = jnp.exp(m_prev - m_new)
            p = jnp.exp(s - m_new)
            l_sc[h] = alpha * l_sc[h] + jnp.sum(p, axis=-1, keepdims=True)
            acc_sc[:, sl] = alpha * acc_sc[:, sl] + jnp.dot(
                p.astype(jnp.bfloat16), v_ref[0][:, sl],
                preferred_element_type=jnp.float32)
            m_sc[h] = m_new

    @pl.when(ki == pl.num_programs(3) - 1)
    def _done():
        for h in range(group):
            sl = slice(h * head_dim, (h + 1) * head_dim)
            inv = pl.reciprocal(l_sc[h], approx=True)    # softmax denom on the EUP
            acc_sc[:, sl] = acc_sc[:, sl] * inv
        o_ref[0] = acc_sc[...].astype(o_ref.dtype)


def flash_attention_pallas(qkv, cos_g, sin_g, *, num_heads, head_dim, group):
    """qkv: [B, S, 3H] bf16 (fused QKV activation); cos_g/sin_g: [B, S, hd] f32.
    Returns [B, S, H] bf16 in the same (head-major-in-lanes) layout as qkv's Q part,
    so no transpose is needed before the output projection."""
    B, S, three_h = qkv.shape
    H = three_h // 3
    nHG = num_heads // group
    gw = group * head_dim                       # lane width of one head-group block
    tq = _pick_seq_tile(S)
    tk = _pick_seq_tile(S)
    scale = 1.0 / math.sqrt(head_dim)
    kern = functools.partial(_flash_attn_kernel, group=group, head_dim=head_dim,
                             scale=scale, tq=tq, tk=tk)
    return pl.pallas_call(
        kern,
        out_shape=jax.ShapeDtypeStruct((B, S, H), jnp.bfloat16),
        grid=(B, nHG, S // tq, S // tk),
        in_specs=[
            pl.BlockSpec((1, tq, gw), lambda b, hg, qi, ki: (b, qi, hg)),
            pl.BlockSpec((1, tk, gw), lambda b, hg, qi, ki: (b, ki, nHG + hg)),
            pl.BlockSpec((1, tk, gw), lambda b, hg, qi, ki: (b, ki, 2 * nHG + hg)),
            pl.BlockSpec((1, tq, head_dim), lambda b, hg, qi, ki: (b, qi, 0)),
            pl.BlockSpec((1, tq, head_dim), lambda b, hg, qi, ki: (b, qi, 0)),
            pl.BlockSpec((1, tk, head_dim), lambda b, hg, qi, ki: (b, ki, 0)),
            pl.BlockSpec((1, tk, head_dim), lambda b, hg, qi, ki: (b, ki, 0)),
        ],
        out_specs=pl.BlockSpec((1, tq, gw), lambda b, hg, qi, ki: (b, qi, hg)),
        scratch_shapes=[
            pltpu.VMEM((group, tq, 1), jnp.float32),     # running max (per head)
            pltpu.VMEM((group, tq, 1), jnp.float32),     # running sum (per head)
            pltpu.VMEM((tq, gw), jnp.float32),           # lane-dense accumulator
        ],
        compiler_params=pltpu.CompilerParams(
            dimension_semantics=("parallel", "parallel", "parallel", "arbitrary"),
            vmem_limit_bytes=32 * 1024 * 1024),
    )(qkv, qkv, qkv, cos_g, sin_g, cos_g, sin_g)


# ----------------------------------------------------------------------------- fused ln2 + SwiGLU MLP + residual
def _mlp_kernel(x_ref, lnw_ref, wgu_ref, wd_ref, o_ref, xn_ref, acc_ref, *, eps):
    k = pl.program_id(1)

    @pl.when(k == 0)
    def _init():
        acc_ref[...] = jnp.zeros_like(acc_ref)
        xv = x_ref[...].astype(jnp.float32)              # ln2 once per M tile
        var = jnp.mean(xv * xv, axis=-1, keepdims=True)
        xn_ref[...] = (xv * jax.lax.rsqrt(var + eps)
                       * lnw_ref[...].astype(jnp.float32)).astype(xn_ref.dtype)

    # One fused (tm,H)@(H,2*ti) matmul gives [gate_tile | up_tile] for this I-chunk.
    gu = jnp.dot(xn_ref[...], wgu_ref[...], preferred_element_type=jnp.float32)
    ti = gu.shape[-1] // 2
    g = gu[:, :ti]
    u = gu[:, ti:]
    h = (g * jax.nn.sigmoid(g)) * u                      # SwiGLU elementwise math in f32
    acc_ref[...] += jnp.dot(h.astype(jnp.bfloat16), wd_ref[...],
                            preferred_element_type=jnp.float32)

    @pl.when(k == pl.num_programs(1) - 1)
    def _done():                                         # fused residual: x block itself
        o_ref[...] = (acc_ref[...] + x_ref[...].astype(jnp.float32)).astype(o_ref.dtype)


def prepare_mlp_weights(wg, wu, wd, ti_pref=512):
    """wg/wu: [I, H]; wd: [H, I] (PyTorch layout). Done ONCE, outside the hot path.
    ti_pref: 512 for v5e/v6e (128 MiB VMEM); use 256 on v7x (64 MiB VMEM)."""
    I, H = wg.shape
    ti = min(ti_pref, _round_up(I, 128))
    assert ti % 128 == 0
    Ipad = _round_up(I, ti)
    nk = Ipad // ti
    wg_t = jnp.zeros((H, Ipad), jnp.bfloat16).at[:, :I].set(wg.T.astype(jnp.bfloat16))
    wu_t = jnp.zeros((H, Ipad), jnp.bfloat16).at[:, :I].set(wu.T.astype(jnp.bfloat16))
    wd_t = jnp.zeros((Ipad, H), jnp.bfloat16).at[:I, :].set(wd.T.astype(jnp.bfloat16))
    # Interleave gate/up per ti-chunk so grid step k reads one contiguous (H, 2*ti) slab.
    wgu = jnp.concatenate(
        [wg_t.reshape(H, nk, 1, ti), wu_t.reshape(H, nk, 1, ti)], axis=2
    ).reshape(H, 2 * Ipad)
    return wgu, wd_t, ti


def mlp_pallas(x, ln2_w, wgu, wd_t, ti, eps=1e-5):
    """x: [M, H] f32 (pre-norm residual stream). Returns x + SwiGLU(RMSNorm(x))."""
    M, H = x.shape
    Ipad = wd_t.shape[0]
    nk = Ipad // ti
    tm = min(512, _round_up(M, 8))
    Mpad = _round_up(M, tm)
    n_m = Mpad // tm
    x_p = _pad_rows(x, Mpad)

    bytes_accessed = (4 * Mpad * H                       # x (f32, read; also residual)
                      + n_m * (2 * 2 * Ipad * H          # gate/up weights, re-streamed
                               + 2 * Ipad * H)           # down-proj weights, re-streamed
                      + 4 * Mpad * H)                    # output (f32)

    out = pl.pallas_call(
        functools.partial(_mlp_kernel, eps=eps),
        out_shape=jax.ShapeDtypeStruct((Mpad, H), x.dtype),
        grid=(n_m, nk),
        in_specs=[
            pl.BlockSpec((tm, H), lambda i, k: (i, 0)),        # x (ln2 input + residual)
            pl.BlockSpec((1, H), lambda i, k: (0, 0)),         # ln2 weight
            pl.BlockSpec((H, 2 * ti), lambda i, k: (0, k)),    # fused gate/up weight
            pl.BlockSpec((ti, H), lambda i, k: (k, 0)),        # down-proj weight
        ],
        out_specs=pl.BlockSpec((tm, H), lambda i, k: (i, 0)),  # invariant over k
        scratch_shapes=[pltpu.VMEM((tm, H), jnp.bfloat16),     # normalized x (reused)
                        pltpu.VMEM((tm, H), jnp.float32)],     # f32 accumulator
        compiler_params=pltpu.CompilerParams(
            dimension_semantics=("parallel", "arbitrary"),
            vmem_limit_bytes=48 * 1024 * 1024),
        cost_estimate=pl.CostEstimate(
            flops=6 * Mpad * H * Ipad,
            transcendentals=Mpad * Ipad,
            bytes_accessed=bytes_accessed),
    )(x_p, ln2_w, wgu, wd_t)
    return out[:M]


# ----------------------------------------------------------------------------- RoPE tables
def rope_cache(head_dim, max_pos, base=10000.0):
    inv_freq = 1.0 / (base ** (np.arange(0, head_dim, 2, dtype=np.float32) / head_dim))
    t = np.arange(max_pos, dtype=np.float32)
    freqs = np.outer(t, inv_freq)
    emb = np.concatenate([freqs, freqs], axis=-1)
    return (jnp.asarray(np.cos(emb), jnp.float32),
            jnp.asarray(np.sin(emb), jnp.float32))


# ----------------------------------------------------------------------------- DecoderLayer forward
def decoder_layer_pallas(x, position_ids, p):
    B, S, H = x.shape
    nH = p["num_heads"]
    hd = H // nH
    G = p["head_group"]
    x2 = x.reshape(B * S, H)                                   # f32 residual stream

    # --- attention block ---
    qkv = norm_linear_pallas(x2, p["ln1_w"], p["wqkv_t"])      # fused ln1 + QKV, bf16
    qkv = qkv.reshape(B, S, 3 * H)                             # free reshape, no transpose
    cos_g = p["cos_cached"][position_ids]                      # [B, S, hd] f32
    sin_g = p["sin_cached"][position_ids]
    ao = flash_attention_pallas(qkv, cos_g, sin_g,
                                num_heads=nH, head_dim=hd, group=G)   # [B, S, H] bf16
    x2 = linear_res_pallas(ao.reshape(B * S, H), p["wo_t"], x2)       # o_proj + residual

    # --- MLP block (ln2, SwiGLU and residual all fused into one kernel) ---
    y = mlp_pallas(x2, p["ln2_w"], p["wgu"], p["wd_t"], p["mlp_ti"])
    return y.reshape(B, S, H)


# ----------------------------------------------------------------------------- pure-JAX reference (mirrors the PyTorch module)
def _ref_decoder_layer(x, p, position_ids):
    def rmsnorm(t, w, eps=1e-5):
        var = jnp.mean(t * t, axis=-1, keepdims=True)
        return w * (t * jax.lax.rsqrt(var + eps))

    B, S, H = x.shape
    nH = p["num_heads"]
    hd = H // nH

    h = rmsnorm(x, p["ln1_w"])
    q = h @ p["wq"].T
    k = h @ p["wk"].T
    v = h @ p["wv"].T
    q = q.reshape(B, S, nH, hd).transpose(0, 2, 1, 3)
    k = k.reshape(B, S, nH, hd).transpose(0, 2, 1, 3)
    v = v.reshape(B, S, nH, hd).transpose(0, 2, 1, 3)

    cos = p["cos_cached"][position_ids][:, None]   # [B,1,S,hd]
    sin = p["sin_cached"][position_ids][:, None]

    def rot_half(t):
        return jnp.concatenate([-t[..., hd // 2:], t[..., :hd // 2]], axis=-1)

    q = q * cos + rot_half(q) * sin
    k = k * cos + rot_half(k) * sin

    s = jnp.einsum("bhqd,bhkd->bhqk", q, k) / math.sqrt(hd)
    mask = jnp.tril(jnp.ones((S, S), bool))
    s = jnp.where(mask, s, -jnp.inf)
    att = jax.nn.softmax(s, axis=-1)
    o = jnp.einsum("bhqk,bhkd->bhqd", att, v)
    o = o.transpose(0, 2, 1, 3).reshape(B, S, H) @ p["wo"].T
    x = x + o

    h2 = rmsnorm(x, p["ln2_w"])
    g = h2 @ p["wg"].T
    g = g * jax.nn.sigmoid(g)
    u = h2 @ p["wu"].T
    return x + (g * u) @ p["wd"].T


# ----------------------------------------------------------------------------- main
if __name__ == "__main__":
    H, nH, MAX_POS = 128, 4, 64
    hd = H // nH
    I = int(H * 2.68)          # 343
    B, S = 2, 8

    key = jax.random.PRNGKey(0)
    kx, kq, kk, kv, ko, kg, ku, kd, k1, k2 = jax.random.split(key, 10)

    def uinit(k, shape, fan_in):
        b = 1.0 / math.sqrt(fan_in)
        return jax.random.uniform(k, shape, minval=-b, maxval=b, dtype=jnp.float32)

    x = jax.random.normal(kx, (B, S, H), dtype=jnp.float32)
    wq = uinit(kq, (H, H), H)
    wk = uinit(kk, (H, H), H)
    wv = uinit(kv, (H, H), H)
    wo = uinit(ko, (H, H), H)
    wg = uinit(kg, (I, H), H)
    wu = uinit(ku, (I, H), H)
    wd = uinit(kd, (H, I), I)
    ln1_w = 1.0 + 0.1 * jax.random.normal(k1, (H,), dtype=jnp.float32)
    ln2_w = 1.0 + 0.1 * jax.random.normal(k2, (H,), dtype=jnp.float32)

    position_ids = jnp.tile(jnp.arange(S, dtype=jnp.int32)[None, :], (B, 1))
    cos_c, sin_c = rope_cache(hd, MAX_POS)

    # One-time weight prep (transposes / padding / gate-up fusion / bf16 cast).
    wgu, wd_t, mlp_ti = prepare_mlp_weights(wg, wu, wd, ti_pref=512)
    prepped = dict(
        num_heads=nH,
        head_group=_pick_head_group(nH, hd),                      # 4 heads -> 128 lanes
        ln1_w=ln1_w.reshape(1, H),
        ln2_w=ln2_w.reshape(1, H),
        wqkv_t=jnp.concatenate([wq.T, wk.T, wv.T], axis=1).astype(jnp.bfloat16),
        wo_t=wo.T.astype(jnp.bfloat16),
        cos_cached=cos_c,
        sin_cached=sin_c,
        wgu=wgu,
        wd_t=wd_t,
        mlp_ti=mlp_ti,
    )

    fwd = jax.jit(lambda xx, pos: decoder_layer_pallas(xx, pos, prepped))
    out = jax.block_until_ready(fwd(x, position_ids))

    ref = _ref_decoder_layer(
        x,
        dict(num_heads=nH, ln1_w=ln1_w, ln2_w=ln2_w,
             wq=wq, wk=wk, wv=wv, wo=wo, wg=wg, wu=wu, wd=wd,
             cos_cached=cos_c, sin_cached=sin_c),
        position_ids)

    assert out.shape == (B, S, H)
    max_err = float(jnp.max(jnp.abs(out - ref)))
    # bf16 MXU inputs throughout (QKV / attention / o_proj / MLP) -> loosened tolerance.
    assert jnp.allclose(out, ref, atol=3e-2, rtol=3e-2), \
        f"mismatch vs reference (max abs err {max_err})"
    print("KERNEL_OK")
</pallas_src>

<mosaic_0001>
module attributes {stable_mosaic.version = 11 : i64} {
  func.func @_norm_linear_kernel(%arg0: i32, %arg1: i32, %arg2: memref<16x128xf32, #tpu.memory_space<vmem>>, %arg3: memref<1x128xf32, #tpu.memory_space<vmem>>, %arg4: memref<128x384xbf16, #tpu.memory_space<vmem>>, %arg5: memref<16x384xbf16, #tpu.memory_space<vmem>>) attributes {dimension_semantics = [#tpu.dimension_semantics<parallel>, #tpu.dimension_semantics<parallel>], iteration_bounds = array<i64: 1, 1>, scalar_prefetch = 0 : i64, scratch_operands = 0 : i64, tpu.core_type = #tpu.core_type<tc>, window_params = [{transform_indices = @transform_0, window_bounds = array<i64: 16, 128>}, {pipeline_mode = #tpu.pipeline_mode<synchronous>, transform_indices = @transform_1, window_bounds = array<i64: 1, 128>}, {transform_indices = @transform_2, window_bounds = array<i64: 128, 384>}, {transform_indices = @transform_3, window_bounds = array<i64: 16, 384>}]} {
    %c0 = arith.constant 0 : index
    %c0_0 = arith.constant 0 : index
    %0 = vector.load %arg2[%c0, %c0_0] : memref<16x128xf32, #tpu.memory_space<vmem>>, vector<16x128xf32>
    %1 = arith.mulf %0, %0 : vector<16x128xf32>
    %cst = arith.constant dense<0.000000e+00> : vector<16xf32>
    %2 = vector.multi_reduction <add>, %1, %cst [1] : vector<16x128xf32> to vector<16xf32>
    %3 = vector.shape_cast %2 : vector<16xf32> to vector<16x1xf32>
    %cst_1 = arith.constant 1.280000e+02 : f32
    %4 = vector.broadcast %cst_1 : f32 to vector<16x1xf32>
    %5 = arith.divf %3, %4 : vector<16x1xf32>
    %cst_2 = arith.constant 9.99999974E-6 : f32
    %6 = vector.broadcast %cst_2 : f32 to vector<16x1xf32>
    %7 = arith.addf %5, %6 : vector<16x1xf32>
    %8 = math.rsqrt %7 : vector<16x1xf32>
    %9 = vector.broadcast %8 : vector<16x1xf32> to vector<16x128xf32>
    %10 = arith.mulf %0, %9 : vector<16x128xf32>
    %c0_3 = arith.constant 0 : index
    %c0_4 = arith.constant 0 : index
    %11 = vector.load %arg3[%c0_3, %c0_4] : memref<1x128xf32, #tpu.memory_space<vmem>>, vector<1x128xf32>
    %12 = vector.broadcast %11 : vector<1x128xf32> to vector<16x128xf32>
    %13 = arith.mulf %10, %12 : vector<16x128xf32>
    %14 = arith.truncf %13 : vector<16x128xf32> to vector<16x128xbf16>
    %c0_5 = arith.constant 0 : index
    %c0_6 = arith.constant 0 : index
    %15 = vector.load %arg4[%c0_5, %c0_6] : memref<128x384xbf16, #tpu.memory_space<vmem>>, vector<128x384xbf16>
    %cst_7 = arith.constant dense<0.000000e+00> : vector<16x384xf32>
    %16 = tpu.matmul %14, %15, %cst_7 {dimension_numbers = #tpu.dot_dimension_numbers<[1], [0], [0], [1], [0, 0, 1, 1], [], []>} : vector<16x128xbf16>, vector<128x384xbf16>, vector<16x384xf32> -> vector<16x384xf32>
    %17 = arith.truncf %16 : vector<16x384xf32> to vector<16x384xbf16>
    %c0_8 = arith.constant 0 : index
    %c0_9 = arith.constant 0 : index
    %18 = vector.load %arg5[%c0_8, %c0_9] : memref<16x384xbf16, #tpu.memory_space<vmem>>, vector<16x384xbf16>
    tpu.vector_store %arg5[%c0_8, %c0_9], %17 {strides = array<i32>} : memref<16x384xbf16, #tpu.memory_space<vmem>>, vector<16x384xbf16>,
    return
  }
  func.func @transform_0(%arg0: i32, %arg1: i32) -> (i32, i32) {
    %c0_i32 = arith.constant 0 : i32
    %c0_i32_0 = arith.constant 0 : i32
    return %arg0, %c0_i32 : i32, i32
  }
  func.func @transform_1(%arg0: i32, %arg1: i32) -> (i32, i32) {
    %c0_i32 = arith.constant 0 : i32
    %c0_i32_0 = arith.constant 0 : i32
    %c0_i32_1 = arith.constant 0 : i32
    return %c0_i32, %c0_i32_0 : i32, i32
  }
  func.func @transform_2(%arg0: i32, %arg1: i32) -> (i32, i32) {
    %c0_i32 = arith.constant 0 : i32
    %c0_i32_0 = arith.constant 0 : i32
    return %c0_i32, %arg1 : i32, i32
  }
  func.func @transform_3(%arg0: i32, %arg1: i32) -> (i32, i32) {
    %c0_i32 = arith.constant 0 : i32
    return %arg0, %arg1 : i32, i32
  }
}

module attributes {stable_mosaic.version = 11 : i64} {
  func.func @_linear_res_kernel(%arg0: i32, %arg1: i32, %arg2: memref<16x128xbf16, #tpu.memory_space<vmem>>, %arg3: memref<128x128xbf16, #tpu.memory_space<vmem>>, %arg4: memref<16x128xf32, #tpu.memory_space<vmem>>, %arg5: memref<16x128xf32, #tpu.memory_space<vmem>>) attributes {dimension_semantics = [#tpu.dimension_semantics<parallel>, #tpu.dimension_semantics<parallel>], iteration_bounds = array<i64: 1, 1>, scalar_prefetch = 0 : i64, scratch_operands = 0 : i64, tpu.core_type = #tpu.core_type<tc>, window_params = [{transform_indices = @transform_0, window_bounds = array<i64: 16, 128>}, {transform_indices = @transform_1, window_bounds = array<i64: 128, 128>}, {transform_indices = @transform_2, window_bounds = array<i64: 16, 128>}, {transform_indices = @transform_3, window_bounds = array<i64: 16, 128>}]} {
    %c0 = arith.constant 0 : index
    %c0_0 = arith.constant 0 : index
    %0 = vector.load %arg2[%c0, %c0_0] : memref<16x128xbf16, #tpu.memory_space<vmem>>, vector<16x128xbf16>
    %c0_1 = arith.constant 0 : index
    %c0_2 = arith.constant 0 : index
    %1 = vector.load %arg3[%c0_1, %c0_2] : memref<128x128xbf16, #tpu.memory_space<vmem>>, vector<128x128xbf16>
    %cst = arith.constant dense<0.000000e+00> : vector<16x128xf32>
    %2 = tpu.matmul %0, %1, %cst {dimension_numbers = #tpu.dot_dimension_numbers<[1], [0], [0], [1], [0, 0, 1, 1], [], []>} : vector<16x128xbf16>, vector<128x128xbf16>, vector<16x128xf32> -> vector<16x128xf32>
    %c0_3 = arith.constant 0 : index
    %c0_4 = arith.constant 0 : index
    %3 = vector.load %arg4[%c0_3, %c0_4] : memref<16x128xf32, #tpu.memory_space<vmem>>, vector<16x128xf32>
    %4 = arith.addf %2, %3 : vector<16x128xf32>
    %c0_5 = arith.constant 0 : index
    %c0_6 = arith.constant 0 : index
    %5 = vector.load %arg5[%c0_5, %c0_6] : memref<16x128xf32, #tpu.memory_space<vmem>>, vector<16x128xf32>
    tpu.vector_store %arg5[%c0_5, %c0_6], %4 {strides = array<i32>} : memref<16x128xf32, #tpu.memory_space<vmem>>, vector<16x128xf32>,
    return
  }
  func.func @transform_0(%arg0: i32, %arg1: i32) -> (i32, i32) {
    %c0_i32 = arith.constant 0 : i32
    %c0_i32_0 = arith.constant 0 : i32
    return %arg0, %c0_i32 : i32, i32
  }
  func.func @transform_1(%arg0: i32, %arg1: i32) -> (i32, i32) {
    %c0_i32 = arith.constant 0 : i32
    %c0_i32_0 = arith.constant 0 : i32
    return %c0_i32, %arg1 : i32, i32
  }
  func.func @transform_2(%arg0: i32, %arg1: i32) -> (i32, i32) {
    %c0_i32 = arith.constant 0 : i32
    return %arg0, %arg1 : i32, i32
  }
  func.func @transform_3(%arg0: i32, %arg1: i32) -> (i32, i32) {
    %c0_i32 = arith.constant 0 : i32
    return %arg0, %arg1 : i32, i32
  }
}

module attributes {stable_mosaic.version = 11 : i64} {
  func.func @_flash_attn_kernel(%arg0: i32, %arg1: i32, %arg2: i32, %arg3: i32, %arg4: memref<1x8x128xbf16, #tpu.memory_space<vmem>>, %arg5: memref<1x8x128xbf16, #tpu.memory_space<vmem>>, %arg6: memref<1x8x128xbf16, #tpu.memory_space<vmem>>, %arg7: memref<1x8x32xf32, #tpu.memory_space<vmem>>, %arg8: memref<1x8x32xf32, #tpu.memory_space<vmem>>, %arg9: memref<1x8x32xf32, #tpu.memory_space<vmem>>, %arg10: memref<1x8x32xf32, #tpu.memory_space<vmem>>, %arg11: memref<1x8x128xbf16, #tpu.memory_space<vmem>>, %arg12: memref<4x8x1xf32, #tpu.memory_space<vmem>>, %arg13: memref<4x8x1xf32, #tpu.memory_space<vmem>>, %arg14: memref<8x128xf32, #tpu.memory_space<vmem>>) attributes {dimension_semantics = [#tpu.dimension_semantics<parallel>, #tpu.dimension_semantics<parallel>, #tpu.dimension_semantics<parallel>, #tpu.dimension_semantics<arbitrary>], iteration_bounds = array<i64: 2, 1, 1, 1>, scalar_prefetch = 0 : i64, scratch_operands = 3 : i64, tpu.core_type = #tpu.core_type<tc>, window_params = [{transform_indices = @transform_0, window_bounds = array<i64: 1, 8, 128>}, {transform_indices = @transform_1, window_bounds = array<i64: 1, 8, 128>}, {transform_indices = @transform_2, window_bounds = array<i64: 1, 8, 128>}, {transform_indices = @transform_3, window_bounds = array<i64: 1, 8, 32>}, {transform_indices = @transform_4, window_bounds = array<i64: 1, 8, 32>}, {transform_indices = @transform_5, window_bounds = array<i64: 1, 8, 32>}, {transform_indices = @transform_6, window_bounds = array<i64: 1, 8, 32>}, {transform_indices = @transform_7, window_bounds = array<i64: 1, 8, 128>}]} {
    %c0_i32 = arith.constant 0 : i32
    %0 = arith.cmpi eq, %arg3, %c0_i32 : i32
    %1 = arith.extui %0 : i1 to i32
    %c0_i32_0 = arith.constant 0 : i32
    %2 = arith.cmpi ne, %1, %c0_i32_0 : i32
    scf.if %2 {
      %cst = arith.constant 0xFF800000 : f32
      %12 = vector.broadcast %cst : f32 to vector<4x8x1xf32>
      %c0 = arith.constant 0 : index
      %c0_5 = arith.constant 0 : index
      %c0_6 = arith.constant 0 : index
      %13 = vector.load %arg12[%c0, %c0_5, %c0_6] : memref<4x8x1xf32, #tpu.memory_space<vmem>>, vector<4x8x1xf32>
      tpu.vector_store %arg12[%c0, %c0_5, %c0_6], %12 {strides = array<i32>} : memref<4x8x1xf32, #tpu.memory_space<vmem>>, vector<4x8x1xf32>,
      %cst_7 = arith.constant 0.000000e+00 : f32
      %14 = vector.broadcast %cst_7 : f32 to vector<4x8x1xf32>
      %c0_8 = arith.constant 0 : index
      %c0_9 = arith.constant 0 : index
      %c0_10 = arith.constant 0 : index
      %15 = vector.load %arg13[%c0_8, %c0_9, %c0_10] : memref<4x8x1xf32, #tpu.memory_space<vmem>>, vector<4x8x1xf32>
      tpu.vector_store %arg13[%c0_8, %c0_9, %c0_10], %14 {strides = array<i32>} : memref<4x8x1xf32, #tpu.memory_space<vmem>>, vector<4x8x1xf32>,
      %cst_11 = arith.constant 0.000000e+00 : f32
      %16 = vector.broadcast %cst_11 : f32 to vector<8x128xf32>
      %c0_12 = arith.constant 0 : index
      %c0_13 = arith.constant 0 : index
      %17 = vector.load %arg14[%c0_12, %c0_13] : memref<8x128xf32, #tpu.memory_space<vmem>>, vector<8x128xf32>
      tpu.vector_store %arg14[%c0_12, %c0_13], %16 {strides = array<i32>} : memref<8x128xf32, #tpu.memory_space<vmem>>, vector<8x128xf32>,
    } else {
    }
    %c8_i32 = arith.constant 8 : i32
    %3 = arith.muli %arg3, %c8_i32 : i32
    %c8_i32_1 = arith.constant 8 : i32
    %4 = arith.muli %arg2, %c8_i32_1 : i32
    %c7_i32 = arith.constant 7 : i32
    %5 = arith.addi %4, %c7_i32 : i32
    %6 = arith.cmpi sle, %3, %5 : i32
    %7 = arith.extui %6 : i1 to i32
    %c0_i32_2 = arith.constant 0 : i32
    %8 = arith.cmpi ne, %7, %c0_i32_2 : i32
    scf.if %8 {
      %c0 = arith.constant 0 : index
      %c0_5 = arith.constant 0 : index
      %c0_6 = arith.constant 0 : index
      %12 = vector.load %arg7[%c0, %c0_5, %c0_6] : memref<1x8x32xf32, #tpu.memory_space<vmem>>, vector<1x8x32xf32>
      %13 = vector.shape_cast %12 : vector<1x8x32xf32> to vector<8x32xf32>
      %c0_7 = arith.constant 0 : index
      %c0_8 = arith.constant 0 : index
      %c0_9 = arith.constant 0 : index
      %14 = vector.load %arg8[%c0_7, %c0_8, %c0_9] : memref<1x8x32xf32, #tpu.memory_space<vmem>>, vector<1x8x32xf32>
      %15 = vector.shape_cast %14 : vector<1x8x32xf32> to vector<8x32xf32>
      %c0_10 = arith.constant 0 : index
      %c0_11 = arith.constant 0 : index
      %c0_12 = arith.constant 0 : index
      %16 = vector.load %arg9[%c0_10, %c0_11, %c0_12] : memref<1x8x32xf32, #tpu.memory_space<vmem>>, vector<1x8x32xf32>
      %17 = vector.shape_cast %16 : vector<1x8x32xf32> to vector<8x32xf32>
      %c0_13 = arith.constant 0 : index
      %c0_14 = arith.constant 0 : index
      %c0_15 = arith.constant 0 : index
      %18 = vector.load %arg10[%c0_13, %c0_14, %c0_15] : memref<1x8x32xf32, #tpu.memory_space<vmem>>, vector<1x8x32xf32>
      %19 = vector.shape_cast %18 : vector<1x8x32xf32> to vector<8x32xf32>
      %c8_i32_16 = arith.constant 8 : i32
      %20 = arith.muli %arg2, %c8_i32_16 : i32
      %21 = tpu.iota {dimensions = array<i32: 0>} : vector<8x8xi32>
      %22 = vector.broadcast %20 : i32 to vector<8x8xi32>
      %23 = arith.addi %22, %21 : vector<8x8xi32>
      %c8_i32_17 = arith.constant 8 : i32
      %24 = arith.muli %arg3, %c8_i32_17 : i32
      %25 = tpu.iota {dimensions = array<i32: 1>} : vector<8x8xi32>
      %26 = vector.broadcast %24 : i32 to vector<8x8xi32>
      %27 = arith.addi %26, %25 : vector<8x8xi32>
      %28 = arith.cmpi sle, %27, %23 : vector<8x8xi32>
      %c0_18 = arith.constant 0 : index
      %c0_19 = arith.constant 0 : index
      %c0_20 = arith.constant 0 : index
      %29 = vector.load %arg4[%c0_18, %c0_19, %c0_20] : memref<1x8x128xbf16, #tpu.memory_space<vmem>>, vector<1x8x128xbf16>
      %30 = vector.shape_cast %29 : vector<1x8x128xbf16> to vector<8x128xbf16>
      %31 = vector.extract_strided_slice %30 {offsets = [0, 0], sizes = [8, 32], strides = [1, 1]} : vector<8x128xbf16> to vector<8x32xbf16>
      %32 = arith.extf %31 : vector<8x32xbf16> to vector<8x32xf32>
      %cst = arith.constant 0.176776692 : f32
      %33 = vector.broadcast %cst : f32 to vector<8x32xf32>
      %34 = arith.mulf %32, %33 : vector<8x32xf32>
      %c0_21 = arith.constant 0 : index
      %c0_22 = arith.constant 0 : index
      %c0_23 = arith.constant 0 : index
      %35 = vector.load %arg5[%c0_21, %c0_22, %c0_23] : memref<1x8x128xbf16, #tpu.memory_space<vmem>>, vector<1x8x128xbf16>
      %36 = vector.shape_cast %35 : vector<1x8x128xbf16> to vector<8x128xbf16>
      %37 = vector.extract_strided_slice %36 {offsets = [0, 0], sizes = [8, 32], strides = [1, 1]} : vector<8x128xbf16> to vector<8x32xbf16>
      %38 = arith.extf %37 : vector<8x32xbf16> to vector<8x32xf32>
      %39 = vector.extract_strided_slice %34 {offsets = [0, 16], sizes = [8, 16], strides = [1, 1]} : vector<8x32xf32> to vector<8x16xf32>
      %cst_24 = arith.constant 0.000000e+00 : f32
      %40 = vector.broadcast %cst_24 : f32 to vector<8x16xf32>
      %41 = arith.subf %40, %39 : vector<8x16xf32>
      %42 = vector.extract_strided_slice %34 {offsets = [0, 0], sizes = [8, 16], strides = [1, 1]} : vector<8x32xf32> to vector<8x16xf32>
      %43 = tpu.concatenate %41, %42 in 1 : vector<8x16xf32>, vector<8x16xf32> -> vector<8x32xf32>
      %44 = arith.mulf %34, %13 : vector<8x32xf32>
      %45 = arith.mulf %43, %15 : vector<8x32xf32>
      %46 = arith.addf %44, %45 : vector<8x32xf32>
      %47 = arith.truncf %46 : vector<8x32xf32> to vector<8x32xbf16>
      %48 = vector.extract_strided_slice %38 {offsets = [0, 16], sizes = [8, 16], strides = [1, 1]} : vector<8x32xf32> to vector<8x16xf32>
      %cst_25 = arith.constant 0.000000e+00 : f32
      %49 = vector.broadcast %cst_25 : f32 to vector<8x16xf32>
      %50 = arith.subf %49, %48 : vector<8x16xf32>
      %51 = vector.extract_strided_slice %38 {offsets = [0, 0], sizes = [8, 16], strides = [1, 1]} : vector<8x32xf32> to vector<8x16xf32>
      %52 = tpu.concatenate %50, %51 in 1 : vector<8x16xf32>, vector<8x16xf32> -> vector<8x32xf32>
      %53 = arith.mulf %38, %17 : vector<8x32xf32>
      %54 = arith.mulf %52, %19 : vector<8x32xf32>
      %55 = arith.addf %53, %54 : vector<8x32xf32>
      %56 = arith.truncf %55 : vector<8x32xf32> to vector<8x32xbf16>
      %cst_26 = arith.constant dense<0.000000e+00> : vector<8x8xf32>
      %57 = tpu.matmul %47, %56, %cst_26 {dimension_numbers = #tpu.dot_dimension_numbers<[1], [1], [0], [0], [0, 0, 1, 0], [], []>} : vector<8x32xbf16>, vector<8x32xbf16>, vector<8x8xf32> -> vector<8x8xf32>
      %cst_27 = arith.constant -1.000000e+30 : f32
      %58 = vector.broadcast %cst_27 : f32 to vector<8x8xf32>
      %59 = arith.select %28, %57, %58 : vector<8x8xi1>, vector<8x8xf32>
      %c0_28 = arith.constant 0 : index
      %c0_29 = arith.constant 0 : index
      %c0_30 = arith.constant 0 : index
      %60 = vector.load %arg12[%c0_28, %c0_29, %c0_30] : memref<4x8x1xf32, #tpu.memory_space<vmem>>, vector<1x8x1xf32>
      %61 = vector.shape_cast %60 : vector<1x8x1xf32> to vector<8x1xf32>
      %cst_31 = arith.constant dense<0xFF800000> : vector<8xf32>
      %62 = vector.multi_reduction <maximumf>, %59, %cst_31 [1] : vector<8x8xf32> to vector<8xf32>
      %63 = vector.shape_cast %62 : vector<8xf32> to vector<8x1xf32>
      %64 = arith.maximumf %61, %63 : vector<8x1xf32>
      %65 = arith.subf %61, %64 : vector<8x1xf32>
      %66 = math.exp %65 : vector<8x1xf32>
      %67 = vector.broadcast %64 : vector<8x1xf32> to vector<8x8xf32>
      %68 = arith.subf %59, %67 : vector<8x8xf32>
      %69 = math.exp %68 : vector<8x8xf32>
      %c0_32 = arith.constant 0 : index
      %c0_33 = arith.constant 0 : index
      %c0_34 = arith.constant 0 : index
      %70 = vector.load %arg13[%c0_32, %c0_33, %c0_34] : memref<4x8x1xf32, #tpu.memory_space<vmem>>, vector<1x8x1xf32>
      %71 = vector.shape_cast %70 : vector<1x8x1xf32> to vector<8x1xf32>
      %72 = arith.mulf %66, %71 : vector<8x1xf32>
      %cst_35 = arith.constant dense<0.000000e+00> : vector<8xf32>
      %73 = vector.multi_reduction <add>, %69, %cst_35 [1] : vector<8x8xf32> to vector<8xf32>
      %74 = vector.shape_cast %73 : vector<8xf32> to vector<8x1xf32>
      %75 = arith.addf %72, %74 : vector<8x1xf32>
      %c0_36 = arith.constant 0 : index
      %c0_37 = arith.constant 0 : index
      %c0_38 = arith.constant 0 : index
      %76 = vector.load %arg13[%c0_36, %c0_37, %c0_38] : memref<4x8x1xf32, #tpu.memory_space<vmem>>, vector<1x8x1xf32>
      %77 = vector.shape_cast %76 : vector<1x8x1xf32> to vector<8x1xf32>
      %78 = vector.shape_cast %75 : vector<8x1xf32> to vector<1x8x1xf32>
      tpu.vector_store %arg13[%c0_36, %c0_37, %c0_38], %78 {strides = array<i32>} : memref<4x8x1xf32, #tpu.memory_space<vmem>>, vector<1x8x1xf32>,
      %c0_39 = arith.constant 0 : index
      %c0_40 = arith.constant 0 : index
      %79 = vector.load %arg14[%c0_39, %c0_40] : memref<8x128xf32, #tpu.memory_space<vmem>>, vector<8x32xf32>
      %80 = vector.broadcast %66 : vector<8x1xf32> to vector<8x32xf32>
      %81 = arith.mulf %80, %79 : vector<8x32xf32>
      %82 = arith.truncf %69 : vector<8x8xf32> to vector<8x8xbf16>
      %c0_41 = arith.constant 0 : index
      %c0_42 = arith.constant 0 : index
      %c0_43 = arith.constant 0 : index
      %83 = vector.load %arg6[%c0_41, %c0_42, %c0_43] : memref<1x8x128xbf16, #tpu.memory_space<vmem>>, vector<1x8x128xbf16>
      %84 = vector.shape_cast %83 : vector<1x8x128xbf16> to vector<8x128xbf16>
      %85 = vector.extract_strided_slice %84 {offsets = [0, 0], sizes = [8, 32], strides = [1, 1]} : vector<8x128xbf16> to vector<8x32xbf16>
      %cst_44 = arith.constant dense<0.000000e+00> : vector<8x32xf32>
      %86 = tpu.matmul %82, %85, %cst_44 {dimension_numbers = #tpu.dot_dimension_numbers<[1], [0], [0], [1], [0, 0, 1, 1], [], []>} : vector<8x8xbf16>, vector<8x32xbf16>, vector<8x32xf32> -> vector<8x32xf32>
      %87 = arith.addf %81, %86 : vector<8x32xf32>
      %c0_45 = arith.constant 0 : index
      %c0_46 = arith.constant 0 : index
      %88 = vector.load %arg14[%c0_45, %c0_46] : memref<8x128xf32, #tpu.memory_space<vmem>>, vector<8x32xf32>
      tpu.vector_store %arg14[%c0_45, %c0_46], %87 {strides = array<i32>} : memref<8x128xf32, #tpu.memory_space<vmem>>, vector<8x32xf32>,
      %c0_47 = arith.constant 0 : index
      %c0_48 = arith.constant 0 : index
      %c0_49 = arith.constant 0 : index
      %89 = vector.load %arg12[%c0_47, %c0_48, %c0_49] : memref<4x8x1xf32, #tpu.memory_space<vmem>>, vector<1x8x1xf32>
      %90 = vector.shape_cast %89 : vector<1x8x1xf32> to vector<8x1xf32>
      %91 = vector.shape_cast %64 : vector<8x1xf32> to vector<1x8x1xf32>
      tpu.vector_store %arg12[%c0_47, %c0_48, %c0_49], %91 {strides = array<i32>} : memref<4x8x1xf32, #tpu.memory_space<vmem>>, vector<1x8x1xf32>,
      %c0_50 = arith.constant 0 : index
      %c0_51 = arith.constant 0 : index
      %c0_52 = arith.constant 0 : index
      %92 = vector.load %arg4[%c0_50, %c0_51, %c0_52] : memref<1x8x128xbf16, #tpu.memory_space<vmem>>, vector<1x8x128xbf16>
      %93 = vector.shape_cast %92 : vector<1x8x128xbf16> to vector<8x128xbf16>
      %94 = vector.extract_strided_slice %93 {offsets = [0, 32], sizes = [8, 32], strides = [1, 1]} : vector<8x128xbf16> to vector<8x32xbf16>
      %95 = arith.extf %94 : vector<8x32xbf16> to vector<8x32xf32>
      %cst_53 = arith.constant 0.176776692 : f32
      %96 = vector.broadcast %cst_53 : f32 to vector<8x32xf32>
      %97 = arith.mulf %95, %96 : vector<8x32xf32>
      %c0_54 = arith.constant 0 : index
      %c0_55 = arith.constant 0 : index
      %c0_56 = arith.constant 0 : index
      %98 = vector.load %arg5[%c0_54, %c0_55, %c0_56] : memref<1x8x128xbf16, #tpu.memory_space<vmem>>, vector<1x8x128xbf16>
      %99 = vector.shape_cast %98 : vector<1x8x128xbf16> to vector<8x128xbf16>
      %100 = vector.extract_strided_slice %99 {offsets = [0, 32], sizes = [8, 32], strides = [1, 1]} : vector<8x128xbf16> to vector<8x32xbf16>
      %101 = arith.extf %100 : vector<8x32xbf16> to vector<8x32xf32>
      %102 = vector.extract_strided_slice %97 {offsets = [0, 16], sizes = [8, 16], strides = [1, 1]} : vector<8x32xf32> to vector<8x16xf32>
      %cst_57 = arith.constant 0.000000e+00 : f32
      %103 = vector.broadcast %cst_57 : f32 to vector<8x16xf32>
      %104 = arith.subf %103, %102 : vector<8x16xf32>
      %105 = vector.extract_strided_slice %97 {offsets = [0, 0], sizes = [8, 16], strides = [1, 1]} : vector<8x32xf32> to vector<8x16xf32>
      %106 = tpu.concatenate %104, %105 in 1 : vector<8x16xf32>, vector<8x16xf32> -> vector<8x32xf32>
      %107 = arith.mulf %97, %13 : vector<8x32xf32>
      %108 = arith.mulf %106, %15 : vector<8x32xf32>
      %109 = arith.addf %107, %108 : vector<8x32xf32>
      %110 = arith.truncf %109 : vector<8x32xf32> to vector<8x32xbf16>
      %111 = vector.extract_strided_slice %101 {offsets = [0, 16], sizes = [8, 16], strides = [1, 1]} : vector<8x32xf32> to vector<8x16xf32>
      %cst_58 = arith.constant 0.000000e+00 : f32
      %112 = vector.broadcast %cst_58 : f32 to vector<8x16xf32>
      %113 = arith.subf %112, %111 : vector<8x16xf32>
      %114 = vector.extract_strided_slice %101 {offsets = [0, 0], sizes = [8, 16], strides = [1, 1]} : vector<8x32xf32> to vector<8x16xf32>
      %115 = tpu.concatenate %113, %114 in 1 : vector<8x16xf32>, vector<8x16xf32> -> vector<8x32xf32>
      %116 = arith.mulf %101, %17 : vector<8x32xf32>
      %117 = arith.mulf %115, %19 : vector<8x32xf32>
      %118 = arith.addf %116, %117 : vector<8x32xf32>
      %119 = arith.truncf %118 : vector<8x32xf32> to vector<8x32xbf16>
      %cst_59 = arith.constant dense<0.000000e+00> : vector<8x8xf32>
      %120 = tpu.matmul %110, %119, %cst_59 {dimension_numbers = #tpu.dot_dimension_numbers<[1], [1], [0], [0], [0, 0, 1, 0], [], []>} : vector<8x32xbf16>, vector<8x32xbf16>, vector<8x8xf32> -> vector<8x8xf32>
      %cst_60 = arith.constant -1.000000e+30 : f32
      %121 = vector.broadcast %cst_60 : f32 to vector<8x8xf32>
      %122 = arith.select %28, %120, %121 : vector<8x8xi1>, vector<8x8xf32>
      %c1 = arith.constant 1 : index
      %c0_61 = arith.constant 0 : index
      %c0_62 = arith.constant 0 : index
      %123 = vector.load %arg12[%c1, %c0_61, %c0_62] : memref<4x8x1xf32, #tpu.memory_space<vmem>>, vector<1x8x1xf32>
      %124 = vector.shape_cast %123 : vector<1x8x1xf32> to vector<8x1xf32>
      %cst_63 = arith.constant dense<0xFF800000> : vector<8xf32>
      %125 = vector.multi_reduction <maximumf>, %122, %cst_63 [1] : vector<8x8xf32> to vector<8xf32>
      %126 = vector.shape_cast %125 : vector<8xf32> to vector<8x1xf32>
      %127 = arith.maximumf %124, %126 : vector<8x1xf32>
      %128 = arith.subf %124, %127 : vector<8x1xf32>
      %129 = math.exp %128 : vector<8x1xf32>
      %130 = vector.broadcast %127 : vector<8x1xf32> to vector<8x8xf32>
      %131 = arith.subf %122, %130 : vector<8x8xf32>
      %132 = math.exp %131 : vector<8x8xf32>
      %c1_64 = arith.constant 1 : index
      %c0_65 = arith.constant 0 : index
      %c0_66 = arith.constant 0 : index
      %133 = vector.load %arg13[%c1_64, %c0_65, %c0_66] : memref<4x8x1xf32, #tpu.memory_space<vmem>>, vector<1x8x1xf32>
      %134 = vector.shape_cast %133 : vector<1x8x1xf32> to vector<8x1xf32>
      %135 = arith.mulf %129, %134 : vector<8x1xf32>
      %cst_67 = arith.constant dense<0.000000e+00> : vector<8xf32>
      %136 = vector.multi_reduction <add>, %132, %cst_67 [1] : vector<8x8xf32> to vector<8xf32>
      %137 = vector.shape_cast %136 : vector<8xf32> to vector<8x1xf32>
      %138 = arith.addf %135, %137 : vector<8x1xf32>
      %c1_68 = arith.constant 1 : index
      %c0_69 = arith.constant 0 : index
      %c0_70 = arith.constant 0 : index
      %139 = vector.load %arg13[%c1_68, %c0_69, %c0_70] : memref<4x8x1xf32, #tpu.memory_space<vmem>>, vector<1x8x1xf32>
      %140 = vector.shape_cast %139 : vector<1x8x1xf32> to vector<8x1xf32>
      %141 = vector.shape_cast %138 : vector<8x1xf32> to vector<1x8x1xf32>
      tpu.vector_store %arg13[%c1_68, %c0_69, %c0_70], %141 {strides = array<i32>} : memref<4x8x1xf32, #tpu.memory_space<vmem>>, vector<1x8x1xf32>,
      %c0_71 = arith.constant 0 : index
      %c32 = arith.constant 32 : index
      %142 = vector.load %arg14[%c0_71, %c32] : memref<8x128xf32, #tpu.memory_space<vmem>>, vector<8x32xf32>
      %143 = vector.broadcast %129 : vector<8x1xf32> to vector<8x32xf32>
      %144 = arith.mulf %143, %142 : vector<8x32xf32>
      %145 = arith.truncf %132 : vector<8x8xf32> to vector<8x8xbf16>
      %c0_72 = arith.constant 0 : index
      %c0_73 = arith.constant 0 : index
      %c0_74 = arith.constant 0 : index
      %146 = vector.load %arg6[%c0_72, %c0_73, %c0_74] : memref<1x8x128xbf16, #tpu.memory_space<vmem>>, vector<1x8x128xbf16>
      %147 = vector.shape_cast %146 : vector<1x8x128xbf16> to vector<8x128xbf16>
      %148 = vector.extract_strided_slice %147 {offsets = [0, 32], sizes = [8, 32], strides = [1, 1]} : vector<8x128xbf16> to vector<8x32xbf16>
      %cst_75 = arith.constant dense<0.000000e+00> : vector<8x32xf32>
      %149 = tpu.matmul %145, %148, %cst_75 {dimension_numbers = #tpu.dot_dimension_numbers<[1], [0], [0], [1], [0, 0, 1, 1], [], []>} : vector<8x8xbf16>, vector<8x32xbf16>, vector<8x32xf32> -> vector<8x32xf32>
      %150 = arith.addf %144, %149 : vector<8x32xf32>
      %c0_76 = arith.constant 0 : index
      %c32_77 = arith.constant 32 : index
      %151 = vector.load %arg14[%c0_76, %c32_77] : memref<8x128xf32, #tpu.memory_space<vmem>>, vector<8x32xf32>
      tpu.vector_store %arg14[%c0_76, %c32_77], %150 {strides = array<i32>} : memref<8x128xf32, #tpu.memory_space<vmem>>, vector<8x32xf32>,
      %c1_78 = arith.constant 1 : index
      %c0_79 = arith.constant 0 : index
      %c0_80 = arith.constant 0 : index
      %152 = vector.load %arg12[%c1_78, %c0_79, %c0_80] : memref<4x8x1xf32, #tpu.memory_space<vmem>>, vector<1x8x1xf32>
      %153 = vector.shape_cast %152 : vector<1x8x1xf32> to vector<8x1xf32>
      %154 = vector.shape_cast %127 : vector<8x1xf32> to vector<1x8x1xf32>
      tpu.vector_store %arg12[%c1_78, %c0_79, %c0_80], %154 {strides = array<i32>} : memref<4x8x1xf32, #tpu.memory_space<vmem>>, vector<1x8x1xf32>,
      %c0_81 = arith.constant 0 : index
      %c0_82 = arith.constant 0 : index
      %c0_83 = arith.constant 0 : index
      %155 = vector.load %arg4[%c0_81, %c0_82, %c0_83] : memref<1x8x128xbf16, #tpu.memory_space<vmem>>, vector<1x8x128xbf16>
      %156 = vector.shape_cast %155 : vector<1x8x128xbf16> to vector<8x128xbf16>
      %157 = vector.extract_strided_slice %156 {offsets = [0, 64], sizes = [8, 32], strides = [1, 1]} : vector<8x128xbf16> to vector<8x32xbf16>
      %158 = arith.extf %157 : vector<8x32xbf16> to vector<8x32xf32>
      %cst_84 = arith.constant 0.176776692 : f32
      %159 = vector.broadcast %cst_84 : f32 to vector<8x32xf32>
      %160 = arith.mulf %158, %159 : vector<8x32xf32>
      %c0_85 = arith.constant 0 : index
      %c0_86 = arith.constant 0 : index
      %c0_87 = arith.constant 0 : index
      %161 = vector.load %arg5[%c0_85, %c0_86, %c0_87] : memref<1x8x128xbf16, #tpu.memory_space<vmem>>, vector<1x8x128xbf16>
      %162 = vector.shape_cast %161 : vector<1x8x128xbf16> to vector<8x128xbf16>
      %163 = vector.extract_strided_slice %162 {offsets = [0, 64], sizes = [8, 32], strides = [1, 1]} : vector<8x128xbf16> to vector<8x32xbf16>
      %164 = arith.extf %163 : vector<8x32xbf16> to vector<8x32xf32>
      %165 = vector.extract_strided_slice %160 {offsets = [0, 16], sizes = [8, 16], strides = [1, 1]} : vector<8x32xf32> to vector<8x16xf32>
      %cst_88 = arith.constant 0.000000e+00 : f32
      %166 = vector.broadcast %cst_88 : f32 to vector<8x16xf32>
      %167 = arith.subf %166, %165 : vector<8x16xf32>
      %168 = vector.extract_strided_slice %160 {offsets = [0, 0], sizes = [8, 16], strides = [1, 1]} : vector<8x32xf32> to vector<8x16xf32>
      %169 = tpu.concatenate %167, %168 in 1 : vector<8x16xf32>, vector<8x16xf32> -> vector<8x32xf32>
      %170 = arith.mulf %160, %13 : vector<8x32xf32>
      %171 = arith.mulf %169, %15 : vector<8x32xf32>
      %172 = arith.addf %170, %171 : vector<8x32xf32>
      %173 = arith.truncf %172 : vector<8x32xf32> to vector<8x32xbf16>
      %174 = vector.extract_strided_slice %164 {offsets = [0, 16], sizes = [8, 16], strides = [1, 1]} : vector<8x32xf32> to vector<8x16xf32>
      %cst_89 = arith.constant 0.000000e+00 : f32
      %175 = vector.broadcast %cst_89 : f32 to vector<8x16xf32>
      %176 = arith.subf %175, %174 : vector<8x16xf32>
      %177 = vector.extract_strided_slice %164 {offsets = [0, 0], sizes = [8, 16], strides = [1, 1]} : vector<8x32xf32> to vector<8x16xf32>
      %178 = tpu.concatenate %176, %177 in 1 : vector<8x16xf32>, vector<8x16xf32> -> vector<8x32xf32>
      %179 = arith.mulf %164, %17 : vector<8x32xf32>
      %180 = arith.mulf %178, %19 : vector<8x32xf32>
      %181 = arith.addf %179, %180 : vector<8x32xf32>
      %182 = arith.truncf %181 : vector<8x32xf32> to vector<8x32xbf16>
      %cst_90 = arith.constant dense<0.000000e+00> : vector<8x8xf32>
      %183 = tpu.matmul %173, %182, %cst_90 {dimension_numbers = #tpu.dot_dimension_numbers<[1], [1], [0], [0], [0, 0, 1, 0], [], []>} : vector<8x32xbf16>, vector<8x32xbf16>, vector<8x8xf32> -> vector<8x8xf32>
      %cst_91 = arith.constant -1.000000e+30 : f32
      %184 = vector.broadcast %cst_91 : f32 to vector<8x8xf32>
      %185 = arith.select %28, %183, %184 : vector<8x8xi1>, vector<8x8xf32>
      %c2 = arith.constant 2 : index
      %c0_92 = arith.constant 0 : index
      %c0_93 = arith.constant 0 : index
      %186 = vector.load %arg12[%c2, %c0_92, %c0_93] : memref<4x8x1xf32, #tpu.memory_space<vmem>>, vector<1x8x1xf32>
      %187 = vector.shape_cast %186 : vector<1x8x1xf32> to vector<8x1xf32>
      %cst_94 = arith.constant dense<0xFF800000> : vector<8xf32>
      %188 = vector.multi_reduction <maximumf>, %185, %cst_94 [1] : vector<8x8xf32> to vector<8xf32>
      %189 = vector.shape_cast %188 : vector<8xf32> to vector<8x1xf32>
      %190 = arith.maximumf %187, %189 : vector<8x1xf32>
      %191 = arith.subf %187, %190 : vector<8x1xf32>
      %192 = math.exp %191 : vector<8x1xf32>
      %193 = vector.broadcast %190 : vector<8x1xf32> to vector<8x8xf32>
      %194 = arith.subf %185, %193 : vector<8x8xf32>
      %195 = math.exp %194 : vector<8x8xf32>
      %c2_95 = arith.constant 2 : index
      %c0_96 = arith.constant 0 : index
      %c0_97 = arith.constant 0 : index
      %196 = vector.load %arg13[%c2_95, %c0_96, %c0_97] : memref<4x8x1xf32, #tpu.memory_space<vmem>>, vector<1x8x1xf32>
      %197 = vector.shape_cast %196 : vector<1x8x1xf32> to vector<8x1xf32>
      %198 = arith.mulf %192, %197 : vector<8x1xf32>
      %cst_98 = arith.constant dense<0.000000e+00> : vector<8xf32>
      %199 = vector.multi_reduction <add>, %195, %cst_98 [1] : vector<8x8xf32> to vector<8xf32>
      %200 = vector.shape_cast %199 : vector<8xf32> to vector<8x1xf32>
      %201 = arith.addf %198, %200 : vector<8x1xf32>
      %c2_99 = arith.constant 2 : index
      %c0_100 = arith.constant 0 : index
      %c0_101 = arith.constant 0 : index
      %202 = vector.load %arg13[%c2_99, %c0_100, %c0_101] : memref<4x8x1xf32, #tpu.memory_space<vmem>>, vector<1x8x1xf32>
      %203 = vector.shape_cast %202 : vector<1x8x1xf32> to vector<8x1xf32>
      %204 = vector.shape_cast %201 : vector<8x1xf32> to vector<1x8x1xf32>
      tpu.vector_store %arg13[%c2_99, %c0_100, %c0_101], %204 {strides = array<i32>} : memref<4x8x1xf32, #tpu.memory_space<vmem>>, vector<1x8x1xf32>,
      %c0_102 = arith.constant 0 : index
      %c64 = arith.constant 64 : index
      %205 = vector.load %arg14[%c0_102, %c64] : memref<8x128xf32, #tpu.memory_space<vmem>>, vector<8x32xf32>
      %206 = vector.broadcast %192 : vector<8x1xf32> to vector<8x32xf32>
      %207 = arith.mulf %206, %205 : vector<8x32xf32>
      %208 = arith.truncf %195 : vector<8x8xf32> to vector<8x8xbf16>
      %c0_103 = arith.constant 0 : index
      %c0_104 = arith.constant 0 : index
      %c0_105 = arith.constant 0 : index
      %209 = vector.load %arg6[%c0_103, %c0_104, %c0_105] : memref<1x8x128xbf16, #tpu.memory_space<vmem>>, vector<1x8x128xbf16>
      %210 = vector.shape_cast %209 : vector<1x8x128xbf16> to vector<8x128xbf16>
      %211 = vector.extract_strided_slice %210 {offsets = [0, 64], sizes = [8, 32], strides = [1, 1]} : vector<8x128xbf16> to vector<8x32xbf16>
      %cst_106 = arith.constant dense<0.000000e+00> : vector<8x32xf32>
      %212 = tpu.matmul %208, %211, %cst_106 {dimension_numbers = #tpu.dot_dimension_numbers<[1], [0], [0], [1], [0, 0, 1, 1], [], []>} : vector<8x8xbf16>, vector<8x32xbf16>, vector<8x32xf32> -> vector<8x32xf32>
      %213 = arith.addf %207, %212 : vector<8x32xf32>
      %c0_107 = arith.constant 0 : index
      %c64_108 = arith.constant 64 : index
      %214 = vector.load %arg14[%c0_107, %c64_108] : memref<8x128xf32, #tpu.memory_space<vmem>>, vector<8x32xf32>
      tpu.vector_store %arg14[%c0_107, %c64_108], %213 {strides = array<i32>} : memref<8x128xf32, #tpu.memory_space<vmem>>, vector<8x32xf32>,
      %c2_109 = arith.constant 2 : index
      %c0_110 = arith.constant 0 : index
      %c0_111 = arith.constant 0 : index
      %215 = vector.load %arg12[%c2_109, %c0_110, %c0_111] : memref<4x8x1xf32, #tpu.memory_space<vmem>>, vector<1x8x1xf32>
      %216 = vector.shape_cast %215 : vector<1x8x1xf32> to vector<8x1xf32>
      %217 = vector.shape_cast %190 : vector<8x1xf32> to vector<1x8x1xf32>
      tpu.vector_store %arg12[%c2_109, %c0_110, %c0_111], %217 {strides = array<i32>} : memref<4x8x1xf32, #tpu.memory_space<vmem>>, vector<1x8x1xf32>,
      %c0_112 = arith.constant 0 : index
      %c0_113 = arith.constant 0 : index
      %c0_114 = arith.constant 0 : index
      %218 = vector.load %arg4[%c0_112, %c0_113, %c0_114] : memref<1x8x128xbf16, #tpu.memory_space<vmem>>, vector<1x8x128xbf16>
      %219 = vector.shape_cast %218 : vector<1x8x128xbf16> to vector<8x128xbf16>
      %220 = vector.extract_strided_slice %219 {offsets = [0, 96], sizes = [8, 32], strides = [1, 1]} : vector<8x128xbf16> to vector<8x32xbf16>
      %221 = arith.extf %220 : vector<8x32xbf16> to vector<8x32xf32>
      %cst_115 = arith.constant 0.176776692 : f32
      %222 = vector.broadcast %cst_115 : f32 to vector<8x32xf32>
      %223 = arith.mulf %221, %222 : vector<8x32xf32>
      %c0_116 = arith.constant 0 : index
      %c0_117 = arith.constant 0 : index
      %c0_118 = arith.constant 0 : index
      %224 = vector.load %arg5[%c0_116, %c0_117, %c0_118] : memref<1x8x128xbf16, #tpu.memory_space<vmem>>, vector<1x8x128xbf16>
      %225 = vector.shape_cast %224 : vector<1x8x128xbf16> to vector<8x128xbf16>
      %226 = vector.extract_strided_slice %225 {offsets = [0, 96], sizes = [8, 32], strides = [1, 1]} : vector<8x128xbf16> to vector<8x32xbf16>
      %227 = arith.extf %226 : vector<8x32xbf16> to vector<8x32xf32>
      %228 = vector.extract_strided_slice %223 {offsets = [0, 16], sizes = [8, 16], strides = [1, 1]} : vector<8x32xf32> to vector<8x16xf32>
      %cst_119 = arith.constant 0.000000e+00 : f32
      %229 = vector.broadcast %cst_119 : f32 to vector<8x16xf32>
      %230 = arith.subf %229, %228 : vector<8x16xf32>
      %231 = vector.extract_strided_slice %223 {offsets = [0, 0], sizes = [8, 16], strides = [1, 1]} : vector<8x32xf32> to vector<8x16xf32>
      %232 = tpu.concatenate %230, %231 in 1 : vector<8x16xf32>, vector<8x16xf32> -> vector<8x32xf32>
      %233 = arith.mulf %223, %13 : vector<8x32xf32>
      %234 = arith.mulf %232, %15 : vector<8x32xf32>
      %235 = arith.addf %233, %234 : vector<8x32xf32>
      %236 = arith.truncf %235 : vector<8x32xf32> to vector<8x32xbf16>
      %237 = vector.extract_strided_slice %227 {offsets = [0, 16], sizes = [8, 16], strides = [1, 1]} : vector<8x32xf32> to vector<8x16xf32>
      %cst_120 = arith.constant 0.000000e+00 : f32
      %238 = vector.broadcast %cst_120 : f32 to vector<8x16xf32>
      %239 = arith.subf %238, %237 : vector<8x16xf32>
      %240 = vector.extract_strided_slice %227 {offsets = [0, 0], sizes = [8, 16], strides = [1, 1]} : vector<8x32xf32> to vector<8x16xf32>
      %241 = tpu.concatenate %239, %240 in 1 : vector<8x16xf32>, vector<8x16xf32> -> vector<8x32xf32>
      %242 = arith.mulf %227, %17 : vector<8x32xf32>
      %243 = arith.mulf %241, %19 : vector<8x32xf32>
      %244 = arith.addf %242, %243 : vector<8x32xf32>
      %245 = arith.truncf %244 : vector<8x32xf32> to vector<8x32xbf16>
      %cst_121 = arith.constant dense<0.000000e+00> : vector<8x8xf32>
      %246 = tpu.matmul %236, %245, %cst_121 {dimension_numbers = #tpu.dot_dimension_numbers<[1], [1], [0], [0], [0, 0, 1, 0], [], []>} : vector<8x32xbf16>, vector<8x32xbf16>, vector<8x8xf32> -> vector<8x8xf32>
      %cst_122 = arith.constant -1.000000e+30 : f32
      %247 = vector.broadcast %cst_122 : f32 to vector<8x8xf32>
      %248 = arith.select %28, %246, %247 : vector<8x8xi1>, vector<8x8xf32>
      %c3 = arith.constant 3 : index
      %c0_123 = arith.constant 0 : index
      %c0_124 = arith.constant 0 : index
      %249 = vector.load %arg12[%c3, %c0_123, %c0_124] : memref<4x8x1xf32, #tpu.memory_space<vmem>>, vector<1x8x1xf32>
      %250 = vector.shape_cast %249 : vector<1x8x1xf32> to vector<8x1xf32>
      %cst_125 = arith.constant dense<0xFF800000> : vector<8xf32>
      %251 = vector.multi_reduction <maximumf>, %248, %cst_125 [1] : vector<8x8xf32> to vector<8xf32>
      %252 = vector.shape_cast %251 : vector<8xf32> to vector<8x1xf32>
      %253 = arith.maximumf %250, %252 : vector<8x1xf32>
      %254 = arith.subf %250, %253 : vector<8x1xf32>
      %255 = math.exp %254 : vector<8x1xf32>
      %256 = vector.broadcast %253 : vector<8x1xf32> to vector<8x8xf32>
      %257 = arith.subf %248, %256 : vector<8x8xf32>
      %258 = math.exp %257 : vector<8x8xf32>
      %c3_126 = arith.constant 3 : index
      %c0_127 = arith.constant 0 : index
      %c0_128 = arith.constant 0 : index
      %259 = vector.load %arg13[%c3_126, %c0_127, %c0_128] : memref<4x8x1xf32, #tpu.memory_space<vmem>>, vector<1x8x1xf32>
      %260 = vector.shape_cast %259 : vector<1x8x1xf32> to vector<8x1xf32>
      %261 = arith.mulf %255, %260 : vector<8x1xf32>
      %cst_129 = arith.constant dense<0.000000e+00> : vector<8xf32>
      %262 = vector.multi_reduction <add>, %258, %cst_129 [1] : vector<8x8xf32> to vector<8xf32>
      %263 = vector.shape_cast %262 : vector<8xf32> to vector<8x1xf32>
      %264 = arith.addf %261, %263 : vector<8x1xf32>
      %c3_130 = arith.constant 3 : index
      %c0_131 = arith.constant 0 : index
      %c0_132 = arith.constant 0 : index
      %265 = vector.load %arg13[%c3_130, %c0_131, %c0_132] : memref<4x8x1xf32, #tpu.memory_space<vmem>>, vector<1x8x1xf32>
      %266 = vector.shape_cast %265 : vector<1x8x1xf32> to vector<8x1xf32>
      %267 = vector.shape_cast %264 : vector<8x1xf32> to vector<1x8x1xf32>
      tpu.vector_store %arg13[%c3_130, %c0_131, %c0_132], %267 {strides = array<i32>} : memref<4x8x1xf32, #tpu.memory_space<vmem>>, vector<1x8x1xf32>,
      %c0_133 = arith.constant 0 : index
      %c96 = arith.constant 96 : index
      %268 = vector.load %arg14[%c0_133, %c96] : memref<8x128xf32, #tpu.memory_space<vmem>>, vector<8x32xf32>
      %269 = vector.broadcast %255 : vector<8x1xf32> to vector<8x32xf32>
      %270 = arith.mulf %269, %268 : vector<8x32xf32>
      %271 = arith.truncf %258 : vector<8x8xf32> to vector<8x8xbf16>
      %c0_134 = arith.constant 0 : index
      %c0_135 = arith.constant 0 : index
      %c0_136 = arith.constant 0 : index
      %272 = vector.load %arg6[%c0_134, %c0_135, %c0_136] : memref<1x8x128xbf16, #tpu.memory_space<vmem>>, vector<1x8x128xbf16>
      %273 = vector.shape_cast %272 : vector<1x8x128xbf16> to vector<8x128xbf16>
      %274 = vector.extract_strided_slice %273 {offsets = [0, 96], sizes = [8, 32], strides = [1, 1]} : vector<8x128xbf16> to vector<8x32xbf16>
      %cst_137 = arith.constant dense<0.000000e+00> : vector<8x32xf32>
      %275 = tpu.matmul %271, %274, %cst_137 {dimension_numbers = #tpu.dot_dimension_numbers<[1], [0], [0], [1], [0, 0, 1, 1], [], []>} : vector<8x8xbf16>, vector<8x32xbf16>, vector<8x32xf32> -> vector<8x32xf32>
      %276 = arith.addf %270, %275 : vector<8x32xf32>
      %c0_138 = arith.constant 0 : index
      %c96_139 = arith.constant 96 : index
      %277 = vector.load %arg14[%c0_138, %c96_139] : memref<8x128xf32, #tpu.memory_space<vmem>>, vector<8x32xf32>
      tpu.vector_store %arg14[%c0_138, %c96_139], %276 {strides = array<i32>} : memref<8x128xf32, #tpu.memory_space<vmem>>, vector<8x32xf32>,
      %c3_140 = arith.constant 3 : index
      %c0_141 = arith.constant 0 : index
      %c0_142 = arith.constant 0 : index
      %278 = vector.load %arg12[%c3_140, %c0_141, %c0_142] : memref<4x8x1xf32, #tpu.memory_space<vmem>>, vector<1x8x1xf32>
      %279 = vector.shape_cast %278 : vector<1x8x1xf32> to vector<8x1xf32>
      %280 = vector.shape_cast %253 : vector<8x1xf32> to vector<1x8x1xf32>
      tpu.vector_store %arg12[%c3_140, %c0_141, %c0_142], %280 {strides = array<i32>} : memref<4x8x1xf32, #tpu.memory_space<vmem>>, vector<1x8x1xf32>,
    } else {
    }
    %c0_i32_3 = arith.constant 0 : i32
    %9 = arith.cmpi eq, %arg3, %c0_i32_3 : i32
    %10 = arith.extui %9 : i1 to i32
    %c0_i32_4 = arith.constant 0 : i32
    %11 = arith.cmpi ne, %10, %c0_i32_4 : i32
    scf.if %11 {
      %c0 = arith.constant 0 : index
      %c0_5 = arith.constant 0 : index
      %c0_6 = arith.constant 0 : index
      %12 = vector.load %arg13[%c0, %c0_5, %c0_6] : memref<4x8x1xf32, #tpu.memory_space<vmem>>, vector<1x8x1xf32>
      %13 = vector.shape_cast %12 : vector<1x8x1xf32> to vector<8x1xf32>
      %14 = tpu.reciprocal %13 {approx = true} : vector<8x1xf32> -> vector<8x1xf32>
      %c0_7 = arith.constant 0 : index
      %c0_8 = arith.constant 0 : index
      %15 = vector.load %arg14[%c0_7, %c0_8] : memref<8x128xf32, #tpu.memory_space<vmem>>, vector<8x32xf32>
      %16 = vector.broadcast %14 : vector<8x1xf32> to vector<8x32xf32>
      %17 = arith.mulf %15, %16 : vector<8x32xf32>
      %c0_9 = arith.constant 0 : index
      %c0_10 = arith.constant 0 : index
      %18 = vector.load %arg14[%c0_9, %c0_10] : memref<8x128xf32, #tpu.memory_space<vmem>>, vector<8x32xf32>
      tpu.vector_store %arg14[%c0_9, %c0_10], %17 {strides = array<i32>} : memref<8x128xf32, #tpu.memory_space<vmem>>, vector<8x32xf32>,
      %c1 = arith.constant 1 : index
      %c0_11 = arith.constant 0 : index
      %c0_12 = arith.constant 0 : index
      %19 = vector.load %arg13[%c1, %c0_11, %c0_12] : memref<4x8x1xf32, #tpu.memory_space<vmem>>, vector<1x8x1xf32>
      %20 = vector.shape_cast %19 : vector<1x8x1xf32> to vector<8x1xf32>
      %21 = tpu.reciprocal %20 {approx = true} : vector<8x1xf32> -> vector<8x1xf32>
      %c0_13 = arith.constant 0 : index
      %c32 = arith.constant 32 : index
      %22 = vector.load %arg14[%c0_13, %c32] : memref<8x128xf32, #tpu.memory_space<vmem>>, vector<8x32xf32>
      %23 = vector.broadcast %21 : vector<8x1xf32> to vector<8x32xf32>
      %24 = arith.mulf %22, %23 : vector<8x32xf32>
      %c0_14 = arith.constant 0 : index
      %c32_15 = arith.constant 32 : index
      %25 = vector.load %arg14[%c0_14, %c32_15] : memref<8x128xf32, #tpu.memory_space<vmem>>, vector<8x32xf32>
      tpu.vector_store %arg14[%c0_14, %c32_15], %24 {strides = array<i32>} : memref<8x128xf32, #tpu.memory_space<vmem>>, vector<8x32xf32>,
      %c2 = arith.constant 2 : index
      %c0_16 = arith.constant 0 : index
      %c0_17 = arith.constant 0 : index
      %26 = vector.load %arg13[%c2, %c0_16, %c0_17] : memref<4x8x1xf32, #tpu.memory_space<vmem>>, vector<1x8x1xf32>
      %27 = vector.shape_cast %26 : vector<1x8x1xf32> to vector<8x1xf32>
      %28 = tpu.reciprocal %27 {approx = true} : vector<8x1xf32> -> vector<8x1xf32>
      %c0_18 = arith.constant 0 : index
      %c64 = arith.constant 64 : index
      %29 = vector.load %arg14[%c0_18, %c64] : memref<8x128xf32, #tpu.memory_space<vmem>>, vector<8x32xf32>
      %30 = vector.broadcast %28 : vector<8x1xf32> to vector<8x32xf32>
      %31 = arith.mulf %29, %30 : vector<8x32xf32>
      %c0_19 = arith.constant 0 : index
      %c64_20 = arith.constant 64 : index
      %32 = vector.load %arg14[%c0_19, %c64_20] : memref<8x128xf32, #tpu.memory_space<vmem>>, vector<8x32xf32>
      tpu.vector_store %arg14[%c0_19, %c64_20], %31 {strides = array<i32>} : memref<8x128xf32, #tpu.memory_space<vmem>>, vector<8x32xf32>,
      %c3 = arith.constant 3 : index
      %c0_21 = arith.constant 0 : index
      %c0_22 = arith.constant 0 : index
      %33 = vector.load %arg13[%c3, %c0_21, %c0_22] : memref<4x8x1xf32, #tpu.memory_space<vmem>>, vector<1x8x1xf32>
      %34 = vector.shape_cast %33 : vector<1x8x1xf32> to vector<8x1xf32>
      %35 = tpu.reciprocal %34 {approx = true} : vector<8x1xf32> -> vector<8x1xf32>
      %c0_23 = arith.constant 0 : index
      %c96 = arith.constant 96 : index
      %36 = vector.load %arg14[%c0_23, %c96] : memref<8x128xf32, #tpu.memory_space<vmem>>, vector<8x32xf32>
      %37 = vector.broadcast %35 : vector<8x1xf32> to vector<8x32xf32>
      %38 = arith.mulf %36, %37 : vector<8x32xf32>
      %c0_24 = arith.constant 0 : index
      %c96_25 = arith.constant 96 : index
      %39 = vector.load %arg14[%c0_24, %c96_25] : memref<8x128xf32, #tpu.memory_space<vmem>>, vector<8x32xf32>
      tpu.vector_store %arg14[%c0_24, %c96_25], %38 {strides = array<i32>} : memref<8x128xf32, #tpu.memory_space<vmem>>, vector<8x32xf32>,
      %c0_26 = arith.constant 0 : index
      %c0_27 = arith.constant 0 : index
      %40 = vector.load %arg14[%c0_26, %c0_27] : memref<8x128xf32, #tpu.memory_space<vmem>>, vector<8x128xf32>
      %41 = arith.truncf %40 : vector<8x128xf32> to vector<8x128xbf16>
      %c0_28 = arith.constant 0 : index
      %c0_29 = arith.constant 0 : index
      %c0_30 = arith.constant 0 : index
      %42 = vector.load %arg11[%c0_28, %c0_29, %c0_30] : memref<1x8x128xbf16, #tpu.memory_space<vmem>>, vector<1x8x128xbf16>
      %43 = vector.shape_cast %42 : vector<1x8x128xbf16> to vector<8x128xbf16>
      %44 = vector.shape_cast %41 : vector<8x128xbf16> to vector<1x8x128xbf16>
      tpu.vector_store %arg11[%c0_28, %c0_29, %c0_30], %44 {strides = array<i32>} : memref<1x8x128xbf16, #tpu.memory_space<vmem>>, vector<1x8x128xbf16>,
    } else {
    }
    return
  }
  func.func @transform_0(%arg0: i32, %arg1: i32, %arg2: i32, %arg3: i32) -> (i32, i32, i32) {
    %c0_i32 = arith.constant 0 : i32
    return %arg0, %arg2, %arg1 : i32, i32, i32
  }
  func.func @transform_1(%arg0: i32, %arg1: i32, %arg2: i32, %arg3: i32) -> (i32, i32, i32) {
    %c1_i32 = arith.constant 1 : i32
    %0 = arith.addi %c1_i32, %arg1 : i32
    %c0_i32 = arith.constant 0 : i32
    return %arg0, %arg3, %0 : i32, i32, i32
  }
  func.func @transform_2(%arg0: i32, %arg1: i32, %arg2: i32, %arg3: i32) -> (i32, i32, i32) {
    %c2_i32 = arith.constant 2 : i32
    %0 = arith.addi %c2_i32, %arg1 : i32
    %c0_i32 = arith.constant 0 : i32
    return %arg0, %arg3, %0 : i32, i32, i32
  }
  func.func @transform_3(%arg0: i32, %arg1: i32, %arg2: i32, %arg3: i32) -> (i32, i32, i32) {
    %c0_i32 = arith.constant 0 : i32
    %c0_i32_0 = arith.constant 0 : i32
    return %arg0, %arg2, %c0_i32 : i32, i32, i32
  }
  func.func @transform_4(%arg0: i32, %arg1: i32, %arg2: i32, %arg3: i32) -> (i32, i32, i32) {
    %c0_i32 = arith.constant 0 : i32
    %c0_i32_0 = arith.constant 0 : i32
    return %arg0, %arg2, %c0_i32 : i32, i32, i32
  }
  func.func @transform_5(%arg0: i32, %arg1: i32, %arg2: i32, %arg3: i32) -> (i32, i32, i32) {
    %c0_i32 = arith.constant 0 : i32
    %c0_i32_0 = arith.constant 0 : i32
    return %arg0, %arg3, %c0_i32 : i32, i32, i32
  }
  func.func @transform_6(%arg0: i32, %arg1: i32, %arg2: i32, %arg3: i32) -> (i32, i32, i32) {
    %c0_i32 = arith.constant 0 : i32
    %c0_i32_0 = arith.constant 0 : i32
    return %arg0, %arg3, %c0_i32 : i32, i32, i32
  }
  func.func @transform_7(%arg0: i32, %arg1: i32, %arg2: i32, %arg3: i32) -> (i32, i32, i32) {
    %c0_i32 = arith.constant 0 : i32
    return %arg0, %arg2, %arg1 : i32, i32, i32
  }
}

module attributes {stable_mosaic.version = 11 : i64} {
  func.func @_mlp_kernel(%arg0: i32, %arg1: i32, %arg2: memref<16x128xf32, #tpu.memory_space<vmem>>, %arg3: memref<1x128xf32, #tpu.memory_space<vmem>>, %arg4: memref<128x768xbf16, #tpu.memory_space<vmem>>, %arg5: memref<384x128xbf16, #tpu.memory_space<vmem>>, %arg6: memref<16x128xf32, #tpu.memory_space<vmem>>, %arg7: memref<16x128xbf16, #tpu.memory_space<vmem>>, %arg8: memref<16x128xf32, #tpu.memory_space<vmem>>) attributes {dimension_semantics = [#tpu.dimension_semantics<parallel>, #tpu.dimension_semantics<arbitrary>], iteration_bounds = array<i64: 1, 1>, scalar_prefetch = 0 : i64, scratch_operands = 2 : i64, tpu.core_type = #tpu.core_type<tc>, window_params = [{transform_indices = @transform_0, window_bounds = array<i64: 16, 128>}, {pipeline_mode = #tpu.pipeline_mode<synchronous>, transform_indices = @transform_1, window_bounds = array<i64: 1, 128>}, {transform_indices = @transform_2, window_bounds = array<i64: 128, 768>}, {transform_indices = @transform_3, window_bounds = array<i64: 384, 128>}, {transform_indices = @transform_4, window_bounds = array<i64: 16, 128>}]} {
    %c0_i32 = arith.constant 0 : i32
    %0 = arith.cmpi eq, %arg1, %c0_i32 : i32
    %1 = arith.extui %0 : i1 to i32
    %c0_i32_0 = arith.constant 0 : i32
    %2 = arith.cmpi ne, %1, %c0_i32_0 : i32
    scf.if %2 {
      %cst_14 = arith.constant 0.000000e+00 : f32
      %24 = vector.broadcast %cst_14 : f32 to vector<16x128xf32>
      %c0_15 = arith.constant 0 : index
      %c0_16 = arith.constant 0 : index
      %25 = vector.load %arg8[%c0_15, %c0_16] : memref<16x128xf32, #tpu.memory_space<vmem>>, vector<16x128xf32>
      tpu.vector_store %arg8[%c0_15, %c0_16], %24 {strides = array<i32>} : memref<16x128xf32, #tpu.memory_space<vmem>>, vector<16x128xf32>,
      %c0_17 = arith.constant 0 : index
      %c0_18 = arith.constant 0 : index
      %26 = vector.load %arg2[%c0_17, %c0_18] : memref<16x128xf32, #tpu.memory_space<vmem>>, vector<16x128xf32>
      %27 = arith.mulf %26, %26 : vector<16x128xf32>
      %cst_19 = arith.constant dense<0.000000e+00> : vector<16xf32>
      %28 = vector.multi_reduction <add>, %27, %cst_19 [1] : vector<16x128xf32> to vector<16xf32>
      %29 = vector.shape_cast %28 : vector<16xf32> to vector<16x1xf32>
      %cst_20 = arith.constant 1.280000e+02 : f32
      %30 = vector.broadcast %cst_20 : f32 to vector<16x1xf32>
      %31 = arith.divf %29, %30 : vector<16x1xf32>
      %cst_21 = arith.constant 9.99999974E-6 : f32
      %32 = vector.broadcast %cst_21 : f32 to vector<16x1xf32>
      %33 = arith.addf %31, %32 : vector<16x1xf32>
      %34 = math.rsqrt %33 : vector<16x1xf32>
      %35 = vector.broadcast %34 : vector<16x1xf32> to vector<16x128xf32>
      %36 = arith.mulf %26, %35 : vector<16x128xf32>
      %c0_22 = arith.constant 0 : index
      %c0_23 = arith.constant 0 : index
      %37 = vector.load %arg3[%c0_22, %c0_23] : memref<1x128xf32, #tpu.memory_space<vmem>>, vector<1x128xf32>
      %38 = vector.broadcast %37 : vector<1x128xf32> to vector<16x128xf32>
      %39 = arith.mulf %36, %38 : vector<16x128xf32>
      %40 = arith.truncf %39 : vector<16x128xf32> to vector<16x128xbf16>
      %c0_24 = arith.constant 0 : index
      %c0_25 = arith.constant 0 : index
      %41 = vector.load %arg7[%c0_24, %c0_25] : memref<16x128xbf16, #tpu.memory_space<vmem>>, vector<16x128xbf16>
      tpu.vector_store %arg7[%c0_24, %c0_25], %40 {strides = array<i32>} : memref<16x128xbf16, #tpu.memory_space<vmem>>, vector<16x128xbf16>,
    } else {
    }
    %c0 = arith.constant 0 : index
    %c0_1 = arith.constant 0 : index
    %3 = vector.load %arg7[%c0, %c0_1] : memref<16x128xbf16, #tpu.memory_space<vmem>>, vector<16x128xbf16>
    %c0_2 = arith.constant 0 : index
    %c0_3 = arith.constant 0 : index
    %4 = vector.load %arg4[%c0_2, %c0_3] : memref<128x768xbf16, #tpu.memory_space<vmem>>, vector<128x768xbf16>
    %cst = arith.constant dense<0.000000e+00> : vector<16x768xf32>
    %5 = tpu.matmul %3, %4, %cst {dimension_numbers = #tpu.dot_dimension_numbers<[1], [0], [0], [1], [0, 0, 1, 1], [], []>} : vector<16x128xbf16>, vector<128x768xbf16>, vector<16x768xf32> -> vector<16x768xf32>
    %6 = vector.extract_strided_slice %5 {offsets = [0, 0], sizes = [16, 384], strides = [1, 1]} : vector<16x768xf32> to vector<16x384xf32>
    %7 = vector.extract_strided_slice %5 {offsets = [0, 384], sizes = [16, 384], strides = [1, 1]} : vector<16x768xf32> to vector<16x384xf32>
    %8 = arith.negf %6 : vector<16x384xf32>
    %9 = math.exp %8 : vector<16x384xf32>
    %cst_4 = arith.constant 1.000000e+00 : f32
    %10 = vector.broadcast %cst_4 : f32 to vector<16x384xf32>
    %11 = arith.addf %10, %9 : vector<16x384xf32>
    %12 = arith.divf %10, %11 : vector<16x384xf32>
    %13 = arith.mulf %6, %12 : vector<16x384xf32>
    %14 = arith.mulf %13, %7 : vector<16x384xf32>
    %c0_5 = arith.constant 0 : index
    %c0_6 = arith.constant 0 : index
    %15 = vector.load %arg8[%c0_5, %c0_6] : memref<16x128xf32, #tpu.memory_space<vmem>>, vector<16x128xf32>
    %16 = arith.truncf %14 : vector<16x384xf32> to vector<16x384xbf16>
    %c0_7 = arith.constant 0 : index
    %c0_8 = arith.constant 0 : index
    %17 = vector.load %arg5[%c0_7, %c0_8] : memref<384x128xbf16, #tpu.memory_space<vmem>>, vector<384x128xbf16>
    %cst_9 = arith.constant dense<0.000000e+00> : vector<16x128xf32>
    %18 = tpu.matmul %16, %17, %cst_9 {dimension_numbers = #tpu.dot_dimension_numbers<[1], [0], [0], [1], [0, 0, 1, 1], [], []>} : vector<16x384xbf16>, vector<384x128xbf16>, vector<16x128xf32> -> vector<16x128xf32>
    %19 = arith.addf %15, %18 : vector<16x128xf32>
    %c0_10 = arith.constant 0 : index
    %c0_11 = arith.constant 0 : index
    %20 = vector.load %arg8[%c0_10, %c0_11] : memref<16x128xf32, #tpu.memory_space<vmem>>, vector<16x128xf32>
    tpu.vector_store %arg8[%c0_10, %c0_11], %19 {strides = array<i32>} : memref<16x128xf32, #tpu.memory_space<vmem>>, vector<16x128xf32>,
    %c0_i32_12 = arith.constant 0 : i32
    %21 = arith.cmpi eq, %arg1, %c0_i32_12 : i32
    %22 = arith.extui %21 : i1 to i32
    %c0_i32_13 = arith.constant 0 : i32
    %23 = arith.cmpi ne, %22, %c0_i32_13 : i32
    scf.if %23 {
      %c0_14 = arith.constant 0 : index
      %c0_15 = arith.constant 0 : index
      %24 = vector.load %arg8[%c0_14, %c0_15] : memref<16x128xf32, #tpu.memory_space<vmem>>, vector<16x128xf32>
      %c0_16 = arith.constant 0 : index
      %c0_17 = arith.constant 0 : index
      %25 = vector.load %arg2[%c0_16, %c0_17] : memref<16x128xf32, #tpu.memory_space<vmem>>, vector<16x128xf32>
      %26 = arith.addf %24, %25 : vector<16x128xf32>
      %c0_18 = arith.constant 0 : index
      %c0_19 = arith.constant 0 : index
      %27 = vector.load %arg6[%c0_18, %c0_19] : memref<16x128xf32, #tpu.memory_space<vmem>>, vector<16x128xf32>
      tpu.vector_store %arg6[%c0_18, %c0_19], %26 {strides = array<i32>} : memref<16x128xf32, #tpu.memory_space<vmem>>, vector<16x128xf32>,
    } else {
    }
    return
  }
  func.func @transform_0(%arg0: i32, %arg1: i32) -> (i32, i32) {
    %c0_i32 = arith.constant 0 : i32
    %c0_i32_0 = arith.constant 0 : i32
    return %arg0, %c0_i32 : i32, i32
  }
  func.func @transform_1(%arg0: i32, %arg1: i32) -> (i32, i32) {
    %c0_i32 = arith.constant 0 : i32
    %c0_i32_0 = arith.constant 0 : i32
    %c0_i32_1 = arith.constant 0 : i32
    return %c0_i32, %c0_i32_0 : i32, i32
  }
  func.func @transform_2(%arg0: i32, %arg1: i32) -> (i32, i32) {
    %c0_i32 = arith.constant 0 : i32
    %c0_i32_0 = arith.constant 0 : i32
    return %c0_i32, %arg1 : i32, i32
  }
  func.func @transform_3(%arg0: i32, %arg1: i32) -> (i32, i32) {
    %c0_i32 = arith.constant 0 : i32
    %c0_i32_0 = arith.constant 0 : i32
    return %arg1, %c0_i32 : i32, i32
  }
  func.func @transform_4(%arg0: i32, %arg1: i32) -> (i32, i32) {
    %c0_i32 = arith.constant 0 : i32
    %c0_i32_0 = arith.constant 0 : i32
    return %arg0, %c0_i32 : i32, i32
  }
}

</mosaic_0001>

<llo_original>
// kernel: _lambda_.6
$region0: #{_lambda_.6}
  #allocation0 [shape = 'u32[]', space=smem, size = 0x4, offset = 0x4, fixed_abs, tag = 'smem constant byte address 0x4 - core index']
  #allocation1 [shape = 'u32[144,128]{1,0:T(1,128)}', space=vmem, size = 0x12000, scoped, tag = 'internal scratch']
  %s0 = inlined_call_operand.vmem [shape: bf16[16,128], index: 0, kind: input, shape index: {}]
  %s1 = inlined_call_operand.vmem [shape: bf16[128,128], index: 1, kind: input, shape index: {}]
  %s2 = inlined_call_operand.vmem [shape: f32[16,128], index: 2, kind: input, shape index: {}]
  %s3 = inlined_call_operand.vmem [shape: f32[16,128], index: 3, kind: output, shape index: {}]
  %s4 = sld [smem:[#allocation0]]
  $region22: #{_lambda_.6} parent=0
    _
  %s6 = ssub.s32 1, %s4
  %s7 = scalar_select 0, %s6, %s4
  // Predicated region
  $region2: #{_lambda_.6} parent=0 // pred_check
    _
  $region3: #{_lambda_.6} parent=0 // pred_check_branch
    %9 = sbr.rel (0) target = $region5
  $region4: #{_lambda_.6} parent=0 // pred_region
    _
  $region5: #{_lambda_.6} parent=0 // pred_fallthru
    _
  // Predicated region
  $region6: #{_lambda_.6} parent=0 // pred_check
    _
  $region7: #{_lambda_.6} parent=0 // pred_check_branch
    %11 = sbr.rel (0) target = $region9
  $region8: #{_lambda_.6} parent=0 // pred_region
    _
  $region9: #{_lambda_.6} parent=0 // pred_fallthru
    _
  // Predicated region
  $region10: #{_lambda_.6} parent=0 // pred_check
    _
  $region11: #{_lambda_.6} parent=0 // pred_check_branch
    %13 = sbr.rel (0) target = $region13
  $region12: #{_lambda_.6} parent=0 // pred_region
    _
  $region13: #{_lambda_.6} parent=0 // pred_fallthru
    _
  %v15 = vld [vmem:[%s0] sm:$0xf]
  %v16 = vld [vmem:[%s0 + $0x4] sm:$0xf]
  %v17 = vld [vmem:[%s1] sm:$0xf]
  %v18 = vld [vmem:[%s1 + $0x4] sm:$0xf]
  %v19 = vld [vmem:[%s1 + $0x8] sm:$0xf]
  %v20 = vld [vmem:[%s1 + $0xc] sm:$0xf]
  %v21 = vld [vmem:[%s1 + $0x10] sm:$0xf]
  %v22 = vld [vmem:[%s1 + $0x14] sm:$0xf]
  %v23 = vld [vmem:[%s1 + $0x18] sm:$0xf]
  %v24 = vld [vmem:[%s1 + $0x1c] sm:$0xf]
  %v25 = vld [vmem:[%s1 + $0x20] sm:$0xf]
  %v26 = vld [vmem:[%s1 + $0x24] sm:$0xf]
  %v27 = vld [vmem:[%s1 + $0x28] sm:$0xf]
  %v28 = vld [vmem:[%s1 + $0x2c] sm:$0xf]
  %v29 = vld [vmem:[%s1 + $0x30] sm:$0xf]
  %v30 = vld [vmem:[%s1 + $0x34] sm:$0xf]
  %v31 = vld [vmem:[%s1 + $0x38] sm:$0xf]
  %v32 = vld [vmem:[%s1 + $0x3c] sm:$0xf]
  %v33 = vld [vmem:[%s2] sm:$0xff]
  %v34 = vld [vmem:[%s2 + $0x8] sm:$0xff]
  %v37 = vunpack.c.l.b16 %v15
  %v38 = vunpack.c.l.b16 %v16
  %v39 = vpack.c.b16 %v38, %v37
  %v57 = vunpack.c.l.b16 %v17
  %v58 = vunpack.c.l.b16 %v18
  %v59 = vunpack.c.l.b16 %v19
  %v60 = vunpack.c.l.b16 %v20
  %v61 = vunpack.c.l.b16 %v21
  %v62 = vunpack.c.l.b16 %v22
  %v63 = vunpack.c.l.b16 %v23
  %v64 = vunpack.c.l.b16 %v24
  %v65 = vunpack.c.l.b16 %v25
  %v66 = vunpack.c.l.b16 %v26
  %v67 = vunpack.c.l.b16 %v27
  %v68 = vunpack.c.l.b16 %v28
  %v69 = vunpack.c.l.b16 %v29
  %v70 = vunpack.c.l.b16 %v30
  %v71 = vunpack.c.l.b16 %v31
  %v72 = vunpack.c.l.b16 %v32
  %v73 = vpack.c.b16 %v58, %v57
  %v74 = vpack.c.b16 %v60, %v59
  %v75 = vpack.c.b16 %v62, %v61
  %v76 = vpack.c.b16 %v64, %v63
  %v77 = vpack.c.b16 %v66, %v65
  %v78 = vpack.c.b16 %v68, %v67
  %v79 = vpack.c.b16 %v70, %v69
  %v80 = vpack.c.b16 %v72, %v71
  %89 = vmatprep.subr.bf16.mxu0 0
  %90 = vmatpush1.bf16.msra.mxu0 %v73
  %91 = vmatprep.subr.bf16.mxu0 0
  %92 = vmatpush1.bf16.msra.mxu0 %v74
  %93 = vmatprep.subr.bf16.mxu0 0
  %94 = vmatpush1.bf16.msra.mxu0 %v75
  %95 = vmatprep.subr.bf16.mxu0 0
  %96 = vmatpush1.bf16.msra.mxu0 %v76
  %97 = vmatprep.subr.bf16.mxu0 0
  %98 = vmatpush1.bf16.msra.mxu0 %v77
  %99 = vmatprep.subr.bf16.mxu0 0
  %100 = vmatpush1.bf16.msra.mxu0 %v78
  %101 = vmatprep.subr.bf16.mxu0 0
  %102 = vmatpush1.bf16.msra.mxu0 %v79
  %103 = vmatprep.subr.bf16.mxu0 0
  %104 = vmatpush1.bf16.msra.mxu0 %v80
  %105 = vmatprep.subr.bf16.mxu0 0
  %106 = vmatpush1.bf16.msra.mxu0 0
  %107 = vmatprep.subr.bf16.mxu0 0
  %108 = vmatpush1.bf16.msra.mxu0 0
  %109 = vmatprep.subr.bf16.mxu0 0
  %110 = vmatpush1.bf16.msra.mxu0 0
  %111 = vmatprep.subr.bf16.mxu0 0
  %112 = vmatpush1.bf16.msra.mxu0 0
  %113 = vmatprep.subr.bf16.mxu0 0
  %114 = vmatpush1.bf16.msra.mxu0 0
  %115 = vmatprep.subr.bf16.mxu0 0
  %116 = vmatpush1.bf16.msra.mxu0 0
  %117 = vmatprep.subr.bf16.mxu0 0
  %118 = vmatpush1.bf16.msra.mxu0 0
  %119 = vmatprep.subr.bf16.mxu0 0
  %120 = vmatpush1.bf16.msra.mxu0 0
  %121 = vmatprep.mubr.bf16.mxu0 0
  %122 = vmatmul.mubr.bf16.gmra.mrb[0].mxu0 %v39
  %v123 = vpop.f32.mrb[0].mxu0
  %v124 = vadd.f32 %v33, %v123
  %v125 = vpop.f32.mrb[0].mxu0
  %v126 = vpop.f32.mrb[0].mxu0
  %v127 = vadd.f32 %v34, %v126
  %v128 = vpop.f32.mrb[0].mxu0
  %129 = vdwg.mxu0
  %130 = vst [vmem:[%s3] sm:$0xff] %v124
  %131 = vst [vmem:[%s3 + $0x8] sm:$0xff] %v127
  // Predicated region
  $region14: #{_lambda_.6} parent=0 // pred_check
    _
  $region15: #{_lambda_.6} parent=0 // pred_check_branch
    %133 = sbr.rel (0) target = $region17
  $region16: #{_lambda_.6} parent=0 // pred_region
    _
  $region17: #{_lambda_.6} parent=0 // pred_fallthru
    _
  // Predicated region
  $region18: #{_lambda_.6} parent=0 // pred_check
    _
  $region19: #{_lambda_.6} parent=0 // pred_check_branch
    %135 = sbr.rel (0) target = $region21
  $region20: #{_lambda_.6} parent=0 // pred_region
    _
  $region21: #{_lambda_.6} parent=0 // pred_fallthru
    _

// kernel: _lambda_.4
$region0: #{_lambda_.4}
  #allocation0 [shape = 'u32[]', space=smem, size = 0x4, offset = 0x4, fixed_abs, tag = 'smem constant byte address 0x4 - core index']
  #allocation1 [shape = 'u32[144,128]{1,0:T(1,128)}', space=vmem, size = 0x12000, scoped, tag = 'internal scratch']
  %s0 = inlined_call_operand.vmem [shape: f32[16,128], index: 0, kind: input, shape index: {}]
  %s1 = inlined_call_operand.vmem [shape: f32[1,128], index: 1, kind: input, shape index: {}]
  %s2 = inlined_call_operand.vmem [shape: bf16[128,384], index: 2, kind: input, shape index: {}]
  %s3 = inlined_call_operand.vmem [shape: bf16[16,384], index: 3, kind: output, shape index: {}]
  %s4 = sld [smem:[#allocation0]]
  $region22: #{_lambda_.4} parent=0
    _
  %s6 = ssub.s32 1, %s4
  %s7 = scalar_select 0, %s6, %s4
  // Predicated region
  $region2: #{_lambda_.4} parent=0 // pred_check
    _
  $region3: #{_lambda_.4} parent=0 // pred_check_branch
    %9 = sbr.rel (0) target = $region5
  $region4: #{_lambda_.4} parent=0 // pred_region
    _
  $region5: #{_lambda_.4} parent=0 // pred_fallthru
    _
  // Predicated region
  $region6: #{_lambda_.4} parent=0 // pred_check
    _
  $region7: #{_lambda_.4} parent=0 // pred_check_branch
    %11 = sbr.rel (0) target = $region9
  $region8: #{_lambda_.4} parent=0 // pred_region
    _
  $region9: #{_lambda_.4} parent=0 // pred_fallthru
    _
  // Predicated region
  $region10: #{_lambda_.4} parent=0 // pred_check
    _
  $region11: #{_lambda_.4} parent=0 // pred_check_branch
    %13 = sbr.rel (0) target = $region13
  $region12: #{_lambda_.4} parent=0 // pred_region
    _
  $region13: #{_lambda_.4} parent=0 // pred_fallthru
    _
  %v15 = vld [vmem:[%s0] sm:$0xff]
  %v16 = vld [vmem:[%s0 + $0x8] sm:$0xff]
  %v17 = vmul.f32 %v15, %v15
  %v18 = vmul.f32 %v16, %v16
  %19 = vadd.xlane.f32.xlu0 %v17
  %v20 = vpop.xlane.xlu0 %19
  %21 = vadd.xlane.f32.xlu0 %v18
  %v22 = vpop.xlane.xlu0 %21
  %v23 = vrcp.pop 128.0
  %v24 = vmul.f32 %v20, %v23
  %v25 = vmul.f32 %v22, %v23
  %v26 = vadd.f32 %v24, 1e-05
  %v27 = vadd.f32 %v25, 1e-05
  %v28 = vrsqrt.pop %v26
  %v29 = vrsqrt.pop %v27
  %v30 = vmul.f32 %v15, %v28
  %v31 = vmul.f32 %v16, %v29
  %v32 = vld [vmem:[%s1] sm:$0x1]
  %v34 = vlaneseq
  %v35 = vshrl.u32 %v34, 7
  %v36 = vsub.s32 0, %v35
  %v37 = vrot.slane %v32, %v36
  %v39 = vmul.f32 %v30, %v37
  %v40 = vmul.f32 %v31, %v37
  %v41 = vpack.c.bf16 %v40, %v39
  %v42 = vld [vmem:[%s2] sm:$0xff]
  %v43 = vld [vmem:[%s2 + $0x8] sm:$0xf]
  %v44 = vld [vmem:[%s2 + $0xc] sm:$0xff]
  %v45 = vld [vmem:[%s2 + $0x14] sm:$0xf]
  %v46 = vld [vmem:[%s2 + $0x18] sm:$0xff]
  %v47 = vld [vmem:[%s2 + $0x20] sm:$0xf]
  %v48 = vld [vmem:[%s2 + $0x24] sm:$0xff]
  %v49 = vld [vmem:[%s2 + $0x2c] sm:$0xf]
  %v50 = vld [vmem:[%s2 + $0x30] sm:$0xff]
  %v51 = vld [vmem:[%s2 + $0x38] sm:$0xf]
  %v52 = vld [vmem:[%s2 + $0x3c] sm:$0xff]
  %v53 = vld [vmem:[%s2 + $0x44] sm:$0xf]
  %v54 = vld [vmem:[%s2 + $0x48] sm:$0xff]
  %v55 = vld [vmem:[%s2 + $0x50] sm:$0xf]
  %v56 = vld [vmem:[%s2 + $0x54] sm:$0xff]
  %v57 = vld [vmem:[%s2 + $0x5c] sm:$0xf]
  %v58 = vld [vmem:[%s2 + $0x60] sm:$0xff]
  %v59 = vld [vmem:[%s2 + $0x68] sm:$0xf]
  %v60 = vld [vmem:[%s2 + $0x6c] sm:$0xff]
  %v61 = vld [vmem:[%s2 + $0x74] sm:$0xf]
  %v62 = vld [vmem:[%s2 + $0x78] sm:$0xff]
  %v63 = vld [vmem:[%s2 + $0x80] sm:$0xf]
  %v64 = vld [vmem:[%s2 + $0x84] sm:$0xff]
  %v65 = vld [vmem:[%s2 + $0x8c] sm:$0xf]
  %v66 = vld [vmem:[%s2 + $0x90] sm:$0xff]
  %v67 = vld [vmem:[%s2 + $0x98] sm:$0xf]
  %v68 = vld [vmem:[%s2 + $0x9c] sm:$0xff]
  %v69 = vld [vmem:[%s2 + $0xa4] sm:$0xf]
  %v70 = vld [vmem:[%s2 + $0xa8] sm:$0xff]
  %v71 = vld [vmem:[%s2 + $0xb0] sm:$0xf]
  %v72 = vld [vmem:[%s2 + $0xb4] sm:$0xff]
  %v73 = vld [vmem:[%s2 + $0xbc] sm:$0xf]
  %v106 = vunpack.c.l.b16 %v42
  %v107 = vunpack.c.h.b16 %v42
  %v108 = vunpack.c.l.b16 %v43
  %v109 = vunpack.c.l.b16 %v44
  %v110 = vunpack.c.h.b16 %v44
  %v111 = vunpack.c.l.b16 %v45
  %v112 = vunpack.c.l.b16 %v46
  %v113 = vunpack.c.h.b16 %v46
  %v114 = vunpack.c.l.b16 %v47
  %v115 = vunpack.c.l.b16 %v48
  %v116 = vunpack.c.h.b16 %v48
  %v117 = vunpack.c.l.b16 %v49
  %v118 = vunpack.c.l.b16 %v50
  %v119 = vunpack.c.h.b16 %v50
  %v120 = vunpack.c.l.b16 %v51
  %v121 = vunpack.c.l.b16 %v52
  %v122 = vunpack.c.h.b16 %v52
  %v123 = vunpack.c.l.b16 %v53
  %v124 = vunpack.c.l.b16 %v54
  %v125 = vunpack.c.h.b16 %v54
  %v126 = vunpack.c.l.b16 %v55
  %v127 = vunpack.c.l.b16 %v56
  %v128 = vunpack.c.h.b16 %v56
  %v129 = vunpack.c.l.b16 %v57
  %v130 = vunpack.c.l.b16 %v58
  %v131 = vunpack.c.h.b16 %v58
  %v132 = vunpack.c.l.b16 %v59
  %v133 = vunpack.c.l.b16 %v60
  %v134 = vunpack.c.h.b16 %v60
  %v135 = vunpack.c.l.b16 %v61
  %v136 = vunpack.c.l.b16 %v62
  %v137 = vunpack.c.h.b16 %v62
  %v138 = vunpack.c.l.b16 %v63
  %v139 = vunpack.c.l.b16 %v64
  %v140 = vunpack.c.h.b16 %v64
  %v141 = vunpack.c.l.b16 %v65
  %v142 = vunpack.c.l.b16 %v66
  %v143 = vunpack.c.h.b16 %v66
  %v144 = vunpack.c.l.b16 %v67
  %v145 = vunpack.c.l.b16 %v68
  %v146 = vunpack.c.h.b16 %v68
  %v147 = vunpack.c.l.b16 %v69
  %v148 = vunpack.c.l.b16 %v70
  %v149 = vunpack.c.h.b16 %v70
  %v150 = vunpack.c.l.b16 %v71
  %v151 = vunpack.c.l.b16 %v72
  %v152 = vunpack.c.h.b16 %v72
  %v153 = vunpack.c.l.b16 %v73
  %v154 = vpack.c.b16 %v109, %v106
  %v155 = vpack.c.b16 %v110, %v107
  %v156 = vpack.c.b16 %v111, %v108
  %v157 = vpack.c.b16 %v115, %v112
  %v158 = vpack.c.b16 %v116, %v113
  %v159 = vpack.c.b16 %v117, %v114
  %v160 = vpack.c.b16 %v121, %v118
  %v161 = vpack.c.b16 %v122, %v119
  %v162 = vpack.c.b16 %v123, %v120
  %v163 = vpack.c.b16 %v127, %v124
  %v164 = vpack.c.b16 %v128, %v125
  %v165 = vpack.c.b16 %v129, %v126
  %v166 = vpack.c.b16 %v133, %v130
  %v167 = vpack.c.b16 %v134, %v131
  %v168 = vpack.c.b16 %v135, %v132
  %v169 = vpack.c.b16 %v139, %v136
  %v170 = vpack.c.b16 %v140, %v137
  %v171 = vpack.c.b16 %v141, %v138
  %v172 = vpack.c.b16 %v145, %v142
  %v173 = vpack.c.b16 %v146, %v143
  %v174 = vpack.c.b16 %v147, %v144
  %v175 = vpack.c.b16 %v151, %v148
  %v176 = vpack.c.b16 %v152, %v149
  %v177 = vpack.c.b16 %v153, %v150
  %202 = vmatprep.subr.bf16.mxu0 %v155
  %203 = vmatpush1.bf16.msra.mxu0 %v154
  %204 = vmatprep.subr.bf16.mxu0 %v158
  %205 = vmatpush1.bf16.msra.mxu0 %v157
  %206 = vmatprep.subr.bf16.mxu0 %v161
  %207 = vmatpush1.bf16.msra.mxu0 %v160
  %208 = vmatprep.subr.bf16.mxu0 %v164
  %209 = vmatpush1.bf16.msra.mxu0 %v163
  %210 = vmatprep.subr.bf16.mxu0 %v167
  %211 = vmatpush1.bf16.msra.mxu0 %v166
  %212 = vmatprep.subr.bf16.mxu0 %v170
  %213 = vmatpush1.bf16.msra.mxu0 %v169
  %214 = vmatprep.subr.bf16.mxu0 %v173
  %215 = vmatpush1.bf16.msra.mxu0 %v172
  %216 = vmatprep.subr.bf16.mxu0 %v176
  %217 = vmatpush1.bf16.msra.mxu0 %v175
  %218 = vmatprep.subr.bf16.mxu0 0
  %219 = vmatpush1.bf16.msra.mxu0 0
  %220 = vmatprep.subr.bf16.mxu0 0
  %221 = vmatpush1.bf16.msra.mxu0 0
  %222 = vmatprep.subr.bf16.mxu0 0
  %223 = vmatpush1.bf16.msra.mxu0 0
  %224 = vmatprep.subr.bf16.mxu0 0
  %225 = vmatpush1.bf16.msra.mxu0 0
  %226 = vmatprep.subr.bf16.mxu0 0
  %227 = vmatpush1.bf16.msra.mxu0 0
  %228 = vmatprep.subr.bf16.mxu0 0
  %229 = vmatpush1.bf16.msra.mxu0 0
  %230 = vmatprep.subr.bf16.mxu0 0
  %231 = vmatpush1.bf16.msra.mxu0 0
  %232 = vmatprep.subr.bf16.mxu0 0
  %233 = vmatpush1.bf16.msra.mxu0 0
  %234 = vmatprep.mubr.bf16.mxu0 0
  %235 = vmatmul.mubr.bf16.gmra.mrb[0].mxu0 %v41
  %v236 = vpop.f32.mrb[0].mxu0
  %v237 = vadd.f32 0.0, %v236
  %v238 = vpop.f32.mrb[0].mxu0
  %v239 = vadd.f32 0.0, %v238
  %v240 = vpop.f32.mrb[0].mxu0
  %v241 = vadd.f32 0.0, %v240
  %v242 = vpop.f32.mrb[0].mxu0
  %v243 = vadd.f32 0.0, %v242
  %244 = vdwg.mxu0
  %245 = vmatprep.subr.bf16.mxu0 0
  %246 = vmatpush1.bf16.msra.mxu0 %v156
  %247 = vmatprep.subr.bf16.mxu0 0
  %248 = vmatpush1.bf16.msra.mxu0 %v159
  %249 = vmatprep.subr.bf16.mxu0 0
  %250 = vmatpush1.bf16.msra.mxu0 %v162
  %251 = vmatprep.subr.bf16.mxu0 0
  %252 = vmatpush1.bf16.msra.mxu0 %v165
  %253 = vmatprep.subr.bf16.mxu0 0
  %254 = vmatpush1.bf16.msra.mxu0 %v168
  %255 = vmatprep.subr.bf16.mxu0 0
  %256 = vmatpush1.bf16.msra.mxu0 %v171
  %257 = vmatprep.subr.bf16.mxu0 0
  %258 = vmatpush1.bf16.msra.mxu0 %v174
  %259 = vmatprep.subr.bf16.mxu0 0
  %260 = vmatpush1.bf16.msra.mxu0 %v177
  %261 = vmatprep.subr.bf16.mxu0 0
  %262 = vmatpush1.bf16.msra.mxu0 0
  %263 = vmatprep.subr.bf16.mxu0 0
  %264 = vmatpush1.bf16.msra.mxu0 0
  %265 = vmatprep.subr.bf16.mxu0 0
  %266 = vmatpush1.bf16.msra.mxu0 0
  %267 = vmatprep.subr.bf16.mxu0 0
  %268 = vmatpush1.bf16.msra.mxu0 0
  %269 = vmatprep.subr.bf16.mxu0 0
  %270 = vmatpush1.bf16.msra.mxu0 0
  %271 = vmatprep.subr.bf16.mxu0 0
  %272 = vmatpush1.bf16.msra.mxu0 0
  %273 = vmatprep.subr.bf16.mxu0 0
  %274 = vmatpush1.bf16.msra.mxu0 0
  %275 = vmatprep.subr.bf16.mxu0 0
  %276 = vmatpush1.bf16.msra.mxu0 0
  %277 = vmatprep.mubr.bf16.mxu0 0
  %278 = vmatmul.mubr.bf16.gmra.mrb[0].mxu0 %v41
  %v279 = vpop.f32.mrb[0].mxu0
  %v280 = vadd.f32 0.0, %v279
  %v281 = vpop.f32.mrb[0].mxu0
  %v282 = vpop.f32.mrb[0].mxu0
  %v283 = vadd.f32 0.0, %v282
  %v284 = vpop.f32.mrb[0].mxu0
  %285 = vdwg.mxu0
  %v286 = vpack.c.bf16 %v241, %v237
  %v287 = vpack.c.bf16 %v243, %v239
  %v288 = vpack.c.bf16 %v283, %v280
  %v292 = vunpack.c.l.b16 %v286
  %v293 = vunpack.c.l.b16 %v287
  %v294 = vunpack.c.l.b16 %v288
  %v295 = vunpack.c.h.b16 %v286
  %v296 = vunpack.c.h.b16 %v287
  %v297 = vunpack.c.h.b16 %v288
  %v298 = vpack.c.b16 %v293, %v292
  %v299 = vpack.c.b16 %v294, %v294
  %v300 = vpack.c.b16 %v296, %v295
  %v301 = vpack.c.b16 %v297, %v297
  %306 = vst [vmem:[%s3] sm:$0xff] %v298
  %307 = vst [vmem:[%s3 + $0x8] sm:$0xf] %v299
  %308 = vst [vmem:[%s3 + $0xc] sm:$0xff] %v300
  %309 = vst [vmem:[%s3 + $0x14] sm:$0xf] %v301
  // Predicated region
  $region14: #{_lambda_.4} parent=0 // pred_check
    _
  $region15: #{_lambda_.4} parent=0 // pred_check_branch
    %311 = sbr.rel (0) target = $region17
  $region16: #{_lambda_.4} parent=0 // pred_region
    _
  $region17: #{_lambda_.4} parent=0 // pred_fallthru
    _
  // Predicated region
  $region18: #{_lambda_.4} parent=0 // pred_check
    _
  $region19: #{_lambda_.4} parent=0 // pred_check_branch
    %313 = sbr.rel (0) target = $region21
  $region20: #{_lambda_.4} parent=0 // pred_region
    _
  $region21: #{_lambda_.4} parent=0 // pred_fallthru
    _

// kernel: _lambda_.7
$region0: #{_lambda_.7}
  #allocation0 [shape = 'u32[]', space=smem, size = 0x4, offset = 0x4, fixed_abs, tag = 'smem constant byte address 0x4 - core index']
  #allocation1 [shape = 'u32[144,128]{1,0:T(1,128)}', space=vmem, size = 0x12000, scoped, tag = 'internal scratch']
  #allocation2 [shape = 'bf16[16,128]{1,0:T(16,128)(2,1)}', space=vmem, size = 0x1000, scoped, tag = 'scratch operand']
  #allocation3 [shape = 'f32[16,128]{1,0:T(8,128)}', space=vmem, size = 0x2000, scoped, tag = 'scratch operand']
  %s0 = inlined_call_operand.vmem [shape: f32[16,128], index: 0, kind: input, shape index: {}]
  %s1 = inlined_call_operand.vmem [shape: f32[1,128], index: 1, kind: input, shape index: {}]
  %s2 = inlined_call_operand.vmem [shape: bf16[128,768], index: 2, kind: input, shape index: {}]
  %s3 = inlined_call_operand.vmem [shape: bf16[384,128], index: 3, kind: input, shape index: {}]
  %s4 = inlined_call_operand.hbm [shape: f32[16,128], index: 4, kind: output, shape index: {}]
  %s5 = sld [smem:[#allocation0]]
  $region34: #{_lambda_.7} parent=0
    _
  %s7 = ssub.s32 1, %s5
  %s8 = scalar_select 0, %s7, %s5
  $region1: #{_lambda_.7} parent=0
    #allocation4 [shape = 'u8[8192]{0}', space=vmem, size = 0x2000, scoped, tag = 'output window, operand 0, single buffered']
    #allocation5 [shape = 's32[1]{0}', space=sflag, size = 0x4, scoped, tag = 'scoped memory for _lambda_.7']
    %9 = vsyncpa [#allocation5], 0
    // Predicated region
    $region2: #{_lambda_.7} parent=1 // pred_check
      _
    $region3: #{_lambda_.7} parent=1 // pred_check_branch
      %11 = sbr.rel (0) target = $region5
    $region4: #{_lambda_.7} parent=1 // pred_region
      _
    $region5: #{_lambda_.7} parent=1 // pred_fallthru
      _
    // Predicated region
    $region6: #{_lambda_.7} parent=1 // pred_check
      _
    $region7: #{_lambda_.7} parent=1 // pred_check_branch
      %13 = sbr.rel (0) target = $region9
    $region8: #{_lambda_.7} parent=1 // pred_region
      _
    $region9: #{_lambda_.7} parent=1 // pred_fallthru
      _
    // Predicated region
    $region10: #{_lambda_.7} parent=1 // pred_check
      _
    $region11: #{_lambda_.7} parent=1 // pred_check_branch
      %15 = sbr.rel (0) target = $region13
    $region12: #{_lambda_.7} parent=1 // pred_region
      _
    $region13: #{_lambda_.7} parent=1 // pred_fallthru
      _
    // Predicated region
    $region14: #{_lambda_.7} parent=1 // pred_check
      _
    $region15: #{_lambda_.7} parent=1 // pred_check_branch
      %17 = sbr.rel (0) target = $region17
    $region16: #{_lambda_.7} parent=1 // pred_region
      _
    $region17: #{_lambda_.7} parent=1 // pred_fallthru
      _
    %p19 = scmp.eq.s32.totalorder 0, 0
    // Predicated region
    $region18: #{_lambda_.7} parent=1 // pred_check
      %p20 = pneg %p19
    $region19: #{_lambda_.7} parent=1 // pred_check_branch
      %22 = sbr.rel (%p20) target = $region21
    $region20: #{_lambda_.7} parent=1 // pred_region
      %23 = vst [vmem:[#allocation3] sm:$0xff] 0.0
      %24 = vst [vmem:[#allocation3 + $0x8] sm:$0xff] 0.0
      %v25 = vld [vmem:[%s0] sm:$0xff]
      %v26 = vld [vmem:[%s0 + $0x8] sm:$0xff]
      %v27 = vmul.f32 %v25, %v25
      %v28 = vmul.f32 %v26, %v26
      %29 = vadd.xlane.f32.xlu0 %v27
      %v30 = vpop.xlane.xlu0 %29
      %31 = vadd.xlane.f32.xlu0 %v28
      %v32 = vpop.xlane.xlu0 %31
      %v33 = vrcp.pop 128.0
      %v34 = vmul.f32 %v30, %v33
      %v35 = vmul.f32 %v32, %v33
      %v36 = vadd.f32 %v34, 1e-05
      %v37 = vadd.f32 %v35, 1e-05
      %v38 = vrsqrt.pop %v36
      %v39 = vrsqrt.pop %v37
      %v40 = vmul.f32 %v25, %v38
      %v41 = vmul.f32 %v26, %v39
      %v42 = vld [vmem:[%s1] sm:$0x1]
      %v44 = vlaneseq
      %v45 = vshrl.u32 %v44, 7
      %v46 = vsub.s32 0, %v45
      %v47 = vrot.slane %v42, %v46
      %v49 = vmul.f32 %v40, %v47
      %v50 = vmul.f32 %v41, %v47
      %v51 = vpack.c.bf16 %v50, %v49
      %52 = vst [vmem:[#allocation2] sm:$0xff] %v51
    $region21: #{_lambda_.7} parent=1 // pred_fallthru
      _
    %v53 = vld [vmem:[#allocation2] sm:$0xff]
    %v54 = vld [vmem:[%s2] sm:$0xff]
    %v55 = vld [vmem:[%s2 + $0x8] sm:$0xff]
    %v56 = vld [vmem:[%s2 + $0x10] sm:$0xff]
    %v57 = vld [vmem:[%s2 + $0x18] sm:$0xff]
    %v58 = vld [vmem:[%s2 + $0x20] sm:$0xff]
    %v59 = vld [vmem:[%s2 + $0x28] sm:$0xff]
    %v60 = vld [vmem:[%s2 + $0x30] sm:$0xff]
    %v61 = vld [vmem:[%s2 + $0x38] sm:$0xff]
    %v62 = vld [vmem:[%s2 + $0x40] sm:$0xff]
    %v63 = vld [vmem:[%s2 + $0x48] sm:$0xff]
    %v64 = vld [vmem:[%s2 + $0x50] sm:$0xff]
    %v65 = vld [vmem:[%s2 + $0x58] sm:$0xff]
    %v66 = vld [vmem:[%s2 + $0x60] sm:$0xff]
    %v67 = vld [vmem:[%s2 + $0x68] sm:$0xff]
    %v68 = vld [vmem:[%s2 + $0x70] sm:$0xff]
    %v69 = vld [vmem:[%s2 + $0x78] sm:$0xff]
    %v70 = vld [vmem:[%s2 + $0x80] sm:$0xff]
    %v71 = vld [vmem:[%s2 + $0x88] sm:$0xff]
    %v72 = vld [vmem:[%s2 + $0x90] sm:$0xff]
    %v73 = vld [vmem:[%s2 + $0x98] sm:$0xff]
    %v74 = vld [vmem:[%s2 + $0xa0] sm:$0xff]
    %v75 = vld [vmem:[%s2 + $0xa8] sm:$0xff]
    %v76 = vld [vmem:[%s2 + $0xb0] sm:$0xff]
    %v77 = vld [vmem:[%s2 + $0xb8] sm:$0xff]
    %v78 = vld [vmem:[%s2 + $0xc0] sm:$0xff]
    %v79 = vld [vmem:[%s2 + $0xc8] sm:$0xff]
    %v80 = vld [vmem:[%s2 + $0xd0] sm:$0xff]
    %v81 = vld [vmem:[%s2 + $0xd8] sm:$0xff]
    %v82 = vld [vmem:[%s2 + $0xe0] sm:$0xff]
    %v83 = vld [vmem:[%s2 + $0xe8] sm:$0xff]
    %v84 = vld [vmem:[%s2 + $0xf0] sm:$0xff]
    %v85 = vld [vmem:[%s2 + $0xf8] sm:$0xff]
    %v86 = vld [vmem:[%s2 + $0x100] sm:$0xff]
    %v87 = vld [vmem:[%s2 + $0x108] sm:$0xff]
    %v88 = vld [vmem:[%s2 + $0x110] sm:$0xff]
    %v89 = vld [vmem:[%s2 + $0x118] sm:$0xff]
    %v90 = vld [vmem:[%s2 + $0x120] sm:$0xff]
    %v91 = vld [vmem:[%s2 + $0x128] sm:$0xff]
    %v92 = vld [vmem:[%s2 + $0x130] sm:$0xff]
    %v93 = vld [vmem:[%s2 + $0x138] sm:$0xff]
    %v94 = vld [vmem:[%s2 + $0x140] sm:$0xff]
    %v95 = vld [vmem:[%s2 + $0x148] sm:$0xff]
    %v96 = vld [vmem:[%s2 + $0x150] sm:$0xff]
    %v97 = vld [vmem:[%s2 + $0x158] sm:$0xff]
    %v98 = vld [vmem:[%s2 + $0x160] sm:$0xff]
    %v99 = vld [vmem:[%s2 + $0x168] sm:$0xff]
    %v100 = vld [vmem:[%s2 + $0x170] sm:$0xff]
    %v101 = vld [vmem:[%s2 + $0x178] sm:$0xff]
    %v150 = vunpack.c.l.b16 %v54
    %v151 = vunpack.c.h.b16 %v54
    %v152 = vunpack.c.l.b16 %v55
    %v153 = vunpack.c.h.b16 %v55
    %v154 = vunpack.c.l.b16 %v56
    %v155 = vunpack.c.h.b16 %v56
    %v156 = vunpack.c.l.b16 %v57
    %v157 = vunpack.c.h.b16 %v57
    %v158 = vunpack.c.l.b16 %v58
    %v159 = vunpack.c.h.b16 %v58
    %v160 = vunpack.c.l.b16 %v59
    %v161 = vunpack.c.h.b16 %v59
    %v162 = vunpack.c.l.b16 %v60
    %v163 = vunpack.c.h.b16 %v60
    %v164 = vunpack.c.l.b16 %v61
    %v165 = vunpack.c.h.b16 %v61
    %v166 = vunpack.c.l.b16 %v62
    %v167 = vunpack.c.h.b16 %v62
    %v168 = vunpack.c.l.b16 %v63
    %v169 = vunpack.c.h.b16 %v63
    %v170 = vunpack.c.l.b16 %v64
    %v171 = vunpack.c.h.b16 %v64
    %v172 = vunpack.c.l.b16 %v65
    %v173 = vunpack.c.h.b16 %v65
    %v174 = vunpack.c.l.b16 %v66
    %v175 = vunpack.c.h.b16 %v66
    %v176 = vunpack.c.l.b16 %v67
    %v177 = vunpack.c.h.b16 %v67
    %v178 = vunpack.c.l.b16 %v68
    %v179 = vunpack.c.h.b16 %v68
    %v180 = vunpack.c.l.b16 %v69
    %v181 = vunpack.c.h.b16 %v69
    %v182 = vunpack.c.l.b16 %v70
    %v183 = vunpack.c.h.b16 %v70
    %v184 = vunpack.c.l.b16 %v71
    %v185 = vunpack.c.h.b16 %v71
    %v186 = vunpack.c.l.b16 %v72
    %v187 = vunpack.c.h.b16 %v72
    %v188 = vunpack.c.l.b16 %v73
    %v189 = vunpack.c.h.b16 %v73
    %v190 = vunpack.c.l.b16 %v74
    %v191 = vunpack.c.h.b16 %v74
    %v192 = vunpack.c.l.b16 %v75
    %v193 = vunpack.c.h.b16 %v75
    %v194 = vunpack.c.l.b16 %v76
    %v195 = vunpack.c.h.b16 %v76
    %v196 = vunpack.c.l.b16 %v77
    %v197 = vunpack.c.h.b16 %v77
    %v198 = vunpack.c.l.b16 %v78
    %v199 = vunpack.c.h.b16 %v78
    %v200 = vunpack.c.l.b16 %v79
    %v201 = vunpack.c.h.b16 %v79
    %v202 = vunpack.c.l.b16 %v80
    %v203 = vunpack.c.h.b16 %v80
    %v204 = vunpack.c.l.b16 %v81
    %v205 = vunpack.c.h.b16 %v81
    %v206 = vunpack.c.l.b16 %v82
    %v207 = vunpack.c.h.b16 %v82
    %v208 = vunpack.c.l.b16 %v83
    %v209 = vunpack.c.h.b16 %v83
    %v210 = vunpack.c.l.b16 %v84
    %v211 = vunpack.c.h.b16 %v84
    %v212 = vunpack.c.l.b16 %v85
    %v213 = vunpack.c.h.b16 %v85
    %v214 = vunpack.c.l.b16 %v86
    %v215 = vunpack.c.h.b16 %v86
    %v216 = vunpack.c.l.b16 %v87
    %v217 = vunpack.c.h.b16 %v87
    %v218 = vunpack.c.l.b16 %v88
    %v219 = vunpack.c.h.b16 %v88
    %v220 = vunpack.c.l.b16 %v89
    %v221 = vunpack.c.h.b16 %v89
    %v222 = vunpack.c.l.b16 %v90
    %v223 = vunpack.c.h.b16 %v90
    %v224 = vunpack.c.l.b16 %v91
    %v225 = vunpack.c.h.b16 %v91
    %v226 = vunpack.c.l.b16 %v92
    %v227 = vunpack.c.h.b16 %v92
    %v228 = vunpack.c.l.b16 %v93
    %v229 = vunpack.c.h.b16 %v93
    %v230 = vunpack.c.l.b16 %v94
    %v231 = vunpack.c.h.b16 %v94
    %v232 = vunpack.c.l.b16 %v95
    %v233 = vunpack.c.h.b16 %v95
    %v234 = vunpack.c.l.b16 %v96
    %v235 = vunpack.c.h.b16 %v96
    %v236 = vunpack.c.l.b16 %v97
    %v237 = vunpack.c.h.b16 %v97
    %v238 = vunpack.c.l.b16 %v98
    %v239 = vunpack.c.h.b16 %v98
    %v240 = vunpack.c.l.b16 %v99
    %v241 = vunpack.c.h.b16 %v99
    %v242 = vunpack.c.l.b16 %v100
    %v243 = vunpack.c.h.b16 %v100
    %v244 = vunpack.c.l.b16 %v101
    %v245 = vunpack.c.h.b16 %v101
    %v246 = vpack.c.b16 %v156, %v150
    %v247 = vpack.c.b16 %v157, %v151
    %v248 = vpack.c.b16 %v158, %v152
    %v249 = vpack.c.b16 %v159, %v153
    %v250 = vpack.c.b16 %v160, %v154
    %v251 = vpack.c.b16 %v161, %v155
    %v252 = vpack.c.b16 %v168, %v162
    %v253 = vpack.c.b16 %v169, %v163
    %v254 = vpack.c.b16 %v170, %v164
    %v255 = vpack.c.b16 %v171, %v165
    %v256 = vpack.c.b16 %v172, %v166
    %v257 = vpack.c.b16 %v173, %v167
    %v258 = vpack.c.b16 %v180, %v174
    %v259 = vpack.c.b16 %v181, %v175
    %v260 = vpack.c.b16 %v182, %v176
    %v261 = vpack.c.b16 %v183, %v177
    %v262 = vpack.c.b16 %v184, %v178
    %v263 = vpack.c.b16 %v185, %v179
    %v264 = vpack.c.b16 %v192, %v186
    %v265 = vpack.c.b16 %v193, %v187
    %v266 = vpack.c.b16 %v194, %v188
    %v267 = vpack.c.b16 %v195, %v189
    %v268 = vpack.c.b16 %v196, %v190
    %v269 = vpack.c.b16 %v197, %v191
    %v270 = vpack.c.b16 %v204, %v198
    %v271 = vpack.c.b16 %v205, %v199
    %v272 = vpack.c.b16 %v206, %v200
    %v273 = vpack.c.b16 %v207, %v201
    %v274 = vpack.c.b16 %v208, %v202
    %v275 = vpack.c.b16 %v209, %v203
    %v276 = vpack.c.b16 %v216, %v210
    %v277 = vpack.c.b16 %v217, %v211
    %v278 = vpack.c.b16 %v218, %v212
    %v279 = vpack.c.b16 %v219, %v213
    %v280 = vpack.c.b16 %v220, %v214
    %v281 = vpack.c.b16 %v221, %v215
    %v282 = vpack.c.b16 %v228, %v222
    %v283 = vpack.c.b16 %v229, %v223
    %v284 = vpack.c.b16 %v230, %v224
    %v285 = vpack.c.b16 %v231, %v225
    %v286 = vpack.c.b16 %v232, %v226
    %v287 = vpack.c.b16 %v233, %v227
    %v288 = vpack.c.b16 %v240, %v234
    %v289 = vpack.c.b16 %v241, %v235
    %v290 = vpack.c.b16 %v242, %v236
    %v291 = vpack.c.b16 %v243, %v237
    %v292 = vpack.c.b16 %v244, %v238
    %v293 = vpack.c.b16 %v245, %v239
    %342 = vmatprep.subr.bf16.mxu0 %v247
    %343 = vmatpush1.bf16.msra.mxu0 %v246
    %344 = vmatprep.subr.bf16.mxu0 %v253
    %345 = vmatpush1.bf16.msra.mxu0 %v252
    %346 = vmatprep.subr.bf16.mxu0 %v259
    %347 = vmatpush1.bf16.msra.mxu0 %v258
    %348 = vmatprep.subr.bf16.mxu0 %v265
    %349 = vmatpush1.bf16.msra.mxu0 %v264
    %350 = vmatprep.subr.bf16.mxu0 %v271
    %351 = vmatpush1.bf16.msra.mxu0 %v270
    %352 = vmatprep.subr.bf16.mxu0 %v277
    %353 = vmatpush1.bf16.msra.mxu0 %v276
    %354 = vmatprep.subr.bf16.mxu0 %v283
    %355 = vmatpush1.bf16.msra.mxu0 %v282
    %356 = vmatprep.subr.bf16.mxu0 %v289
    %357 = vmatpush1.bf16.msra.mxu0 %v288
    %358 = vmatprep.subr.bf16.mxu0 0
    %359 = vmatpush1.bf16.msra.mxu0 0
    %360 = vmatprep.subr.bf16.mxu0 0
    %361 = vmatpush1.bf16.msra.mxu0 0
    %362 = vmatprep.subr.bf16.mxu0 0
    %363 = vmatpush1.bf16.msra.mxu0 0
    %364 = vmatprep.subr.bf16.mxu0 0
    %365 = vmatpush1.bf16.msra.mxu0 0
    %366 = vmatprep.subr.bf16.mxu0 0
    %367 = vmatpush1.bf16.msra.mxu0 0
    %368 = vmatprep.subr.bf16.mxu0 0
    %369 = vmatpush1.bf16.msra.mxu0 0
    %370 = vmatprep.subr.bf16.mxu0 0
    %371 = vmatpush1.bf16.msra.mxu0 0
    %372 = vmatprep.subr.bf16.mxu0 0
    %373 = vmatpush1.bf16.msra.mxu0 0
    %374 = vmatprep.mubr.bf16.mxu0 0
    %375 = vmatmul.mubr.bf16.gmra.mrb[0].mxu0 %v53
    %v376 = vpop.f32.mrb[0].mxu0
    %v377 = vadd.f32 0.0, %v376
    %v378 = vpop.f32.mrb[0].mxu0
    %v379 = vadd.f32 0.0, %v378
    %v380 = vpop.f32.mrb[0].mxu0
    %v381 = vadd.f32 0.0, %v380
    %v382 = vpop.f32.mrb[0].mxu0
    %v383 = vadd.f32 0.0, %v382
    %384 = vdwg.mxu0
    %385 = vmatprep.subr.bf16.mxu0 %v249
    %386 = vmatpush1.bf16.msra.mxu0 %v248
    %387 = vmatprep.subr.bf16.mxu0 %v255
    %388 = vmatpush1.bf16.msra.mxu0 %v254
    %389 = vmatprep.subr.bf16.mxu0 %v261
    %390 = vmatpush1.bf16.msra.mxu0 %v260
    %391 = vmatprep.subr.bf16.mxu0 %v267
    %392 = vmatpush1.bf16.msra.mxu0 %v266
    %393 = vmatprep.subr.bf16.mxu0 %v273
    %394 = vmatpush1.bf16.msra.mxu0 %v272
    %395 = vmatprep.subr.bf16.mxu0 %v279
    %396 = vmatpush1.bf16.msra.mxu0 %v278
    %397 = vmatprep.subr.bf16.mxu0 %v285
    %398 = vmatpush1.bf16.msra.mxu0 %v284
    %399 = vmatprep.subr.bf16.mxu0 %v291
    %400 = vmatpush1.bf16.msra.mxu0 %v290
    %401 = vmatprep.subr.bf16.mxu0 0
    %402 = vmatpush1.bf16.msra.mxu0 0
    %403 = vmatprep.subr.bf16.mxu0 0
    %404 = vmatpush1.bf16.msra.mxu0 0
    %405 = vmatprep.subr.bf16.mxu0 0
    %406 = vmatpush1.bf16.msra.mxu0 0
    %407 = vmatprep.subr.bf16.mxu0 0
    %408 = vmatpush1.bf16.msra.mxu0 0
    %409 = vmatprep.subr.bf16.mxu0 0
    %410 = vmatpush1.bf16.msra.mxu0 0
    %411 = vmatprep.subr.bf16.mxu0 0
    %412 = vmatpush1.bf16.msra.mxu0 0
    %413 = vmatprep.subr.bf16.mxu0 0
    %414 = vmatpush1.bf16.msra.mxu0 0
    %415 = vmatprep.subr.bf16.mxu0 0
    %416 = vmatpush1.bf16.msra.mxu0 0
    %417 = vmatprep.mubr.bf16.mxu0 0
    %418 = vmatmul.mubr.bf16.gmra.mrb[0].mxu0 %v53
    %v419 = vpop.f32.mrb[0].mxu0
    %v420 = vadd.f32 0.0, %v419
    %v421 = vpop.f32.mrb[0].mxu0
    %v422 = vadd.f32 0.0, %v421
    %v423 = vpop.f32.mrb[0].mxu0
    %v424 = vadd.f32 0.0, %v423
    %v425 = vpop.f32.mrb[0].mxu0
    %v426 = vadd.f32 0.0, %v425
    %427 = vdwg.mxu0
    %428 = vmatprep.subr.bf16.mxu0 %v251
    %429 = vmatpush1.bf16.msra.mxu0 %v250
    %430 = vmatprep.subr.bf16.mxu0 %v257
    %431 = vmatpush1.bf16.msra.mxu0 %v256
    %432 = vmatprep.subr.bf16.mxu0 %v263
    %433 = vmatpush1.bf16.msra.mxu0 %v262
    %434 = vmatprep.subr.bf16.mxu0 %v269
    %435 = vmatpush1.bf16.msra.mxu0 %v268
    %436 = vmatprep.subr.bf16.mxu0 %v275
    %437 = vmatpush1.bf16.msra.mxu0 %v274
    %438 = vmatprep.subr.bf16.mxu0 %v281
    %439 = vmatpush1.bf16.msra.mxu0 %v280
    %440 = vmatprep.subr.bf16.mxu0 %v287
    %441 = vmatpush1.bf16.msra.mxu0 %v286
    %442 = vmatprep.subr.bf16.mxu0 %v293
    %443 = vmatpush1.bf16.msra.mxu0 %v292
    %444 = vmatprep.subr.bf16.mxu0 0
    %445 = vmatpush1.bf16.msra.mxu0 0
    %446 = vmatprep.subr.bf16.mxu0 0
    %447 = vmatpush1.bf16.msra.mxu0 0
    %448 = vmatprep.subr.bf16.mxu0 0
    %449 = vmatpush1.bf16.msra.mxu0 0
    %450 = vmatprep.subr.bf16.mxu0 0
    %451 = vmatpush1.bf16.msra.mxu0 0
    %452 = vmatprep.subr.bf16.mxu0 0
    %453 = vmatpush1.bf16.msra.mxu0 0
    %454 = vmatprep.subr.bf16.mxu0 0
    %455 = vmatpush1.bf16.msra.mxu0 0
    %456 = vmatprep.subr.bf16.mxu0 0
    %457 = vmatpush1.bf16.msra.mxu0 0
    %458 = vmatprep.subr.bf16.mxu0 0
    %459 = vmatpush1.bf16.msra.mxu0 0
    %460 = vmatprep.mubr.bf16.mxu0 0
    %461 = vmatmul.mubr.bf16.gmra.mrb[0].mxu0 %v53
    %v462 = vpop.f32.mrb[0].mxu0
    %v463 = vadd.f32 0.0, %v462
    %v464 = vpop.f32.mrb[0].mxu0
    %v465 = vadd.f32 0.0, %v464
    %v466 = vpop.f32.mrb[0].mxu0
    %v467 = vadd.f32 0.0, %v466
    %v468 = vpop.f32.mrb[0].mxu0
    %v469 = vadd.f32 0.0, %v468
    %470 = vdwg.mxu0
    %v471 = vxor.u32 %v377, 2147483648
    %v472 = vxor.u32 %v379, 2147483648
    %v473 = vxor.u32 %v420, 2147483648
    %v474 = vxor.u32 %v381, 2147483648
    %v475 = vxor.u32 %v383, 2147483648
    %v476 = vxor.u32 %v424, 2147483648
    %v477 = vmul.f32 %v471, 1.442695
    %v478 = vpow.pop %v477
    %v479 = vmul.f32 %v472, 1.442695
    %v480 = vpow.pop %v479
    %v481 = vmul.f32 %v473, 1.442695
    %v482 = vpow.pop %v481
    %v483 = vmul.f32 %v474, 1.442695
    %v484 = vpow.pop %v483
    %v485 = vmul.f32 %v475, 1.442695
    %v486 = vpow.pop %v485
    %v487 = vmul.f32 %v476, 1.442695
    %v488 = vpow.pop %v487
    %v489 = vadd.f32 %v478, 1.0
    %v490 = vadd.f32 %v480, 1.0
    %v491 = vadd.f32 %v482, 1.0
    %v492 = vadd.f32 %v484, 1.0
    %v493 = vadd.f32 %v486, 1.0
    %v494 = vadd.f32 %v488, 1.0
    %v495 = vrcp.pop %v489
    %v496 = vmul.f32 1.0, %v495
    %v497 = vrcp.pop %v490
    %v498 = vmul.f32 1.0, %v497
    %v499 = vrcp.pop %v491
    %v500 = vmul.f32 1.0, %v499
    %v501 = vrcp.pop %v492
    %v502 = vmul.f32 1.0, %v501
    %v503 = vrcp.pop %v493
    %v504 = vmul.f32 1.0, %v503
    %v505 = vrcp.pop %v494
    %v506 = vmul.f32 1.0, %v505
    %v507 = vmul.f32 %v377, %v496
    %v508 = vmul.f32 %v379, %v498
    %v509 = vmul.f32 %v420, %v500
    %v510 = vmul.f32 %v381, %v502
    %v511 = vmul.f32 %v383, %v504
    %v512 = vmul.f32 %v424, %v506
    %v513 = vmul.f32 %v507, %v422
    %v514 = vmul.f32 %v508, %v463
    %v515 = vmul.f32 %v509, %v465
    %v516 = vmul.f32 %v510, %v426
    %v517 = vmul.f32 %v511, %v467
    %v518 = vmul.f32 %v512, %v469
    %v519 = vld [vmem:[#allocation3] sm:$0xff]
    %v520 = vld [vmem:[#allocation3 + $0x8] sm:$0xff]
    %v521 = vpack.c.bf16 %v516, %v513
    %v522 = vpack.c.bf16 %v517, %v514
    %v523 = vpack.c.bf16 %v518, %v515
    %v524 = vld [vmem:[%s3] sm:$0xf]
    %v525 = vld [vmem:[%s3 + $0x4] sm:$0xf]
    %v526 = vld [vmem:[%s3 + $0x8] sm:$0xf]
    %v527 = vld [vmem:[%s3 + $0xc] sm:$0xf]
    %v528 = vld [vmem:[%s3 + $0x10] sm:$0xf]
    %v529 = vld [vmem:[%s3 + $0x14] sm:$0xf]
    %v530 = vld [vmem:[%s3 + $0x18] sm:$0xf]
    %v531 = vld [vmem:[%s3 + $0x1c] sm:$0xf]
    %v532 = vld [vmem:[%s3 + $0x20] sm:$0xf]
    %v533 = vld [vmem:[%s3 + $0x24] sm:$0xf]
    %v534 = vld [vmem:[%s3 + $0x28] sm:$0xf]
    %v535 = vld [vmem:[%s3 + $0x2c] sm:$0xf]
    %v536 = vld [vmem:[%s3 + $0x30] sm:$0xf]
    %v537 = vld [vmem:[%s3 + $0x34] sm:$0xf]
    %v538 = vld [vmem:[%s3 + $0x38] sm:$0xf]
    %v539 = vld [vmem:[%s3 + $0x3c] sm:$0xf]
    %v540 = vld [vmem:[%s3 + $0x40] sm:$0xf]
    %v541 = vld [vmem:[%s3 + $0x44] sm:$0xf]
    %v542 = vld [vmem:[%s3 + $0x48] sm:$0xf]
    %v543 = vld [vmem:[%s3 + $0x4c] sm:$0xf]
    %v544 = vld [vmem:[%s3 + $0x50] sm:$0xf]
    %v545 = vld [vmem:[%s3 + $0x54] sm:$0xf]
    %v546 = vld [vmem:[%s3 + $0x58] sm:$0xf]
    %v547 = vld [vmem:[%s3 + $0x5c] sm:$0xf]
    %v548 = vld [vmem:[%s3 + $0x60] sm:$0xf]
    %v549 = vld [vmem:[%s3 + $0x64] sm:$0xf]
    %v550 = vld [vmem:[%s3 + $0x68] sm:$0xf]
    %v551 = vld [vmem:[%s3 + $0x6c] sm:$0xf]
    %v552 = vld [vmem:[%s3 + $0x70] sm:$0xf]
    %v553 = vld [vmem:[%s3 + $0x74] sm:$0xf]
    %v554 = vld [vmem:[%s3 + $0x78] sm:$0xf]
    %v555 = vld [vmem:[%s3 + $0x7c] sm:$0xf]
    %v556 = vld [vmem:[%s3 + $0x80] sm:$0xf]
    %v557 = vld [vmem:[%s3 + $0x84] sm:$0xf]
    %v558 = vld [vmem:[%s3 + $0x88] sm:$0xf]
    %v559 = vld [vmem:[%s3 + $0x8c] sm:$0xf]
    %v560 = vld [vmem:[%s3 + $0x90] sm:$0xf]
    %v561 = vld [vmem:[%s3 + $0x94] sm:$0xf]
    %v562 = vld [vmem:[%s3 + $0x98] sm:$0xf]
    %v563 = vld [vmem:[%s3 + $0x9c] sm:$0xf]
    %v564 = vld [vmem:[%s3 + $0xa0] sm:$0xf]
    %v565 = vld [vmem:[%s3 + $0xa4] sm:$0xf]
    %v566 = vld [vmem:[%s3 + $0xa8] sm:$0xf]
    %v567 = vld [vmem:[%s3 + $0xac] sm:$0xf]
    %v568 = vld [vmem:[%s3 + $0xb0] sm:$0xf]
    %v569 = vld [vmem:[%s3 + $0xb4] sm:$0xf]
    %v570 = vld [vmem:[%s3 + $0xb8] sm:$0xf]
    %v571 = vld [vmem:[%s3 + $0xbc] sm:$0xf]
    %v620 = vunpack.c.l.b16 %v524
    %v621 = vunpack.c.l.b16 %v525
    %v622 = vunpack.c.l.b16 %v526
    %v623 = vunpack.c.l.b16 %v527
    %v624 = vunpack.c.l.b16 %v528
    %v625 = vunpack.c.l.b16 %v529
    %v626 = vunpack.c.l.b16 %v530
    %v627 = vunpack.c.l.b16 %v531
    %v628 = vunpack.c.l.b16 %v532
    %v629 = vunpack.c.l.b16 %v533
    %v630 = vunpack.c.l.b16 %v534
    %v631 = vunpack.c.l.b16 %v535
    %v632 = vunpack.c.l.b16 %v536
    %v633 = vunpack.c.l.b16 %v537
    %v634 = vunpack.c.l.b16 %v538
    %v635 = vunpack.c.l.b16 %v539
    %v636 = vunpack.c.l.b16 %v540
    %v637 = vunpack.c.l.b16 %v541
    %v638 = vunpack.c.l.b16 %v542
    %v639 = vunpack.c.l.b16 %v543
    %v640 = vunpack.c.l.b16 %v544
    %v641 = vunpack.c.l.b16 %v545
    %v642 = vunpack.c.l.b16 %v546
    %v643 = vunpack.c.l.b16 %v547
    %v644 = vunpack.c.l.b16 %v548
    %v645 = vunpack.c.l.b16 %v549
    %v646 = vunpack.c.l.b16 %v550
    %v647 = vunpack.c.l.b16 %v551
    %v648 = vunpack.c.l.b16 %v552
    %v649 = vunpack.c.l.b16 %v553
    %v650 = vunpack.c.l.b16 %v554
    %v651 = vunpack.c.l.b16 %v555
    %v652 = vunpack.c.l.b16 %v556
    %v653 = vunpack.c.l.b16 %v557
    %v654 = vunpack.c.l.b16 %v558
    %v655 = vunpack.c.l.b16 %v559
    %v656 = vunpack.c.l.b16 %v560
    %v657 = vunpack.c.l.b16 %v561
    %v658 = vunpack.c.l.b16 %v562
    %v659 = vunpack.c.l.b16 %v563
    %v660 = vunpack.c.l.b16 %v564
    %v661 = vunpack.c.l.b16 %v565
    %v662 = vunpack.c.l.b16 %v566
    %v663 = vunpack.c.l.b16 %v567
    %v664 = vunpack.c.l.b16 %v568
    %v665 = vunpack.c.l.b16 %v569
    %v666 = vunpack.c.l.b16 %v570
    %v667 = vunpack.c.l.b16 %v571
    %v668 = vpack.c.b16 %v621, %v620
    %v669 = vpack.c.b16 %v623, %v622
    %v670 = vpack.c.b16 %v625, %v624
    %v671 = vpack.c.b16 %v627, %v626
    %v672 = vpack.c.b16 %v629, %v628
    %v673 = vpack.c.b16 %v631, %v630
    %v674 = vpack.c.b16 %v633, %v632
    %v675 = vpack.c.b16 %v635, %v634
    %v676 = vpack.c.b16 %v637, %v636
    %v677 = vpack.c.b16 %v639, %v638
    %v678 = vpack.c.b16 %v641, %v640
    %v679 = vpack.c.b16 %v643, %v642
    %v680 = vpack.c.b16 %v645, %v644
    %v681 = vpack.c.b16 %v647, %v646
    %v682 = vpack.c.b16 %v649, %v648
    %v683 = vpack.c.b16 %v651, %v650
    %v684 = vpack.c.b16 %v653, %v652
    %v685 = vpack.c.b16 %v655, %v654
    %v686 = vpack.c.b16 %v657, %v656
    %v687 = vpack.c.b16 %v659, %v658
    %v688 = vpack.c.b16 %v661, %v660
    %v689 = vpack.c.b16 %v663, %v662
    %v690 = vpack.c.b16 %v665, %v664
    %v691 = vpack.c.b16 %v667, %v666
    %716 = vmatprep.subr.bf16.mxu0 0
    %717 = vmatpush1.bf16.msra.mxu0 %v668
    %718 = vmatprep.subr.bf16.mxu0 0
    %719 = vmatpush1.bf16.msra.mxu0 %v669
    %720 = vmatprep.subr.bf16.mxu0 0
    %721 = vmatpush1.bf16.msra.mxu0 %v670
    %722 = vmatprep.subr.bf16.mxu0 0
    %723 = vmatpush1.bf16.msra.mxu0 %v671
    %724 = vmatprep.subr.bf16.mxu0 0
    %725 = vmatpush1.bf16.msra.mxu0 %v672
    %726 = vmatprep.subr.bf16.mxu0 0
    %727 = vmatpush1.bf16.msra.mxu0 %v673
    %728 = vmatprep.subr.bf16.mxu0 0
    %729 = vmatpush1.bf16.msra.mxu0 %v674
    %730 = vmatprep.subr.bf16.mxu0 0
    %731 = vmatpush1.bf16.msra.mxu0 %v675
    %732 = vmatprep.subr.bf16.mxu0 0
    %733 = vmatpush1.bf16.msra.mxu0 %v676
    %734 = vmatprep.subr.bf16.mxu0 0
    %735 = vmatpush1.bf16.msra.mxu0 %v677
    %736 = vmatprep.subr.bf16.mxu0 0
    %737 = vmatpush1.bf16.msra.mxu0 %v678
    %738 = vmatprep.subr.bf16.mxu0 0
    %739 = vmatpush1.bf16.msra.mxu0 %v679
    %740 = vmatprep.subr.bf16.mxu0 0
    %741 = vmatpush1.bf16.msra.mxu0 %v680
    %742 = vmatprep.subr.bf16.mxu0 0
    %743 = vmatpush1.bf16.msra.mxu0 %v681
    %744 = vmatprep.subr.bf16.mxu0 0
    %745 = vmatpush1.bf16.msra.mxu0 %v682
    %746 = vmatprep.subr.bf16.mxu0 0
    %747 = vmatpush1.bf16.msra.mxu0 %v683
    %748 = vmatprep.mubr.bf16.mxu0 %v522
    %749 = vmatmul.mubr.bf16.gmra.mrb[0].mxu0 %v521
    %v750 = vpop.f32.mrb[0].mxu0
    %v751 = vadd.f32 0.0, %v750
    %v752 = vpop.f32.mrb[0].mxu0
    %v753 = vpop.f32.mrb[0].mxu0
    %v754 = vadd.f32 0.0, %v753
    %v755 = vpop.f32.mrb[0].mxu0
    %756 = vdwg.mxu0
    %757 = vmatprep.subr.bf16.mxu0 0
    %758 = vmatpush1.bf16.msra.mxu0 %v684
    %759 = vmatprep.subr.bf16.mxu0 0
    %760 = vmatpush1.bf16.msra.mxu0 %v685
    %761 = vmatprep.subr.bf16.mxu0 0
    %762 = vmatpush1.bf16.msra.mxu0 %v686
    %763 = vmatprep.subr.bf16.mxu0 0
    %764 = vmatpush1.bf16.msra.mxu0 %v687
    %765 = vmatprep.subr.bf16.mxu0 0
    %766 = vmatpush1.bf16.msra.mxu0 %v688
    %767 = vmatprep.subr.bf16.mxu0 0
    %768 = vmatpush1.bf16.msra.mxu0 %v689
    %769 = vmatprep.subr.bf16.mxu0 0
    %770 = vmatpush1.bf16.msra.mxu0 %v690
    %771 = vmatprep.subr.bf16.mxu0 0
    %772 = vmatpush1.bf16.msra.mxu0 %v691
    %773 = vmatprep.subr.bf16.mxu0 0
    %774 = vmatpush1.bf16.msra.mxu0 0
    %775 = vmatprep.subr.bf16.mxu0 0
    %776 = vmatpush1.bf16.msra.mxu0 0
    %777 = vmatprep.subr.bf16.mxu0 0
    %778 = vmatpush1.bf16.msra.mxu0 0
    %779 = vmatprep.subr.bf16.mxu0 0
    %780 = vmatpush1.bf16.msra.mxu0 0
    %781 = vmatprep.subr.bf16.mxu0 0
    %782 = vmatpush1.bf16.msra.mxu0 0
    %783 = vmatprep.subr.bf16.mxu0 0
    %784 = vmatpush1.bf16.msra.mxu0 0
    %785 = vmatprep.subr.bf16.mxu0 0
    %786 = vmatpush1.bf16.msra.mxu0 0
    %787 = vmatprep.subr.bf16.mxu0 0
    %788 = vmatpush1.bf16.msra.mxu0 0
    %789 = vmatprep.mubr.bf16.mxu0 0
    %790 = vmatmul.mubr.bf16.gmra.mrb[0].mxu0 %v523
    %v791 = vpop.f32.mrb[0].mxu0
    %v792 = vadd.f32 %v751, %v791
    %v793 = vpop.f32.mrb[0].mxu0
    %v794 = vpop.f32.mrb[0].mxu0
    %v795 = vadd.f32 %v754, %v794
    %v796 = vpop.f32.mrb[0].mxu0
    %797 = vdwg.mxu0
    %v798 = vadd.f32 %v519, %v792
    %v799 = vadd.f32 %v520, %v795
    %800 = vst [vmem:[#allocation3] sm:$0xff] %v798
    %801 = vst [vmem:[#allocation3 + $0x8] sm:$0xff] %v799
    // Predicated region
    $region22: #{_lambda_.7} parent=1 // pred_check
      %p802 = pneg %p19
    $region23: #{_lambda_.7} parent=1 // pred_check_branch
      %804 = sbr.rel (%p802) target = $region25
    $region24: #{_lambda_.7} parent=1 // pred_region
      %v805 = vld [vmem:[#allocation3] sm:$0xff]
      %v806 = vld [vmem:[#allocation3 + $0x8] sm:$0xff]
      %v807 = vld [vmem:[%s0] sm:$0xff]
      %v808 = vld [vmem:[%s0 + $0x8] sm:$0xff]
      %v809 = vadd.f32 %v805, %v807
      %v810 = vadd.f32 %v806, %v808
      %811 = vst [vmem:[#allocation4] sm:$0xff] %v809
      %812 = vst [vmem:[#allocation4 + $0x8] sm:$0xff] %v810
    $region25: #{_lambda_.7} parent=1 // pred_fallthru
      _
    // Predicated region
    $region26: #{_lambda_.7} parent=1 // pred_check
      _
    $region27: #{_lambda_.7} parent=1 // pred_check_branch
      %814 = sbr.rel (0) target = $region29
    $region28: #{_lambda_.7} parent=1 // pred_region
      %s816 = ssub.s32 256, 256
      %817 = vsyncadd [#allocation5], %s816
      %s818 = sshll.u32 [#allocation4], 4
      %s819 = int_to_ptr.vmem [resolvable:$true] %s818
      %824 = dma.vmem_to_hbm [thread:$0]  %s819, 256, %s4, [#allocation5], 128, 128, 8
    $region29: #{_lambda_.7} parent=1 // pred_fallthru
      _
    // Predicated region
    $region30: #{_lambda_.7} parent=1 // pred_check
      _
    $region31: #{_lambda_.7} parent=1 // pred_check_branch
      %826 = sbr.rel (0) target = $region33
    $region32: #{_lambda_.7} parent=1 // pred_region
      %827 = dma.done [#allocation5], 256
    $region33: #{_lambda_.7} parent=1 // pred_fallthru
      _
    %828 = vsyncpa [#allocation5], 1

// kernel: _lambda_.5
$region0: #{_lambda_.5}
  #allocation0 [shape = 'u32[]', space=smem, size = 0x4, offset = 0x4, fixed_abs, tag = 'smem constant byte address 0x4 - core index']
  #allocation1 [shape = 'u32[144,128]{1,0:T(1,128)}', space=vmem, size = 0x12000, scoped, tag = 'internal scratch']
  #allocation2 [shape = 'f32[4,8,1]{2,1,0:T(8,128)}', space=vmem, size = 0x4000, scoped, tag = 'scratch operand']
  #allocation3 [shape = 'f32[4,8,1]{2,1,0:T(8,128)}', space=vmem, size = 0x4000, scoped, tag = 'scratch operand']
  #allocation4 [shape = 'f32[8,128]{1,0:T(8,128)}', space=vmem, size = 0x1000, scoped, tag = 'scratch operand']
  %s0 = inlined_call_operand.vmem [shape: bf16[2,8,384], index: 0, kind: input, shape index: {}, may-alias: {0,1,2}]
  %s1 = inlined_call_operand.vmem [shape: bf16[2,8,384], index: 1, kind: input, shape index: {}, may-alias: {0,1,2}]
  %s2 = inlined_call_operand.vmem [shape: bf16[2,8,384], index: 2, kind: input, shape index: {}, may-alias: {0,1,2}]
  %s3 = inlined_call_operand.vmem [shape: f32[2,8,32], index: 3, kind: input, shape index: {}, may-alias: {3,5}]
  %s4 = inlined_call_operand.vmem [shape: f32[2,8,32], index: 4, kind: input, shape index: {}, may-alias: {4,6}]
  %s5 = inlined_call_operand.vmem [shape: f32[2,8,32], index: 5, kind: input, shape index: {}, may-alias: {3,5}]
  %s6 = inlined_call_operand.vmem [shape: f32[2,8,32], index: 6, kind: input, shape index: {}, may-alias: {4,6}]
  %s7 = inlined_call_operand.vmem [shape: bf16[2,8,128], index: 7, kind: output, shape index: {}]
  %s8 = sld [smem:[#allocation0]]
  $region73: #{_lambda_.5} parent=0
    _
  %s10 = ssub.s32 1, %s8
  %s11 = scalar_select 0, %s10, %s8
  loop: start=0, step=1, limit=4
  $region2: #{_lambda_.5} parent=0 // loop_pre_header
    _
  $region3: #{_lambda_.5} parent=0 // loop_header
    %s13 = sphi 0, %s17
    %p14 = scmp.ge.s32.totalorder %s13, 4
    %s20 = sphi 0, %s46
    %s21 = sphi 0, %s42
    %s22 = sphi 0, %s38
    %s23 = sphi 0, %s34
    %s24 = sphi 0, %s20
    %s25 = sphi 0, %s21
    %s26 = sphi 0, %s22
    %s27 = sphi 0, %s23
    %s28 = sphi 0, %s24
    %s29 = sphi 0, %s25
    %s30 = sphi 0, %s26
    %s31 = sphi 0, %s27
    %s53 = sphi 0, %s55
    %s56 = sphi 0, %s53
    %s57 = sphi 0, %s56
    %s73 = sphi 0, %s57
    %s85 = sphi 0, %s87
    %s88 = sphi 0, %s85
    %s89 = sphi 0, %s88
    %s105 = sphi 0, %s89
    %s117 = sphi 0, %s119
    %s120 = sphi 0, %s117
    %s121 = sphi 0, %s120
    %s137 = sphi 0, %s121
    %s145 = sphi 0, %s147
    %s148 = sphi 0, %s145
    %s149 = sphi 0, %s148
    %s165 = sphi 0, %s149
    %s173 = sphi 0, %s175
    %s176 = sphi 0, %s173
    %s177 = sphi 0, %s176
    %s193 = sphi 0, %s177
    %s201 = sphi 0, %s203
    %s204 = sphi 0, %s201
    %s205 = sphi 0, %s204
    %s221 = sphi 0, %s205
    %s229 = sphi 0, %s231
    %s232 = sphi 0, %s229
    %s233 = sphi 0, %s232
    %s249 = sphi 0, %s233
    %s259 = sphi 0, %s261
    %s262 = sphi 0, %s259
    %s263 = sphi 0, %s262
    %s279 = sphi 0, %s263
  $region4: #{_lambda_.5} parent=0 // loop_header_branch
    %16 = sbr.rel (%p14) target = $region8
  $region5: #{_lambda_.5} parent=0 // loop_body
    %s18 = ssub.s32 %s13, 1
    %s19 = ssub.s32 %s13, 2
    %s32 = sadd.s32 1, %s23
    %p33 = scmp.ge.s32.totalorder %s32, 1
    %s34 = scalar_select %p33, 0, %s32
    %s35 = sadd.s32 1, %s22
    %s36 = scalar_select %p33, %s35, %s22
    %p37 = scmp.ge.s32.totalorder %s36, 1
    %s38 = scalar_select %p37, 0, %s36
    %s39 = sadd.s32 1, %s21
    %s40 = scalar_select %p37, %s39, %s21
    %p41 = scmp.ge.s32.totalorder %s40, 1
    %s42 = scalar_select %p41, 0, %s40
    %s43 = sadd.s32 1, %s20
    %s44 = scalar_select %p41, %s43, %s20
    %p45 = scmp.ge.s32.totalorder %s44, 2
    %s46 = scalar_select %p45, 0, %s44
    %s47 = ssub.s32 %s20, %s46
    %s48 = ssub.s32 %s22, %s38
    %s49 = sor.u32 %s47, %s48
    %s50 = ssub.s32 %s21, %s42
    %s51 = sor.u32 %s49, %s50
    %p52 = scmp.eq.s32.totalorder %s51, 0
    %s54 = sadd.s32 %s53, 1
    %s55 = scalar_select %p52, %s53, %s54
    %p58 = pneg %p52
    %p59 = scmp.eq.s32.totalorder %s13, 1
    %p60 = por %p58, %p59
    %p61 = scmp.ne.s32.totalorder %s53, %s56
    %p62 = scmp.eq.s32.totalorder %s13, 0
    %p63 = por %p61, %p62
    %p64 = scmp.ne.s32.totalorder %s53, %s56
    %p65 = scmp.eq.s32.totalorder %s18, 1
    %p66 = por %p64, %p65
    %p67 = scmp.ne.s32.totalorder %s56, %s57
    %p68 = scmp.eq.s32.totalorder %s18, 0
    %p69 = por %p67, %p68
    %p70 = scmp.ne.s32.totalorder %s56, %s57
    %p71 = scmp.eq.s32.totalorder %s19, 1
    %p72 = por %p70, %p71
    %p74 = scmp.ne.s32.totalorder %s57, %s73
    %p75 = scmp.eq.s32.totalorder %s19, 0
    %p76 = por %p74, %p75
    %s77 = sadd.s32 %s21, 1
    %s78 = sadd.s32 %s42, 1
    %s79 = ssub.s32 %s20, %s46
    %s80 = ssub.s32 %s23, %s34
    %s81 = sor.u32 %s79, %s80
    %s82 = ssub.s32 %s77, %s78
    %s83 = sor.u32 %s81, %s82
    %p84 = scmp.eq.s32.totalorder %s83, 0
    %s86 = sadd.s32 %s85, 1
    %s87 = scalar_select %p84, %s85, %s86
    %p90 = pneg %p84
    %p91 = scmp.eq.s32.totalorder %s13, 1
    %p92 = por %p90, %p91
    %p93 = scmp.ne.s32.totalorder %s85, %s88
    %p94 = scmp.eq.s32.totalorder %s13, 0
    %p95 = por %p93, %p94
    %p96 = scmp.ne.s32.totalorder %s85, %s88
    %p97 = scmp.eq.s32.totalorder %s18, 1
    %p98 = por %p96, %p97
    %p99 = scmp.ne.s32.totalorder %s88, %s89
    %p100 = scmp.eq.s32.totalorder %s18, 0
    %p101 = por %p99, %p100
    %p102 = scmp.ne.s32.totalorder %s88, %s89
    %p103 = scmp.eq.s32.totalorder %s19, 1
    %p104 = por %p102, %p103
    %p106 = scmp.ne.s32.totalorder %s89, %s105
    %p107 = scmp.eq.s32.totalorder %s19, 0
    %p108 = por %p106, %p107
    %s109 = sadd.s32 %s21, 2
    %s110 = sadd.s32 %s42, 2
    %s111 = ssub.s32 %s20, %s46
    %s112 = ssub.s32 %s23, %s34
    %s113 = sor.u32 %s111, %s112
    %s114 = ssub.s32 %s109, %s110
    %s115 = sor.u32 %s113, %s114
    %p116 = scmp.eq.s32.totalorder %s115, 0
    %s118 = sadd.s32 %s117, 1
    %s119 = scalar_select %p116, %s117, %s118
    %p122 = pneg %p116
    %p123 = scmp.eq.s32.totalorder %s13, 1
    %p124 = por %p122, %p123
    %p125 = scmp.ne.s32.totalorder %s117, %s120
    %p126 = scmp.eq.s32.totalorder %s13, 0
    %p127 = por %p125, %p126
    %p128 = scmp.ne.s32.totalorder %s117, %s120
    %p129 = scmp.eq.s32.totalorder %s18, 1
    %p130 = por %p128, %p129
    %p131 = scmp.ne.s32.totalorder %s120, %s121
    %p132 = scmp.eq.s32.totalorder %s18, 0
    %p133 = por %p131, %p132
    %p134 = scmp.ne.s32.totalorder %s120, %s121
    %p135 = scmp.eq.s32.totalorder %s19, 1
    %p136 = por %p134, %p135
    %p138 = scmp.ne.s32.totalorder %s121, %s137
    %p139 = scmp.eq.s32.totalorder %s19, 0
    %p140 = por %p138, %p139
    %s141 = ssub.s32 %s20, %s46
    %s142 = ssub.s32 %s22, %s38
    %s143 = sor.u32 %s141, %s142
    %p144 = scmp.eq.s32.totalorder %s143, 0
    %s146 = sadd.s32 %s145, 1
    %s147 = scalar_select %p144, %s145, %s146
    %p150 = pneg %p144
    %p151 = scmp.eq.s32.totalorder %s13, 1
    %p152 = por %p150, %p151
    %p153 = scmp.ne.s32.totalorder %s145, %s148
    %p154 = scmp.eq.s32.totalorder %s13, 0
    %p155 = por %p153, %p154
    %p156 = scmp.ne.s32.totalorder %s145, %s148
    %p157 = scmp.eq.s32.totalorder %s18, 1
    %p158 = por %p156, %p157
    %p159 = scmp.ne.s32.totalorder %s148, %s149
    %p160 = scmp.eq.s32.totalorder %s18, 0
    %p161 = por %p159, %p160
    %p162 = scmp.ne.s32.totalorder %s148, %s149
    %p163 = scmp.eq.s32.totalorder %s19, 1
    %p164 = por %p162, %p163
    %p166 = scmp.ne.s32.totalorder %s149, %s165
    %p167 = scmp.eq.s32.totalorder %s19, 0
    %p168 = por %p166, %p167
    %s169 = ssub.s32 %s20, %s46
    %s170 = ssub.s32 %s22, %s38
    %s171 = sor.u32 %s169, %s170
    %p172 = scmp.eq.s32.totalorder %s171, 0
    %s174 = sadd.s32 %s173, 1
    %s175 = scalar_select %p172, %s173, %s174
    %p178 = pneg %p172
    %p179 = scmp.eq.s32.totalorder %s13, 1
    %p180 = por %p178, %p179
    %p181 = scmp.ne.s32.totalorder %s173, %s176
    %p182 = scmp.eq.s32.totalorder %s13, 0
    %p183 = por %p181, %p182
    %p184 = scmp.ne.s32.totalorder %s173, %s176
    %p185 = scmp.eq.s32.totalorder %s18, 1
    %p186 = por %p184, %p185
    %p187 = scmp.ne.s32.totalorder %s176, %s177
    %p188 = scmp.eq.s32.totalorder %s18, 0
    %p189 = por %p187, %p188
    %p190 = scmp.ne.s32.totalorder %s176, %s177
    %p191 = scmp.eq.s32.totalorder %s19, 1
    %p192 = por %p190, %p191
    %p194 = scmp.ne.s32.totalorder %s177, %s193
    %p195 = scmp.eq.s32.totalorder %s19, 0
    %p196 = por %p194, %p195
    %s197 = ssub.s32 %s20, %s46
    %s198 = ssub.s32 %s23, %s34
    %s199 = sor.u32 %s197, %s198
    %p200 = scmp.eq.s32.totalorder %s199, 0
    %s202 = sadd.s32 %s201, 1
    %s203 = scalar_select %p200, %s201, %s202
    %p206 = pneg %p200
    %p207 = scmp.eq.s32.totalorder %s13, 1
    %p208 = por %p206, %p207
    %p209 = scmp.ne.s32.totalorder %s201, %s204
    %p210 = scmp.eq.s32.totalorder %s13, 0
    %p211 = por %p209, %p210
    %p212 = scmp.ne.s32.totalorder %s201, %s204
    %p213 = scmp.eq.s32.totalorder %s18, 1
    %p214 = por %p212, %p213
    %p215 = scmp.ne.s32.totalorder %s204, %s205
    %p216 = scmp.eq.s32.totalorder %s18, 0
    %p217 = por %p215, %p216
    %p218 = scmp.ne.s32.totalorder %s204, %s205
    %p219 = scmp.eq.s32.totalorder %s19, 1
    %p220 = por %p218, %p219
    %p222 = scmp.ne.s32.totalorder %s205, %s221
    %p223 = scmp.eq.s32.totalorder %s19, 0
    %p224 = por %p222, %p223
    %s225 = ssub.s32 %s20, %s46
    %s226 = ssub.s32 %s23, %s34
    %s227 = sor.u32 %s225, %s226
    %p228 = scmp.eq.s32.totalorder %s227, 0
    %s230 = sadd.s32 %s229, 1
    %s231 = scalar_select %p228, %s229, %s230
    %p234 = pneg %p228
    %p235 = scmp.eq.s32.totalorder %s13, 1
    %p236 = por %p234, %p235
    %p237 = scmp.ne.s32.totalorder %s229, %s232
    %p238 = scmp.eq.s32.totalorder %s13, 0
    %p239 = por %p237, %p238
    %p240 = scmp.ne.s32.totalorder %s229, %s232
    %p241 = scmp.eq.s32.totalorder %s18, 1
    %p242 = por %p240, %p241
    %p243 = scmp.ne.s32.totalorder %s232, %s233
    %p244 = scmp.eq.s32.totalorder %s18, 0
    %p245 = por %p243, %p244
    %p246 = scmp.ne.s32.totalorder %s232, %s233
    %p247 = scmp.eq.s32.totalorder %s19, 1
    %p248 = por %p246, %p247
    %p250 = scmp.ne.s32.totalorder %s233, %s249
    %p251 = scmp.eq.s32.totalorder %s19, 0
    %p252 = por %p250, %p251
    %s253 = ssub.s32 %s20, %s46
    %s254 = ssub.s32 %s22, %s38
    %s255 = sor.u32 %s253, %s254
    %s256 = ssub.s32 %s21, %s42
    %s257 = sor.u32 %s255, %s256
    %p258 = scmp.eq.s32.totalorder %s257, 0
    %s260 = sadd.s32 %s259, 1
    %s261 = scalar_select %p258, %s259, %s260
    %p264 = pneg %p258
    %p265 = scmp.eq.s32.totalorder %s13, 1
    %p266 = por %p264, %p265
    %p267 = scmp.ne.s32.totalorder %s259, %s262
    %p268 = scmp.eq.s32.totalorder %s13, 0
    %p269 = por %p267, %p268
    %p270 = scmp.ne.s32.totalorder %s259, %s262
    %p271 = scmp.eq.s32.totalorder %s18, 1
    %p272 = por %p270, %p271
    %p273 = scmp.ne.s32.totalorder %s262, %s263
    %p274 = scmp.eq.s32.totalorder %s18, 0
    %p275 = por %p273, %p274
    %p276 = scmp.ne.s32.totalorder %s262, %s263
    %p277 = scmp.eq.s32.totalorder %s19, 1
    %p278 = por %p276, %p277
    %p280 = scmp.ne.s32.totalorder %s263, %s279
    %p281 = scmp.eq.s32.totalorder %s19, 0
    %p282 = por %p280, %p281
    %p283 = scmp.le.s32.totalorder 1, %s13
    %p284 = scmp.lt.s32.totalorder %s13, 3
    %p285 = pnand %p283, %p284
    %p286 = pneg %p285
    // Predicated region
    $region9: #{_lambda_.5} parent=5 // pred_check
      _
    $region10: #{_lambda_.5} parent=5 // pred_check_branch
      %288 = sbr.rel (%p285) target = $region12
    $region11: #{_lambda_.5} parent=5 // pred_region
      %s289 = ssub.s32 %s13, 1
    $region12: #{_lambda_.5} parent=5 // pred_fallthru
      _
    %p290 = scmp.lt.s32.totalorder %s13, 2
    // Predicated region
    $region13: #{_lambda_.5} parent=5 // pred_check
      %p291 = pneg %p290
    $region14: #{_lambda_.5} parent=5 // pred_check_branch
      %293 = sbr.rel (%p291) target = $region16
    $region15: #{_lambda_.5} parent=5 // pred_region
      // Predicated region
      $region17: #{_lambda_.5} parent=15 // pred_check
        %p294 = pneg %p63
      $region18: #{_lambda_.5} parent=15 // pred_check_branch
        %296 = sbr.rel (%p294) target = $region20
      $region19: #{_lambda_.5} parent=15 // pred_region
        %p297 = scmp.lt.s32.totalorder %s20, 1
        %s298 = scalar_select %p297, %s20, 1
        %p299 = scmp.lt.s32.totalorder %s22, 0
        %s300 = scalar_select %p299, %s22, 0
        %p301 = scmp.lt.s32.totalorder %s21, 2
        %s302 = scalar_select %p301, %s21, 2
        %s303 = smul.addr %s300, 3
        %s304 = sadd.s32 %s302, %s303
        %s305 = smul.addr %s298, 3
        %s306 = sadd.s32 %s304, %s305
        %s307 = smul.addr %s306, 4
        %s308 = scalar_lea.vmem %s0, %s307
      $region20: #{_lambda_.5} parent=15 // pred_fallthru
        _
      // Predicated region
      $region21: #{_lambda_.5} parent=15 // pred_check
        %p309 = pneg %p95
      $region22: #{_lambda_.5} parent=15 // pred_check_branch
        %311 = sbr.rel (%p309) target = $region24
      $region23: #{_lambda_.5} parent=15 // pred_region
        %s312 = sadd.s32 %s21, 1
        %p313 = scmp.lt.s32.totalorder %s20, 1
        %s314 = scalar_select %p313, %s20, 1
        %p315 = scmp.lt.s32.totalorder %s23, 0
        %s316 = scalar_select %p315, %s23, 0
        %p317 = scmp.lt.s32.totalorder %s312, 2
        %s318 = scalar_select %p317, %s312, 2
        %s319 = smul.addr %s316, 3
        %s320 = sadd.s32 %s318, %s319
        %s321 = smul.addr %s314, 3
        %s322 = sadd.s32 %s320, %s321
        %s323 = smul.addr %s322, 4
        %s324 = scalar_lea.vmem %s1, %s323
        %s325 = sadd.s32 %s21, 1
      $region24: #{_lambda_.5} parent=15 // pred_fallthru
        _
      // Predicated region
      $region25: #{_lambda_.5} parent=15 // pred_check
        %p326 = pneg %p127
      $region26: #{_lambda_.5} parent=15 // pred_check_branch
        %328 = sbr.rel (%p326) target = $region28
      $region27: #{_lambda_.5} parent=15 // pred_region
        %s329 = sadd.s32 %s21, 2
        %p330 = scmp.lt.s32.totalorder %s20, 1
        %s331 = scalar_select %p330, %s20, 1
        %p332 = scmp.lt.s32.totalorder %s23, 0
        %s333 = scalar_select %p332, %s23, 0
        %p334 = scmp.lt.s32.totalorder %s329, 2
        %s335 = scalar_select %p334, %s329, 2
        %s336 = smul.addr %s333, 3
        %s337 = sadd.s32 %s335, %s336
        %s338 = smul.addr %s331, 3
        %s339 = sadd.s32 %s337, %s338
        %s340 = smul.addr %s339, 4
        %s341 = scalar_lea.vmem %s2, %s340
        %s342 = sadd.s32 %s21, 2
      $region28: #{_lambda_.5} parent=15 // pred_fallthru
        _
      // Predicated region
      $region29: #{_lambda_.5} parent=15 // pred_check
        %p343 = pneg %p155
      $region30: #{_lambda_.5} parent=15 // pred_check_branch
        %345 = sbr.rel (%p343) target = $region32
      $region31: #{_lambda_.5} parent=15 // pred_region
        %p346 = scmp.lt.s32.totalorder %s20, 1
        %s347 = scalar_select %p346, %s20, 1
        %p348 = scmp.lt.s32.totalorder %s22, 0
        %s349 = scalar_select %p348, %s22, 0
        %s350 = sadd.s32 %s349, %s347
        %s351 = smul.addr %s350, 8
        %s352 = scalar_lea.vmem %s3, %s351
      $region32: #{_lambda_.5} parent=15 // pred_fallthru
        _
      // Predicated region
      $region33: #{_lambda_.5} parent=15 // pred_check
        %p353 = pneg %p183
      $region34: #{_lambda_.5} parent=15 // pred_check_branch
        %355 = sbr.rel (%p353) target = $region36
      $region35: #{_lambda_.5} parent=15 // pred_region
        %p356 = scmp.lt.s32.totalorder %s20, 1
        %s357 = scalar_select %p356, %s20, 1
        %p358 = scmp.lt.s32.totalorder %s22, 0
        %s359 = scalar_select %p358, %s22, 0
        %s360 = sadd.s32 %s359, %s357
        %s361 = smul.addr %s360, 8
        %s362 = scalar_lea.vmem %s4, %s361
      $region36: #{_lambda_.5} parent=15 // pred_fallthru
        _
      // Predicated region
      $region37: #{_lambda_.5} parent=15 // pred_check
        %p363 = pneg %p211
      $region38: #{_lambda_.5} parent=15 // pred_check_branch
        %365 = sbr.rel (%p363) target = $region40
      $region39: #{_lambda_.5} parent=15 // pred_region
        %p366 = scmp.lt.s32.totalorder %s20, 1
        %s367 = scalar_select %p366, %s20, 1
        %p368 = scmp.lt.s32.totalorder %s23, 0
        %s369 = scalar_select %p368, %s23, 0
        %s370 = sadd.s32 %s369, %s367
        %s371 = smul.addr %s370, 8
        %s372 = scalar_lea.vmem %s5, %s371
      $region40: #{_lambda_.5} parent=15 // pred_fallthru
        _
      // Predicated region
      $region41: #{_lambda_.5} parent=15 // pred_check
        %p373 = pneg %p239
      $region42: #{_lambda_.5} parent=15 // pred_check_branch
        %375 = sbr.rel (%p373) target = $region44
      $region43: #{_lambda_.5} parent=15 // pred_region
        %p376 = scmp.lt.s32.totalorder %s20, 1
        %s377 = scalar_select %p376, %s20, 1
        %p378 = scmp.lt.s32.totalorder %s23, 0
        %s379 = scalar_select %p378, %s23, 0
        %s380 = sadd.s32 %s379, %s377
        %s381 = smul.addr %s380, 8
        %s382 = scalar_lea.vmem %s6, %s381
      $region44: #{_lambda_.5} parent=15 // pred_fallthru
        _
    $region16: #{_lambda_.5} parent=5 // pred_fallthru
      _
    %p383 = scmp.le.s32.totalorder 1, %s13
    %p384 = scmp.lt.s32.totalorder %s13, 3
    %p385 = pnand %p383, %p384
    %p386 = pneg %p385
    // Predicated region
    $region45: #{_lambda_.5} parent=5 // pred_check
      _
    $region46: #{_lambda_.5} parent=5 // pred_check_branch
      %388 = sbr.rel (%p385) target = $region48
    $region47: #{_lambda_.5} parent=5 // pred_region
      %s389 = ssub.s32 %s13, 1
      %p390 = scmp.lt.s32.totalorder %s24, 1
      %s391 = scalar_select %p390, %s24, 1
      %p392 = scmp.lt.s32.totalorder %s26, 0
      %s393 = scalar_select %p392, %s26, 0
      %p394 = scmp.lt.s32.totalorder %s25, 2
      %s395 = scalar_select %p394, %s25, 2
      %s396 = smul.addr %s393, 3
      %s397 = sadd.s32 %s395, %s396
      %s398 = smul.addr %s391, 3
      %s399 = sadd.s32 %s397, %s398
      %s400 = smul.addr %s399, 4
      %s401 = scalar_lea.vmem %s0, %s400
      %p402 = pneg %p69
      %p403 = pneg %p66
      %s404 = sadd.s32 %s25, 1
      %p405 = scmp.lt.s32.totalorder %s24, 1
      %s406 = scalar_select %p405, %s24, 1
      %p407 = scmp.lt.s32.totalorder %s27, 0
      %s408 = scalar_select %p407, %s27, 0
      %p409 = scmp.lt.s32.totalorder %s404, 2
      %s410 = scalar_select %p409, %s404, 2
      %s411 = smul.addr %s408, 3
      %s412 = sadd.s32 %s410, %s411
      %s413 = smul.addr %s406, 3
      %s414 = sadd.s32 %s412, %s413
      %s415 = smul.addr %s414, 4
      %s416 = scalar_lea.vmem %s1, %s415
      %p417 = pneg %p101
      %p418 = pneg %p98
      %s419 = sadd.s32 %s25, 2
      %p420 = scmp.lt.s32.totalorder %s24, 1
      %s421 = scalar_select %p420, %s24, 1
      %p422 = scmp.lt.s32.totalorder %s27, 0
      %s423 = scalar_select %p422, %s27, 0
      %p424 = scmp.lt.s32.totalorder %s419, 2
      %s425 = scalar_select %p424, %s419, 2
      %s426 = smul.addr %s423, 3
      %s427 = sadd.s32 %s425, %s426
      %s428 = smul.addr %s421, 3
      %s429 = sadd.s32 %s427, %s428
      %s430 = smul.addr %s429, 4
      %s431 = scalar_lea.vmem %s2, %s430
      %p432 = pneg %p133
      %p433 = pneg %p130
      %p434 = scmp.lt.s32.totalorder %s24, 1
      %s435 = scalar_select %p434, %s24, 1
      %p436 = scmp.lt.s32.totalorder %s26, 0
      %s437 = scalar_select %p436, %s26, 0
      %s438 = sadd.s32 %s437, %s435
      %s439 = smul.addr %s438, 8
      %s440 = scalar_lea.vmem %s3, %s439
      %p441 = pneg %p161
      %p442 = pneg %p158
      %p443 = scmp.lt.s32.totalorder %s24, 1
      %s444 = scalar_select %p443, %s24, 1
      %p445 = scmp.lt.s32.totalorder %s26, 0
      %s446 = scalar_select %p445, %s26, 0
      %s447 = sadd.s32 %s446, %s444
      %s448 = smul.addr %s447, 8
      %s449 = scalar_lea.vmem %s4, %s448
      %p450 = pneg %p189
      %p451 = pneg %p186
      %p452 = scmp.lt.s32.totalorder %s24, 1
      %s453 = scalar_select %p452, %s24, 1
      %p454 = scmp.lt.s32.totalorder %s27, 0
      %s455 = scalar_select %p454, %s27, 0
      %s456 = sadd.s32 %s455, %s453
      %s457 = smul.addr %s456, 8
      %s458 = scalar_lea.vmem %s5, %s457
      %p459 = pneg %p217
      %p460 = pneg %p214
      %p461 = scmp.lt.s32.totalorder %s24, 1
      %s462 = scalar_select %p461, %s24, 1
      %p463 = scmp.lt.s32.totalorder %s27, 0
      %s464 = scalar_select %p463, %s27, 0
      %s465 = sadd.s32 %s464, %s462
      %s466 = smul.addr %s465, 8
      %s467 = scalar_lea.vmem %s6, %s466
      %p468 = pneg %p245
      %p469 = pneg %p242
      %p470 = pneg %p275
      %p471 = pneg %p272
      %p472 = scmp.lt.s32.totalorder %s24, 1
      %s473 = scalar_select %p472, %s24, 1
      %p474 = scmp.lt.s32.totalorder %s26, 0
      %s475 = scalar_select %p474, %s26, 0
      %p476 = scmp.lt.s32.totalorder %s25, 0
      %s477 = scalar_select %p476, %s25, 0
      %s478 = sadd.s32 %s477, %s475
      %s479 = sadd.s32 %s478, %s473
      %s480 = smul.addr %s479, 4
      %s481 = scalar_lea.vmem %s7, %s480
      %p482 = scmp.lt.s32.totalorder %s24, 1
      %s483 = scalar_select %p482, %s24, 1
      %p484 = scmp.lt.s32.totalorder %s26, 0
      %s485 = scalar_select %p484, %s26, 0
      %p486 = scmp.lt.s32.totalorder %s25, 2
      %s487 = scalar_select %p486, %s25, 2
      %s488 = smul.addr %s485, 3
      %s489 = sadd.s32 %s487, %s488
      %s490 = smul.addr %s483, 3
      %s491 = sadd.s32 %s489, %s490
      %s492 = smul.addr %s491, 4
      %s493 = scalar_lea.vmem %s0, %s492
      %s494 = sadd.s32 %s25, 1
      %p495 = scmp.lt.s32.totalorder %s24, 1
      %s496 = scalar_select %p495, %s24, 1
      %p497 = scmp.lt.s32.totalorder %s27, 0
      %s498 = scalar_select %p497, %s27, 0
      %p499 = scmp.lt.s32.totalorder %s494, 2
      %s500 = scalar_select %p499, %s494, 2
      %s501 = smul.addr %s498, 3
      %s502 = sadd.s32 %s500, %s501
      %s503 = smul.addr %s496, 3
      %s504 = sadd.s32 %s502, %s503
      %s505 = smul.addr %s504, 4
      %s506 = scalar_lea.vmem %s1, %s505
      %s507 = sadd.s32 %s25, 1
      %s508 = sadd.s32 %s25, 2
      %p509 = scmp.lt.s32.totalorder %s24, 1
      %s510 = scalar_select %p509, %s24, 1
      %p511 = scmp.lt.s32.totalorder %s27, 0
      %s512 = scalar_select %p511, %s27, 0
      %p513 = scmp.lt.s32.totalorder %s508, 2
      %s514 = scalar_select %p513, %s508, 2
      %s515 = smul.addr %s512, 3
      %s516 = sadd.s32 %s514, %s515
      %s517 = smul.addr %s510, 3
      %s518 = sadd.s32 %s516, %s517
      %s519 = smul.addr %s518, 4
      %s520 = scalar_lea.vmem %s2, %s519
      %s521 = sadd.s32 %s25, 2
      %p522 = scmp.lt.s32.totalorder %s24, 1
      %s523 = scalar_select %p522, %s24, 1
      %p524 = scmp.lt.s32.totalorder %s26, 0
      %s525 = scalar_select %p524, %s26, 0
      %s526 = sadd.s32 %s525, %s523
      %s527 = smul.addr %s526, 8
      %s528 = scalar_lea.vmem %s3, %s527
      %p529 = scmp.lt.s32.totalorder %s24, 1
      %s530 = scalar_select %p529, %s24, 1
      %p531 = scmp.lt.s32.totalorder %s26, 0
      %s532 = scalar_select %p531, %s26, 0
      %s533 = sadd.s32 %s532, %s530
      %s534 = smul.addr %s533, 8
      %s535 = scalar_lea.vmem %s4, %s534
      %p536 = scmp.lt.s32.totalorder %s24, 1
      %s537 = scalar_select %p536, %s24, 1
      %p538 = scmp.lt.s32.totalorder %s27, 0
      %s539 = scalar_select %p538, %s27, 0
      %s540 = sadd.s32 %s539, %s537
      %s541 = smul.addr %s540, 8
      %s542 = scalar_lea.vmem %s5, %s541
      %p543 = scmp.lt.s32.totalorder %s24, 1
      %s544 = scalar_select %p543, %s24, 1
      %p545 = scmp.lt.s32.totalorder %s27, 0
      %s546 = scalar_select %p545, %s27, 0
      %s547 = sadd.s32 %s546, %s544
      %s548 = smul.addr %s547, 8
      %s549 = scalar_lea.vmem %s6, %s548
      %p550 = scmp.lt.s32.totalorder %s24, 1
      %s551 = scalar_select %p550, %s24, 1
      %p552 = scmp.lt.s32.totalorder %s26, 0
      %s553 = scalar_select %p552, %s26, 0
      %p554 = scmp.lt.s32.totalorder %s25, 0
      %s555 = scalar_select %p554, %s25, 0
      %s556 = sadd.s32 %s555, %s553
      %s557 = sadd.s32 %s556, %s551
      %s558 = smul.addr %s557, 4
      %s559 = scalar_lea.vmem %s7, %s558
      %p561 = scmp.eq.s32.totalorder %s27, 0
      // Predicated region
      $region49: #{_lambda_.5} parent=47 // pred_check
        %p562 = pneg %p561
      $region50: #{_lambda_.5} parent=47 // pred_check_branch
        %564 = sbr.rel (%p562) target = $region52
      $region51: #{_lambda_.5} parent=47 // pred_region
        %vm565 = vcmask 7168
        %566 = vst.msk [vmem:[#allocation2] sm:$0xff] %vm565, -inf
        %567 = vst.msk [vmem:[#allocation2 + $0x8] sm:$0xff] %vm565, -inf
        %568 = vst.msk [vmem:[#allocation2 + $0x10] sm:$0xff] %vm565, -inf
        %569 = vst.msk [vmem:[#allocation2 + $0x18] sm:$0xff] %vm565, -inf
        %570 = vst.msk [vmem:[#allocation3] sm:$0xff] %vm565, 0.0
        %571 = vst.msk [vmem:[#allocation3 + $0x8] sm:$0xff] %vm565, 0.0
        %572 = vst.msk [vmem:[#allocation3 + $0x10] sm:$0xff] %vm565, 0.0
        %573 = vst.msk [vmem:[#allocation3 + $0x18] sm:$0xff] %vm565, 0.0
        %574 = vst [vmem:[#allocation4] sm:$0xff] 0.0
      $region52: #{_lambda_.5} parent=47 // pred_fallthru
        _
      %s575 = smul.u32 %s27, 8
      %s576 = smul.u32 %s26, 8
      %s577 = sadd.s32 %s576, 7
      %p578 = scmp.le.s32.totalorder %s575, %s577
      // Predicated region
      $region53: #{_lambda_.5} parent=47 // pred_check
        %p579 = pneg %p578
      $region54: #{_lambda_.5} parent=47 // pred_check_branch
        %581 = sbr.rel (%p579) target = $region56
      $region55: #{_lambda_.5} parent=47 // pred_region
        %v582 = vld [vmem:[%s528] sm:$0xff]
        %v583 = vld [vmem:[%s535] sm:$0xff]
        %v584 = vld [vmem:[%s542] sm:$0xff]
        %v585 = vld [vmem:[%s549] sm:$0xff]
        %v586 = vlaneseq
        %v587 = vshrl.u32 %v586, 7
        %v588 = vstv %s576
        %v589 = vadd.s32 %v588, %v587
        %v590 = vlaneseq
        %v591 = vand.u32 %v590, 127
        %v592 = vstv %s575
        %v593 = vadd.s32 %v592, %v591
        %vm594 = vcmp.le.s32.totalorder %v593, %v589
        %v595 = vld [vmem:[%s493] sm:$0xf]
        %v596 = vunpack.c.l.bf16 %v595
        %v597 = vmul.f32 %v596, 0.17677669
        %v598 = vld [vmem:[%s506] sm:$0xf]
        %v599 = vunpack.c.l.bf16 %v598
        %v600 = vsub.f32 0.0, %v597
        %602 = vrot.lane.b32.xlu0 %v600, 112
        %v603 = vpop.permute.xlu0 %602
        %606 = vrot.lane.b32.xlu0 %v597, 16
        %v607 = vpop.permute.xlu0 %606
        %vm609 = vcmask 130048
        %v610 = vsel %vm609, %v603, %v607
        %v611 = vmul.f32 %v597, %v582
        %v612 = vmul.f32 %v610, %v583
        %v613 = vadd.f32 %v611, %v612
        %v614 = vpack.c.bf16 %v613, %v613
        %v615 = vsub.f32 0.0, %v599
        %617 = vrot.lane.b32.xlu0 %v615, 112
        %v618 = vpop.permute.xlu0 %617
        %621 = vrot.lane.b32.xlu0 %v599, 16
        %v622 = vpop.permute.xlu0 %621
        %v624 = vsel %vm609, %v618, %v622
        %v625 = vmul.f32 %v599, %v584
        %v626 = vmul.f32 %v624, %v585
        %v627 = vadd.f32 %v625, %v626
        %v628 = vpack.c.bf16 %v627, %v627
        %vm629 = vcmask 261120
        %v631 = vsel %vm629, %v614, 0
        %v634 = vsel %vm629, %v628, 0
        %636 = vmatprep.subr.bf16.mxu0 0
        %637 = vmatpush1.bf16.xpose.msra.mxu0 %v634
        %638 = vmatprep.subr.bf16.mxu0 0
        %639 = vmatpush1.bf16.xpose.msra.mxu0 0
        %640 = vmatprep.subr.bf16.mxu0 0
        %641 = vmatpush1.bf16.xpose.msra.mxu0 0
        %642 = vmatprep.subr.bf16.mxu0 0
        %643 = vmatpush1.bf16.xpose.msra.mxu0 0
        %644 = vmatprep.subr.bf16.mxu0 0
        %645 = vmatpush1.bf16.xpose.msra.mxu0 0
        %646 = vmatprep.subr.bf16.mxu0 0
        %647 = vmatpush1.bf16.xpose.msra.mxu0 0
        %648 = vmatprep.subr.bf16.mxu0 0
        %649 = vmatpush1.bf16.xpose.msra.mxu0 0
        %650 = vmatprep.subr.bf16.mxu0 0
        %651 = vmatpush1.bf16.xpose.msra.mxu0 0
        %652 = vmatprep.subr.bf16.mxu0 0
        %653 = vmatpush1.bf16.xpose.msra.mxu0 0
        %654 = vmatprep.subr.bf16.mxu0 0
        %655 = vmatpush1.bf16.xpose.msra.mxu0 0
        %656 = vmatprep.subr.bf16.mxu0 0
        %657 = vmatpush1.bf16.xpose.msra.mxu0 0
        %658 = vmatprep.subr.bf16.mxu0 0
        %659 = vmatpush1.bf16.xpose.msra.mxu0 0
        %660 = vmatprep.subr.bf16.mxu0 0
        %661 = vmatpush1.bf16.xpose.msra.mxu0 0
        %662 = vmatprep.subr.bf16.mxu0 0
        %663 = vmatpush1.bf16.xpose.msra.mxu0 0
        %664 = vmatprep.subr.bf16.mxu0 0
        %665 = vmatpush1.bf16.xpose.msra.mxu0 0
        %666 = vmatprep.subr.bf16.mxu0 0
        %667 = vmatpush1.bf16.xpose.msra.mxu0 0
        %668 = vmatprep.mubr.bf16.mxu0 0
        %669 = vmatmul.mubr.bf16.gmra.mrb[0].mxu0 %v631
        %v670 = vpop.f32.mrb[0].mxu0
        %v671 = vadd.f32 0.0, %v670
        %v672 = vpop.f32.mrb[0].mxu0
        %v673 = vpop.f32.mrb[0].mxu0
        %v674 = vpop.f32.mrb[0].mxu0
        %675 = vdwg.mxu0
        %v676 = vsel %vm594, %v671, -1e+30
        %v677 = vld [vmem:[#allocation2] sm:$0xff]
        %vm678 = vcmask 64512
        %v679 = vsel %vm678, %v676, -inf
        %680 = vmax.xlane.f32.xlu0 %v679
        %v681 = vpop.xlane.xlu0 %680
        %v682 = vmax.f32 %v677, %v681
        %v683 = vsub.f32 %v677, %v682
        %v684 = vmul.f32 %v683, 1.442695
        %v685 = vpow.pop %v684
        %687 = vset.pattern.permute.xlu0 0
        %688 = vperm.xlu0 %687, %v682
        %v689 = vpop.permute.xlu0 %688
        %v691 = vsub.f32 %v676, %v689
        %v692 = vmul.f32 %v691, 1.442695
        %v693 = vpow.pop %v692
        %v694 = vld [vmem:[#allocation3] sm:$0xff]
        %v695 = vmul.f32 %v685, %v694
        %v696 = vsel %vm678, %v693, 0.0
        %697 = vadd.xlane.f32.xlu0 %v696
        %v698 = vpop.xlane.xlu0 %697
        %v699 = vadd.f32 %v695, %v698
        %vm700 = vcmask 7168
        %701 = vst.msk [vmem:[#allocation3] sm:$0xff] %vm700, %v699
        %v702 = vld [vmem:[#allocation4] sm:$0xff]
        %704 = vset.pattern.permute.xlu0 0
        %705 = vperm.xlu0 %704, %v685
        %v706 = vpop.permute.xlu0 %705
        %v708 = vmul.f32 %v706, %v702
        %v709 = vpack.c.bf16 %v693, %v693
        %v710 = vld [vmem:[%s520] sm:$0xf]
        %v712 = vsel %vm678, %v709, 0
        %vm714 = vcmask 1043456
        %v716 = vsel %vm714, %v710, 0
        %718 = vmatprep.subr.bf16.mxu0 0
        %719 = vmatpush1.bf16.msra.mxu0 %v716
        %720 = vmatprep.subr.bf16.mxu0 0
        %721 = vmatpush1.bf16.msra.mxu0 0
        %722 = vmatprep.subr.bf16.mxu0 0
        %723 = vmatpush1.bf16.msra.mxu0 0
        %724 = vmatprep.subr.bf16.mxu0 0
        %725 = vmatpush1.bf16.msra.mxu0 0
        %726 = vmatprep.subr.bf16.mxu0 0
        %727 = vmatpush1.bf16.msra.mxu0 0
        %728 = vmatprep.subr.bf16.mxu0 0
        %729 = vmatpush1.bf16.msra.mxu0 0
        %730 = vmatprep.subr.bf16.mxu0 0
        %731 = vmatpush1.bf16.msra.mxu0 0
        %732 = vmatprep.subr.bf16.mxu0 0
        %733 = vmatpush1.bf16.msra.mxu0 0
        %734 = vmatprep.subr.bf16.mxu0 0
        %735 = vmatpush1.bf16.msra.mxu0 0
        %736 = vmatprep.subr.bf16.mxu0 0
        %737 = vmatpush1.bf16.msra.mxu0 0
        %738 = vmatprep.subr.bf16.mxu0 0
        %739 = vmatpush1.bf16.msra.mxu0 0
        %740 = vmatprep.subr.bf16.mxu0 0
        %741 = vmatpush1.bf16.msra.mxu0 0
        %742 = vmatprep.subr.bf16.mxu0 0
        %743 = vmatpush1.bf16.msra.mxu0 0
        %744 = vmatprep.subr.bf16.mxu0 0
        %745 = vmatpush1.bf16.msra.mxu0 0
        %746 = vmatprep.subr.bf16.mxu0 0
        %747 = vmatpush1.bf16.msra.mxu0 0
        %748 = vmatprep.subr.bf16.mxu0 0
        %749 = vmatpush1.bf16.msra.mxu0 0
        %750 = vmatprep.mubr.bf16.mxu0 0
        %751 = vmatmul.mubr.bf16.gmra.mrb[0].mxu0 %v712
        %v752 = vpop.f32.mrb[0].mxu0
        %v753 = vadd.f32 0.0, %v752
        %v754 = vpop.f32.mrb[0].mxu0
        %v755 = vpop.f32.mrb[0].mxu0
        %v756 = vpop.f32.mrb[0].mxu0
        %757 = vdwg.mxu0
        %v758 = vadd.f32 %v708, %v753
        %759 = vst.msk [vmem:[#allocation4] sm:$0xff] %vm629, %v758
        %760 = vst.msk [vmem:[#allocation2] sm:$0xff] %vm700, %v682
        %v761 = vld [vmem:[%s493] sm:$0xf]
        %v762 = vunpack.c.l.bf16 %v761
        %v763 = vmul.f32 %v762, 0.17677669
        %v764 = vld [vmem:[%s506] sm:$0xf]
        %v765 = vunpack.c.l.bf16 %v764
        %v766 = vsub.f32 0.0, %v763
        %768 = vrot.lane.b32.xlu0 %v766, 80
        %v769 = vpop.permute.xlu0 %768
        %772 = vrot.lane.b32.xlu0 %v763, 112
        %v773 = vpop.permute.xlu0 %772
        %v775 = vsel %vm609, %v769, %v773
        %777 = vrot.lane.b32.xlu0 %v582, 32
        %v778 = vpop.permute.xlu0 %777
        %v780 = vmul.f32 %v763, %v778
        %v781 = vmul.f32 %v775, %v583
        %783 = vrot.lane.b32.xlu0 %v781, 32
        %v784 = vpop.permute.xlu0 %783
        %v786 = vadd.f32 %v780, %v784
        %v787 = vpack.c.bf16 %v786, %v786
        %v788 = vsub.f32 0.0, %v765
        %790 = vrot.lane.b32.xlu0 %v788, 80
        %v791 = vpop.permute.xlu0 %790
        %794 = vrot.lane.b32.xlu0 %v765, 112
        %v795 = vpop.permute.xlu0 %794
        %v797 = vsel %vm609, %v791, %v795
        %799 = vrot.lane.b32.xlu0 %v584, 32
        %v800 = vpop.permute.xlu0 %799
        %v802 = vmul.f32 %v765, %v800
        %v803 = vmul.f32 %v797, %v585
        %805 = vrot.lane.b32.xlu0 %v803, 32
        %v806 = vpop.permute.xlu0 %805
        %v808 = vadd.f32 %v802, %v806
        %v809 = vpack.c.bf16 %v808, %v808
        %811 = vrot.lane.b32.xlu0 %v787, 96
        %v812 = vpop.permute.xlu0 %811
        %814 = vrot.lane.b32.xlu0 %v809, 96
        %v815 = vpop.permute.xlu0 %814
        %v817 = vsel %vm629, %v812, 0
        %v820 = vsel %vm629, %v815, 0
        %822 = vmatprep.subr.bf16.mxu0 0
        %823 = vmatpush1.bf16.xpose.msra.mxu0 %v820
        %824 = vmatprep.subr.bf16.mxu0 0
        %825 = vmatpush1.bf16.xpose.msra.mxu0 0
        %826 = vmatprep.subr.bf16.mxu0 0
        %827 = vmatpush1.bf16.xpose.msra.mxu0 0
        %828 = vmatprep.subr.bf16.mxu0 0
        %829 = vmatpush1.bf16.xpose.msra.mxu0 0
        %830 = vmatprep.subr.bf16.mxu0 0
        %831 = vmatpush1.bf16.xpose.msra.mxu0 0
        %832 = vmatprep.subr.bf16.mxu0 0
        %833 = vmatpush1.bf16.xpose.msra.mxu0 0
        %834 = vmatprep.subr.bf16.mxu0 0
        %835 = vmatpush1.bf16.xpose.msra.mxu0 0
        %836 = vmatprep.subr.bf16.mxu0 0
        %837 = vmatpush1.bf16.xpose.msra.mxu0 0
        %838 = vmatprep.subr.bf16.mxu0 0
        %839 = vmatpush1.bf16.xpose.msra.mxu0 0
        %840 = vmatprep.subr.bf16.mxu0 0
        %841 = vmatpush1.bf16.xpose.msra.mxu0 0
        %842 = vmatprep.subr.bf16.mxu0 0
        %843 = vmatpush1.bf16.xpose.msra.mxu0 0
        %844 = vmatprep.subr.bf16.mxu0 0
        %845 = vmatpush1.bf16.xpose.msra.mxu0 0
        %846 = vmatprep.subr.bf16.mxu0 0
        %847 = vmatpush1.bf16.xpose.msra.mxu0 0
        %848 = vmatprep.subr.bf16.mxu0 0
        %849 = vmatpush1.bf16.xpose.msra.mxu0 0
        %850 = vmatprep.subr.bf16.mxu0 0
        %851 = vmatpush1.bf16.xpose.msra.mxu0 0
        %852 = vmatprep.subr.bf16.mxu0 0
        %853 = vmatpush1.bf16.xpose.msra.mxu0 0
        %854 = vmatprep.mubr.bf16.mxu0 0
        %855 = vmatmul.mubr.bf16.gmra.mrb[0].mxu0 %v817
        %v856 = vpop.f32.mrb[0].mxu0
        %v857 = vadd.f32 0.0, %v856
        %v858 = vpop.f32.mrb[0].mxu0
        %v859 = vpop.f32.mrb[0].mxu0
        %v860 = vpop.f32.mrb[0].mxu0
        %861 = vdwg.mxu0
        %v862 = vsel %vm594, %v857, -1e+30
        %s863 = scalar_lea.vmem [#allocation2], 8
        %v864 = vld [vmem:[%s863] sm:$0xff]
        %v865 = vsel %vm678, %v862, -inf
        %866 = vmax.xlane.f32.xlu0 %v865
        %v867 = vpop.xlane.xlu0 %866
        %v868 = vmax.f32 %v864, %v867
        %v869 = vsub.f32 %v864, %v868
        %v870 = vmul.f32 %v869, 1.442695
        %v871 = vpow.pop %v870
        %873 = vset.pattern.permute.xlu0 0
        %874 = vperm.xlu0 %873, %v868
        %v875 = vpop.permute.xlu0 %874
        %v877 = vsub.f32 %v862, %v875
        %v878 = vmul.f32 %v877, 1.442695
        %v879 = vpow.pop %v878
        %s880 = scalar_lea.vmem [#allocation3], 8
        %v881 = vld [vmem:[%s880] sm:$0xff]
        %v882 = vmul.f32 %v871, %v881
        %v883 = vsel %vm678, %v879, 0.0
        %884 = vadd.xlane.f32.xlu0 %v883
        %v885 = vpop.xlane.xlu0 %884
        %v886 = vadd.f32 %v882, %v885
        %887 = vst.msk [vmem:[%s880] sm:$0xff] %vm700, %v886
        %v888 = vld [vmem:[#allocation4] sm:$0xff]
        %890 = vset.pattern.permute.xlu0 0
        %891 = vperm.xlu0 %890, %v871
        %v892 = vpop.permute.xlu0 %891
        %v894 = vmul.f32 %v892, %v888
        %v895 = vpack.c.bf16 %v879, %v879
        %v896 = vld [vmem:[%s520] sm:$0xf]
        %v898 = vunpack.c.l.b16 %v896
        %v899 = vpack.c.b16 %v898, %v898
        %900 = vrot.lane.b32.xlu0 %v899, 96
        %v901 = vpop.permute.xlu0 %900
        %v903 = vsel %vm678, %v895, 0
        %v906 = vsel %vm714, %v901, 0
        %908 = vmatprep.subr.bf16.mxu0 0
        %909 = vmatpush1.bf16.msra.mxu0 %v906
        %910 = vmatprep.subr.bf16.mxu0 0
        %911 = vmatpush1.bf16.msra.mxu0 0
        %912 = vmatprep.subr.bf16.mxu0 0
        %913 = vmatpush1.bf16.msra.mxu0 0
        %914 = vmatprep.subr.bf16.mxu0 0
        %915 = vmatpush1.bf16.msra.mxu0 0
        %916 = vmatprep.subr.bf16.mxu0 0
        %917 = vmatpush1.bf16.msra.mxu0 0
        %918 = vmatprep.subr.bf16.mxu0 0
        %919 = vmatpush1.bf16.msra.mxu0 0
        %920 = vmatprep.subr.bf16.mxu0 0
        %921 = vmatpush1.bf16.msra.mxu0 0
        %922 = vmatprep.subr.bf16.mxu0 0
        %923 = vmatpush1.bf16.msra.mxu0 0
        %924 = vmatprep.subr.bf16.mxu0 0
        %925 = vmatpush1.bf16.msra.mxu0 0
        %926 = vmatprep.subr.bf16.mxu0 0
        %927 = vmatpush1.bf16.msra.mxu0 0
        %928 = vmatprep.subr.bf16.mxu0 0
        %929 = vmatpush1.bf16.msra.mxu0 0
        %930 = vmatprep.subr.bf16.mxu0 0
        %931 = vmatpush1.bf16.msra.mxu0 0
        %932 = vmatprep.subr.bf16.mxu0 0
        %933 = vmatpush1.bf16.msra.mxu0 0
        %934 = vmatprep.subr.bf16.mxu0 0
        %935 = vmatpush1.bf16.msra.mxu0 0
        %936 = vmatprep.subr.bf16.mxu0 0
        %937 = vmatpush1.bf16.msra.mxu0 0
        %938 = vmatprep.subr.bf16.mxu0 0
        %939 = vmatpush1.bf16.msra.mxu0 0
        %940 = vmatprep.mubr.bf16.mxu0 0
        %941 = vmatmul.mubr.bf16.gmra.mrb[0].mxu0 %v903
        %v942 = vpop.f32.mrb[0].mxu0
        %v943 = vadd.f32 0.0, %v942
        %v944 = vpop.f32.mrb[0].mxu0
        %v945 = vpop.f32.mrb[0].mxu0
        %v946 = vpop.f32.mrb[0].mxu0
        %947 = vdwg.mxu0
        %949 = vrot.lane.b32.xlu0 %v943, 32
        %v950 = vpop.permute.xlu0 %949
        %v952 = vadd.f32 %v894, %v950
        %vm953 = vcmask 523520
        %954 = vst.msk [vmem:[#allocation4] sm:$0xff] %vm953, %v952
        %955 = vst.msk [vmem:[%s863] sm:$0xff] %vm700, %v868
        %v956 = vld [vmem:[%s493] sm:$0xf]
        %v957 = vunpack.c.l.bf16 %v956
        %v958 = vmul.f32 %v957, 0.17677669
        %v959 = vld [vmem:[%s506] sm:$0xf]
        %v960 = vunpack.c.l.bf16 %v959
        %v961 = vsub.f32 0.0, %v958
        %963 = vrot.lane.b32.xlu0 %v961, 48
        %v964 = vpop.permute.xlu0 %963
        %967 = vrot.lane.b32.xlu0 %v958, 80
        %v968 = vpop.permute.xlu0 %967
        %v970 = vsel %vm609, %v964, %v968
        %971 = vrot.lane.b32.xlu0 %v582, 64
        %v972 = vpop.permute.xlu0 %971
        %v974 = vmul.f32 %v958, %v972
        %v975 = vmul.f32 %v970, %v583
        %977 = vrot.lane.b32.xlu0 %v975, 64
        %v978 = vpop.permute.xlu0 %977
        %v980 = vadd.f32 %v974, %v978
        %v981 = vpack.c.bf16 %v980, %v980
        %v982 = vsub.f32 0.0, %v960
        %984 = vrot.lane.b32.xlu0 %v982, 48
        %v985 = vpop.permute.xlu0 %984
        %988 = vrot.lane.b32.xlu0 %v960, 80
        %v989 = vpop.permute.xlu0 %988
        %v991 = vsel %vm609, %v985, %v989
        %992 = vrot.lane.b32.xlu0 %v584, 64
        %v993 = vpop.permute.xlu0 %992
        %v995 = vmul.f32 %v960, %v993
        %v996 = vmul.f32 %v991, %v585
        %998 = vrot.lane.b32.xlu0 %v996, 64
        %v999 = vpop.permute.xlu0 %998
        %v1001 = vadd.f32 %v995, %v999
        %v1002 = vpack.c.bf16 %v1001, %v1001
        %1004 = vrot.lane.b32.xlu0 %v981, 64
        %v1005 = vpop.permute.xlu0 %1004
        %1007 = vrot.lane.b32.xlu0 %v1002, 64
        %v1008 = vpop.permute.xlu0 %1007
        %v1010 = vsel %vm629, %v1005, 0
        %v1013 = vsel %vm629, %v1008, 0
        %1015 = vmatprep.subr.bf16.mxu0 0
        %1016 = vmatpush1.bf16.xpose.msra.mxu0 %v1013
        %1017 = vmatprep.subr.bf16.mxu0 0
        %1018 = vmatpush1.bf16.xpose.msra.mxu0 0
        %1019 = vmatprep.subr.bf16.mxu0 0
        %1020 = vmatpush1.bf16.xpose.msra.mxu0 0
        %1021 = vmatprep.subr.bf16.mxu0 0
        %1022 = vmatpush1.bf16.xpose.msra.mxu0 0
        %1023 = vmatprep.subr.bf16.mxu0 0
        %1024 = vmatpush1.bf16.xpose.msra.mxu0 0
        %1025 = vmatprep.subr.bf16.mxu0 0
        %1026 = vmatpush1.bf16.xpose.msra.mxu0 0
        %1027 = vmatprep.subr.bf16.mxu0 0
        %1028 = vmatpush1.bf16.xpose.msra.mxu0 0
        %1029 = vmatprep.subr.bf16.mxu0 0
        %1030 = vmatpush1.bf16.xpose.msra.mxu0 0
        %1031 = vmatprep.subr.bf16.mxu0 0
        %1032 = vmatpush1.bf16.xpose.msra.mxu0 0
        %1033 = vmatprep.subr.bf16.mxu0 0
        %1034 = vmatpush1.bf16.xpose.msra.mxu0 0
        %1035 = vmatprep.subr.bf16.mxu0 0
        %1036 = vmatpush1.bf16.xpose.msra.mxu0 0
        %1037 = vmatprep.subr.bf16.mxu0 0
        %1038 = vmatpush1.bf16.xpose.msra.mxu0 0
        %1039 = vmatprep.subr.bf16.mxu0 0
        %1040 = vmatpush1.bf16.xpose.msra.mxu0 0
        %1041 = vmatprep.subr.bf16.mxu0 0
        %1042 = vmatpush1.bf16.xpose.msra.mxu0 0
        %1043 = vmatprep.subr.bf16.mxu0 0
        %1044 = vmatpush1.bf16.xpose.msra.mxu0 0
        %1045 = vmatprep.subr.bf16.mxu0 0
        %1046 = vmatpush1.bf16.xpose.msra.mxu0 0
        %1047 = vmatprep.mubr.bf16.mxu0 0
        %1048 = vmatmul.mubr.bf16.gmra.mrb[0].mxu0 %v1010
        %v1049 = vpop.f32.mrb[0].mxu0
        %v1050 = vadd.f32 0.0, %v1049
        %v1051 = vpop.f32.mrb[0].mxu0
        %v1052 = vpop.f32.mrb[0].mxu0
        %v1053 = vpop.f32.mrb[0].mxu0
        %1054 = vdwg.mxu0
        %v1055 = vsel %vm594, %v1050, -1e+30
        %s1056 = scalar_lea.vmem [#allocation2], 16
        %v1057 = vld [vmem:[%s1056] sm:$0xff]
        %v1058 = vsel %vm678, %v1055, -inf
        %1059 = vmax.xlane.f32.xlu0 %v1058
        %v1060 = vpop.xlane.xlu0 %1059
        %v1061 = vmax.f32 %v1057, %v1060
        %v1062 = vsub.f32 %v1057, %v1061
        %v1063 = vmul.f32 %v1062, 1.442695
        %v1064 = vpow.pop %v1063
        %1066 = vset.pattern.permute.xlu0 0
        %1067 = vperm.xlu0 %1066, %v1061
        %v1068 = vpop.permute.xlu0 %1067
        %v1070 = vsub.f32 %v1055, %v1068
        %v1071 = vmul.f32 %v1070, 1.442695
        %v1072 = vpow.pop %v1071
        %s1073 = scalar_lea.vmem [#allocation3], 16
        %v1074 = vld [vmem:[%s1073] sm:$0xff]
        %v1075 = vmul.f32 %v1064, %v1074
        %v1076 = vsel %vm678, %v1072, 0.0
        %1077 = vadd.xlane.f32.xlu0 %v1076
        %v1078 = vpop.xlane.xlu0 %1077
        %v1079 = vadd.f32 %v1075, %v1078
        %1080 = vst.msk [vmem:[%s1073] sm:$0xff] %vm700, %v1079
        %v1081 = vld [vmem:[#allocation4] sm:$0xff]
        %1083 = vset.pattern.permute.xlu0 0
        %1084 = vperm.xlu0 %1083, %v1064
        %v1085 = vpop.permute.xlu0 %1084
        %v1087 = vmul.f32 %v1085, %v1081
        %v1088 = vpack.c.bf16 %v1072, %v1072
        %v1089 = vld [vmem:[%s520] sm:$0xf]
        %v1091 = vunpack.c.l.b16 %v1089
        %v1092 = vpack.c.b16 %v1091, %v1091
        %1093 = vrot.lane.b32.xlu0 %v1092, 64
        %v1094 = vpop.permute.xlu0 %1093
        %v1096 = vsel %vm678, %v1088, 0
        %v1099 = vsel %vm714, %v1094, 0
        %1101 = vmatprep.subr.bf16.mxu0 0
        %1102 = vmatpush1.bf16.msra.mxu0 %v1099
        %1103 = vmatprep.subr.bf16.mxu0 0
        %1104 = vmatpush1.bf16.msra.mxu0 0
        %1105 = vmatprep.subr.bf16.mxu0 0
        %1106 = vmatpush1.bf16.msra.mxu0 0
        %1107 = vmatprep.subr.bf16.mxu0 0
        %1108 = vmatpush1.bf16.msra.mxu0 0
        %1109 = vmatprep.subr.bf16.mxu0 0
        %1110 = vmatpush1.bf16.msra.mxu0 0
        %1111 = vmatprep.subr.bf16.mxu0 0
        %1112 = vmatpush1.bf16.msra.mxu0 0
        %1113 = vmatprep.subr.bf16.mxu0 0
        %1114 = vmatpush1.bf16.msra.mxu0 0
        %1115 = vmatprep.subr.bf16.mxu0 0
        %1116 = vmatpush1.bf16.msra.mxu0 0
        %1117 = vmatprep.subr.bf16.mxu0 0
        %1118 = vmatpush1.bf16.msra.mxu0 0
        %1119 = vmatprep.subr.bf16.mxu0 0
        %1120 = vmatpush1.bf16.msra.mxu0 0
        %1121 = vmatprep.subr.bf16.mxu0 0
        %1122 = vmatpush1.bf16.msra.mxu0 0
        %1123 = vmatprep.subr.bf16.mxu0 0
        %1124 = vmatpush1.bf16.msra.mxu0 0
        %1125 = vmatprep.subr.bf16.mxu0 0
        %1126 = vmatpush1.bf16.msra.mxu0 0
        %1127 = vmatprep.subr.bf16.mxu0 0
        %1128 = vmatpush1.bf16.msra.mxu0 0
        %1129 = vmatprep.subr.bf16.mxu0 0
        %1130 = vmatpush1.bf16.msra.mxu0 0
        %1131 = vmatprep.subr.bf16.mxu0 0
        %1132 = vmatpush1.bf16.msra.mxu0 0
        %1133 = vmatprep.mubr.bf16.mxu0 0
        %1134 = vmatmul.mubr.bf16.gmra.mrb[0].mxu0 %v1096
        %v1135 = vpop.f32.mrb[0].mxu0
        %v1136 = vadd.f32 0.0, %v1135
        %v1137 = vpop.f32.mrb[0].mxu0
        %v1138 = vpop.f32.mrb[0].mxu0
        %v1139 = vpop.f32.mrb[0].mxu0
        %1140 = vdwg.mxu0
        %1142 = vrot.lane.b32.xlu0 %v1136, 64
        %v1143 = vpop.permute.xlu0 %1142
        %v1145 = vadd.f32 %v1087, %v1143
        %vm1146 = vcmask 785920
        %1147 = vst.msk [vmem:[#allocation4] sm:$0xff] %vm1146, %v1145
        %1148 = vst.msk [vmem:[%s1056] sm:$0xff] %vm700, %v1061
        %v1149 = vld [vmem:[%s493] sm:$0xf]
        %v1150 = vunpack.c.l.bf16 %v1149
        %v1151 = vmul.f32 %v1150, 0.17677669
        %v1152 = vld [vmem:[%s506] sm:$0xf]
        %v1153 = vunpack.c.l.bf16 %v1152
        %v1154 = vsub.f32 0.0, %v1151
        %1156 = vrot.lane.b32.xlu0 %v1154, 16
        %v1157 = vpop.permute.xlu0 %1156
        %1160 = vrot.lane.b32.xlu0 %v1151, 48
        %v1161 = vpop.permute.xlu0 %1160
        %v1163 = vsel %vm609, %v1157, %v1161
        %1164 = vrot.lane.b32.xlu0 %v582, 96
        %v1165 = vpop.permute.xlu0 %1164
        %v1167 = vmul.f32 %v1151, %v1165
        %v1168 = vmul.f32 %v1163, %v583
        %1170 = vrot.lane.b32.xlu0 %v1168, 96
        %v1171 = vpop.permute.xlu0 %1170
        %v1173 = vadd.f32 %v1167, %v1171
        %v1174 = vpack.c.bf16 %v1173, %v1173
        %v1175 = vsub.f32 0.0, %v1153
        %1177 = vrot.lane.b32.xlu0 %v1175, 16
        %v1178 = vpop.permute.xlu0 %1177
        %1181 = vrot.lane.b32.xlu0 %v1153, 48
        %v1182 = vpop.permute.xlu0 %1181
        %v1184 = vsel %vm609, %v1178, %v1182
        %1185 = vrot.lane.b32.xlu0 %v584, 96
        %v1186 = vpop.permute.xlu0 %1185
        %v1188 = vmul.f32 %v1153, %v1186
        %v1189 = vmul.f32 %v1184, %v585
        %1191 = vrot.lane.b32.xlu0 %v1189, 96
        %v1192 = vpop.permute.xlu0 %1191
        %v1194 = vadd.f32 %v1188, %v1192
        %v1195 = vpack.c.bf16 %v1194, %v1194
        %1197 = vrot.lane.b32.xlu0 %v1174, 32
        %v1198 = vpop.permute.xlu0 %1197
        %1200 = vrot.lane.b32.xlu0 %v1195, 32
        %v1201 = vpop.permute.xlu0 %1200
        %v1203 = vsel %vm629, %v1198, 0
        %v1206 = vsel %vm629, %v1201, 0
        %1208 = vmatprep.subr.bf16.mxu0 0
        %1209 = vmatpush1.bf16.xpose.msra.mxu0 %v1206
        %1210 = vmatprep.subr.bf16.mxu0 0
        %1211 = vmatpush1.bf16.xpose.msra.mxu0 0
        %1212 = vmatprep.subr.bf16.mxu0 0
        %1213 = vmatpush1.bf16.xpose.msra.mxu0 0
        %1214 = vmatprep.subr.bf16.mxu0 0
        %1215 = vmatpush1.bf16.xpose.msra.mxu0 0
        %1216 = vmatprep.subr.bf16.mxu0 0
        %1217 = vmatpush1.bf16.xpose.msra.mxu0 0
        %1218 = vmatprep.subr.bf16.mxu0 0
        %1219 = vmatpush1.bf16.xpose.msra.mxu0 0
        %1220 = vmatprep.subr.bf16.mxu0 0
        %1221 = vmatpush1.bf16.xpose.msra.mxu0 0
        %1222 = vmatprep.subr.bf16.mxu0 0
        %1223 = vmatpush1.bf16.xpose.msra.mxu0 0
        %1224 = vmatprep.subr.bf16.mxu0 0
        %1225 = vmatpush1.bf16.xpose.msra.mxu0 0
        %1226 = vmatprep.subr.bf16.mxu0 0
        %1227 = vmatpush1.bf16.xpose.msra.mxu0 0
        %1228 = vmatprep.subr.bf16.mxu0 0
        %1229 = vmatpush1.bf16.xpose.msra.mxu0 0
        %1230 = vmatprep.subr.bf16.mxu0 0
        %1231 = vmatpush1.bf16.xpose.msra.mxu0 0
        %1232 = vmatprep.subr.bf16.mxu0 0
        %1233 = vmatpush1.bf16.xpose.msra.mxu0 0
        %1234 = vmatprep.subr.bf16.mxu0 0
        %1235 = vmatpush1.bf16.xpose.msra.mxu0 0
        %1236 = vmatprep.subr.bf16.mxu0 0
        %1237 = vmatpush1.bf16.xpose.msra.mxu0 0
        %1238 = vmatprep.subr.bf16.mxu0 0
        %1239 = vmatpush1.bf16.xpose.msra.mxu0 0
        %1240 = vmatprep.mubr.bf16.mxu0 0
        %1241 = vmatmul.mubr.bf16.gmra.mrb[0].mxu0 %v1203
        %v1242 = vpop.f32.mrb[0].mxu0
        %v1243 = vadd.f32 0.0, %v1242
        %v1244 = vpop.f32.mrb[0].mxu0
        %v1245 = vpop.f32.mrb[0].mxu0
        %v1246 = vpop.f32.mrb[0].mxu0
        %1247 = vdwg.mxu0
        %v1248 = vsel %vm594, %v1243, -1e+30
        %s1249 = scalar_lea.vmem [#allocation2], 24
        %v1250 = vld [vmem:[%s1249] sm:$0xff]
        %v1251 = vsel %vm678, %v1248, -inf
        %1252 = vmax.xlane.f32.xlu0 %v1251
        %v1253 = vpop.xlane.xlu0 %1252
        %v1254 = vmax.f32 %v1250, %v1253
        %v1255 = vsub.f32 %v1250, %v1254
        %v1256 = vmul.f32 %v1255, 1.442695
        %v1257 = vpow.pop %v1256
        %1259 = vset.pattern.permute.xlu0 0
        %1260 = vperm.xlu0 %1259, %v1254
        %v1261 = vpop.permute.xlu0 %1260
        %v1263 = vsub.f32 %v1248, %v1261
        %v1264 = vmul.f32 %v1263, 1.442695
        %v1265 = vpow.pop %v1264
        %s1266 = scalar_lea.vmem [#allocation3], 24
        %v1267 = vld [vmem:[%s1266] sm:$0xff]
        %v1268 = vmul.f32 %v1257, %v1267
        %v1269 = vsel %vm678, %v1265, 0.0
        %1270 = vadd.xlane.f32.xlu0 %v1269
        %v1271 = vpop.xlane.xlu0 %1270
        %v1272 = vadd.f32 %v1268, %v1271
        %1273 = vst.msk [vmem:[%s1266] sm:$0xff] %vm700, %v1272
        %v1274 = vld [vmem:[#allocation4] sm:$0xff]
        %1276 = vset.pattern.permute.xlu0 0
        %1277 = vperm.xlu0 %1276, %v1257
        %v1278 = vpop.permute.xlu0 %1277
        %v1280 = vmul.f32 %v1278, %v1274
        %v1281 = vpack.c.bf16 %v1265, %v1265
        %v1282 = vld [vmem:[%s520] sm:$0xf]
        %v1284 = vunpack.c.l.b16 %v1282
        %v1285 = vpack.c.b16 %v1284, %v1284
        %1286 = vrot.lane.b32.xlu0 %v1285, 32
        %v1287 = vpop.permute.xlu0 %1286
        %v1289 = vsel %vm678, %v1281, 0
        %v1292 = vsel %vm714, %v1287, 0
        %1294 = vmatprep.subr.bf16.mxu0 0
        %1295 = vmatpush1.bf16.msra.mxu0 %v1292
        %1296 = vmatprep.subr.bf16.mxu0 0
        %1297 = vmatpush1.bf16.msra.mxu0 0
        %1298 = vmatprep.subr.bf16.mxu0 0
        %1299 = vmatpush1.bf16.msra.mxu0 0
        %1300 = vmatprep.subr.bf16.mxu0 0
        %1301 = vmatpush1.bf16.msra.mxu0 0
        %1302 = vmatprep.subr.bf16.mxu0 0
        %1303 = vmatpush1.bf16.msra.mxu0 0
        %1304 = vmatprep.subr.bf16.mxu0 0
        %1305 = vmatpush1.bf16.msra.mxu0 0
        %1306 = vmatprep.subr.bf16.mxu0 0
        %1307 = vmatpush1.bf16.msra.mxu0 0
        %1308 = vmatprep.subr.bf16.mxu0 0
        %1309 = vmatpush1.bf16.msra.mxu0 0
        %1310 = vmatprep.subr.bf16.mxu0 0
        %1311 = vmatpush1.bf16.msra.mxu0 0
        %1312 = vmatprep.subr.bf16.mxu0 0
        %1313 = vmatpush1.bf16.msra.mxu0 0
        %1314 = vmatprep.subr.bf16.mxu0 0
        %1315 = vmatpush1.bf16.msra.mxu0 0
        %1316 = vmatprep.subr.bf16.mxu0 0
        %1317 = vmatpush1.bf16.msra.mxu0 0
        %1318 = vmatprep.subr.bf16.mxu0 0
        %1319 = vmatpush1.bf16.msra.mxu0 0
        %1320 = vmatprep.subr.bf16.mxu0 0
        %1321 = vmatpush1.bf16.msra.mxu0 0
        %1322 = vmatprep.subr.bf16.mxu0 0
        %1323 = vmatpush1.bf16.msra.mxu0 0
        %1324 = vmatprep.subr.bf16.mxu0 0
        %1325 = vmatpush1.bf16.msra.mxu0 0
        %1326 = vmatprep.mubr.bf16.mxu0 0
        %1327 = vmatmul.mubr.bf16.gmra.mrb[0].mxu0 %v1289
        %v1328 = vpop.f32.mrb[0].mxu0
        %v1329 = vadd.f32 0.0, %v1328
        %v1330 = vpop.f32.mrb[0].mxu0
        %v1331 = vpop.f32.mrb[0].mxu0
        %v1332 = vpop.f32.mrb[0].mxu0
        %1333 = vdwg.mxu0
        %1335 = vrot.lane.b32.xlu0 %v1329, 96
        %v1336 = vpop.permute.xlu0 %1335
        %v1338 = vadd.f32 %v1280, %v1336
        %vm1339 = vcmask 1048320
        %1340 = vst.msk [vmem:[#allocation4] sm:$0xff] %vm1339, %v1338
        %1341 = vst.msk [vmem:[%s1249] sm:$0xff] %vm700, %v1254
      $region56: #{_lambda_.5} parent=47 // pred_fallthru
        _
      // Predicated region
      $region57: #{_lambda_.5} parent=47 // pred_check
        %p1342 = pneg %p561
      $region58: #{_lambda_.5} parent=47 // pred_check_branch
        %1344 = sbr.rel (%p1342) target = $region60
      $region59: #{_lambda_.5} parent=47 // pred_region
        %v1345 = vld [vmem:[#allocation3] sm:$0xff]
        %v1346 = vrcp.pop %v1345
        %v1347 = vld [vmem:[#allocation4] sm:$0xff]
        %1349 = vset.pattern.permute.xlu0 0
        %1350 = vperm.xlu0 %1349, %v1346
        %v1351 = vpop.permute.xlu0 %1350
        %v1353 = vmul.f32 %v1347, %v1351
        %vm1354 = vcmask 261120
        %1355 = vst.msk [vmem:[#allocation4] sm:$0xff] %vm1354, %v1353
        %s1356 = scalar_lea.vmem [#allocation3], 8
        %v1357 = vld [vmem:[%s1356] sm:$0xff]
        %v1358 = vrcp.pop %v1357
        %v1359 = vld [vmem:[#allocation4] sm:$0xff]
        %1361 = vset.pattern.permute.xlu0 0
        %1362 = vperm.xlu0 %1361, %v1358
        %v1363 = vpop.permute.xlu0 %1362
        %v1365 = vmul.f32 %v1359, %v1363
        %vm1366 = vcmask 523520
        %1367 = vst.msk [vmem:[#allocation4] sm:$0xff] %vm1366, %v1365
        %s1368 = scalar_lea.vmem [#allocation3], 16
        %v1369 = vld [vmem:[%s1368] sm:$0xff]
        %v1370 = vrcp.pop %v1369
        %v1371 = vld [vmem:[#allocation4] sm:$0xff]
        %1373 = vset.pattern.permute.xlu0 0
        %1374 = vperm.xlu0 %1373, %v1370
        %v1375 = vpop.permute.xlu0 %1374
        %v1377 = vmul.f32 %v1371, %v1375
        %vm1378 = vcmask 785920
        %1379 = vst.msk [vmem:[#allocation4] sm:$0xff] %vm1378, %v1377
        %s1380 = scalar_lea.vmem [#allocation3], 24
        %v1381 = vld [vmem:[%s1380] sm:$0xff]
        %v1382 = vrcp.pop %v1381
        %v1383 = vld [vmem:[#allocation4] sm:$0xff]
        %1385 = vset.pattern.permute.xlu0 0
        %1386 = vperm.xlu0 %1385, %v1382
        %v1387 = vpop.permute.xlu0 %1386
        %v1389 = vmul.f32 %v1383, %v1387
        %vm1390 = vcmask 1048320
        %1391 = vst.msk [vmem:[#allocation4] sm:$0xff] %vm1390, %v1389
        %v1392 = vld [vmem:[#allocation4] sm:$0xff]
        %v1393 = vpack.c.bf16 %v1392, %v1392
        %1394 = vst [vmem:[%s559] sm:$0xf] %v1393
      $region60: #{_lambda_.5} parent=47 // pred_fallthru
        _
      %p1395 = scmp.lt.s32.totalorder %s24, 1
      %s1396 = scalar_select %p1395, %s24, 1
      %p1397 = scmp.lt.s32.totalorder %s26, 0
      %s1398 = scalar_select %p1397, %s26, 0
      %p1399 = scmp.lt.s32.totalorder %s25, 0
      %s1400 = scalar_select %p1399, %s25, 0
      %s1401 = sadd.s32 %s1400, %s1398
      %s1402 = sadd.s32 %s1401, %s1396
      %s1403 = smul.addr %s1402, 4
      %s1404 = scalar_lea.vmem %s7, %s1403
      // Predicated region
      $region61: #{_lambda_.5} parent=47 // pred_check
        %p1405 = pneg %p272
      $region62: #{_lambda_.5} parent=47 // pred_check_branch
        %1407 = sbr.rel (%p1405) target = $region64
      $region63: #{_lambda_.5} parent=47 // pred_region
        _
      $region64: #{_lambda_.5} parent=47 // pred_fallthru
        _
    $region48: #{_lambda_.5} parent=5 // pred_fallthru
      _
    %p1408 = scmp.le.s32.totalorder 2, %s13
    // Predicated region
    $region65: #{_lambda_.5} parent=5 // pred_check
      %p1409 = pneg %p1408
    $region66: #{_lambda_.5} parent=5 // pred_check_branch
      %1411 = sbr.rel (%p1409) target = $region68
    $region67: #{_lambda_.5} parent=5 // pred_region
      %s1412 = ssub.s32 %s13, 2
      // Predicated region
      $region69: #{_lambda_.5} parent=67 // pred_check
        %p1413 = pneg %p278
      $region70: #{_lambda_.5} parent=67 // pred_check_branch
        %1415 = sbr.rel (%p1413) target = $region72
      $region71: #{_lambda_.5} parent=67 // pred_region
        %p1416 = scmp.lt.s32.totalorder %s28, 1
        %s1417 = scalar_select %p1416, %s28, 1
        %p1418 = scmp.lt.s32.totalorder %s30, 0
        %s1419 = scalar_select %p1418, %s30, 0
        %p1420 = scmp.lt.s32.totalorder %s29, 0
        %s1421 = scalar_select %p1420, %s29, 0
        %s1422 = sadd.s32 %s1421, %s1419
        %s1423 = sadd.s32 %s1422, %s1417
        %s1424 = smul.addr %s1423, 4
        %s1425 = scalar_lea.vmem %s7, %s1424
      $region72: #{_lambda_.5} parent=67 // pred_fallthru
        _
    $region68: #{_lambda_.5} parent=5 // pred_fallthru
      _
  $region6: #{_lambda_.5} parent=0 // loop_footer
    %s17 = sadd.s32 1, %s13
  $region7: #{_lambda_.5} parent=0 // loop_footer_branch
    %12 = sbr.rel target = $region3
  $region8: #{_lambda_.5} parent=0 // loop_exit
    _

</llo_original>
